<compile_context>
chip_gen: v7x
topology: tpu7x:2x2x1
jax: 0.10.0
libtpu: 0.0.40
codegen_flags: <defaults>
</compile_context>

<pallas_src>
import jax
import jax.numpy as jnp
from jax import lax
from jax.experimental import pallas as pl
from jax.experimental.pallas import tpu as pltpu

# ----------------------------- model config ---------------------------------
BATCH = 2
CHANNELS = 3
IMG = 16
PATCH = 8
NUM_PATCHES = (IMG // PATCH) * (IMG // PATCH)       # 4
SEQ = NUM_PATCHES + 2                               # cls + distillation = 6
ROWS = BATCH * SEQ                                  # 12 flattened tokens
HIDDEN = 32
NUM_HEADS = 4
HEAD_DIM = HIDDEN // NUM_HEADS                      # 8
MLP_DIM = 64
NUM_LAYERS = 2
NUM_LABELS = 5
HEAD_PAD = 128                                      # lane-dense padded logits
LN_EPS = 1e-6


# ----------------------------- fused Pallas kernel --------------------------
def _gelu(x):
    # TODO(synk): DEiT/HF uses erf-GELU; tanh approximation used here.
    return 0.5 * x * (1.0 + jnp.tanh(0.7978845608028654 *
                                     (x + 0.044715 * x * x * x)))


def _layernorm(x, g, b):
    mu = jnp.mean(x, axis=-1, keepdims=True)
    xc = x - mu
    var = jnp.mean(xc * xc, axis=-1, keepdims=True)
    return xc * lax.rsqrt(var + LN_EPS) * g + b


def _deit_kernel(patches_ref, sel_ref, tok_ref, mask_ref,
                 patch_w_ref, patch_b_ref,
                 ln1_g_ref, ln1_b_ref, qkv_w_ref, qkv_b_ref,
                 o_w_ref, o_b_ref, ln2_g_ref, ln2_b_ref,
                 fc1_w_ref, fc1_b_ref, fc2_w_ref, fc2_b_ref,
                 lnf_g_ref, lnf_b_ref, cls_sel_ref,
                 pool_w_ref, pool_b_ref, head_w_ref, head_b_ref,
                 out_ref):
    f32 = jnp.float32

    # Patch embedding: only matmul with a real contraction dim (K = C*P*P).
    pe = jnp.dot(patches_ref[...], patch_w_ref[...],
                 preferred_element_type=f32) + patch_b_ref[...]        # (B*NP, D)

    # Token assembly via a constant placement matrix:
    #   rows b*S+0 / b*S+1 get cls+pos0 / dist+pos1, patch rows get pe + pos.
    h = jnp.dot(sel_ref[...], pe, preferred_element_type=f32) + tok_ref[...]

    mask = mask_ref[...]                    # (ROWS, ROWS) block-diagonal 0/-1e9
    scale = 1.0 / (HEAD_DIM ** 0.5)

    for l in range(NUM_LAYERS):             # static unroll over layers
        # ---------------- multi-head self attention (pre-LN) ----------------
        hn = _layernorm(h, ln1_g_ref[l], ln1_b_ref[l])
        qkv = jnp.dot(hn, qkv_w_ref[l],
                      preferred_element_type=f32) + qkv_b_ref[l]       # (ROWS, 3D)
        o_w = o_w_ref[l]                                               # (D, D)

        acc = jnp.zeros((ROWS, HIDDEN), f32)
        for hd in range(NUM_HEADS):         # static unroll over heads
            lo = hd * HEAD_DIM
            q = qkv[:, lo:lo + HEAD_DIM]
            k = qkv[:, HIDDEN + lo:HIDDEN + lo + HEAD_DIM]
            v = qkv[:, 2 * HIDDEN + lo:2 * HIDDEN + lo + HEAD_DIM]
            # batch handled by block-diagonal mask (cross-batch -> -1e9 -> 0)
            s = lax.dot_general(q, k, (((1,), (1,)), ((), ())),
                                preferred_element_type=f32) * scale + mask
            s = s - jnp.max(s, axis=-1, keepdims=True)
            p = jnp.exp(s)
            p = p / jnp.sum(p, axis=-1, keepdims=True)
            ctx = jnp.dot(p, v, preferred_element_type=f32)            # (ROWS, DH)
            # fused head-merge + output projection
            acc = acc + jnp.dot(ctx, o_w[lo:lo + HEAD_DIM, :],
                                preferred_element_type=f32)
        h = h + acc + o_b_ref[l]

        # ------------------------------ MLP (pre-LN) -------------------------
        hn = _layernorm(h, ln2_g_ref[l], ln2_b_ref[l])
        m = _gelu(jnp.dot(hn, fc1_w_ref[l],
                          preferred_element_type=f32) + fc1_b_ref[l])
        h = h + jnp.dot(m, fc2_w_ref[l],
                        preferred_element_type=f32) + fc2_b_ref[l]

    # -------- final LN, tanh pooler over CLS tokens, padded linear head ------
    hf = _layernorm(h, lnf_g_ref[...], lnf_b_ref[...])
    cls = jnp.dot(cls_sel_ref[...], hf, preferred_element_type=f32)    # (B, D)
    pooled = jnp.tanh(jnp.dot(cls, pool_w_ref[...],
                              preferred_element_type=f32) + pool_b_ref[...])
    # nn.Dropout(0.1) declared in __init__ but not applied in forward -> no-op.
    logits = jnp.dot(pooled, head_w_ref[...],
                     preferred_element_type=f32) + head_b_ref[...]     # (B, 128)
    out_ref[...] = logits


# ----------------------------- parameters ------------------------------------
def init_params(key):
    def dense(k, fan_in, fan_out):
        kw, kb = jax.random.split(k)
        w = jax.random.normal(kw, (fan_in, fan_out), jnp.float32) * (fan_in ** -0.5)
        b = jax.random.normal(kb, (fan_out,), jnp.float32) * 0.01
        return w, b

    keys = iter(jax.random.split(key, 64))
    params = {}
    params["patch_w"], params["patch_b"] = dense(next(keys),
                                                 CHANNELS * PATCH * PATCH, HIDDEN)
    params["cls_token"] = jax.random.normal(next(keys), (1, 1, HIDDEN), jnp.float32) * 0.02
    params["dist_token"] = jax.random.normal(next(keys), (1, 1, HIDDEN), jnp.float32) * 0.02
    params["pos_emb"] = jax.random.normal(next(keys), (1, SEQ, HIDDEN), jnp.float32) * 0.02

    layers = []
    for _ in range(NUM_LAYERS):
        lyr = {}
        lyr["ln1_g"] = jnp.ones((HIDDEN,), jnp.float32)
        lyr["ln1_b"] = jnp.zeros((HIDDEN,), jnp.float32)
        lyr["q_w"], lyr["q_b"] = dense(next(keys), HIDDEN, HIDDEN)
        lyr["k_w"], lyr["k_b"] = dense(next(keys), HIDDEN, HIDDEN)
        lyr["v_w"], lyr["v_b"] = dense(next(keys), HIDDEN, HIDDEN)
        lyr["o_w"], lyr["o_b"] = dense(next(keys), HIDDEN, HIDDEN)
        lyr["ln2_g"] = jnp.ones((HIDDEN,), jnp.float32)
        lyr["ln2_b"] = jnp.zeros((HIDDEN,), jnp.float32)
        lyr["fc1_w"], lyr["fc1_b"] = dense(next(keys), HIDDEN, MLP_DIM)
        lyr["fc2_w"], lyr["fc2_b"] = dense(next(keys), MLP_DIM, HIDDEN)
        layers.append(lyr)
    params["layers"] = layers

    params["lnf_g"] = jnp.ones((HIDDEN,), jnp.float32)
    params["lnf_b"] = jnp.zeros((HIDDEN,), jnp.float32)
    params["pool_w"], params["pool_b"] = dense(next(keys), HIDDEN, HIDDEN)
    params["head_w"], params["head_b"] = dense(next(keys), HIDDEN, NUM_LABELS)
    return params


def pack_params(params):
    """Stack per-layer weights, fuse QKV, precompute constant selection
    matrices / masks, pad the head to a lane-dense 128-wide output."""
    L = NUM_LAYERS
    layers = params["layers"]

    def stk(name):
        return jnp.stack([lyr[name] for lyr in layers])

    packed = {}
    packed["patch_w"] = params["patch_w"]
    packed["patch_b"] = params["patch_b"].reshape(1, HIDDEN)

    # tok: per-token additive term (cls/dist tokens + position embeddings).
    pos = params["pos_emb"][0]                           # (SEQ, D)
    tok_one = pos.at[0].add(params["cls_token"][0, 0]).at[1].add(
        params["dist_token"][0, 0])
    packed["tok"] = jnp.tile(tok_one, (BATCH, 1))        # (ROWS, D)

    # sel: places patch embedding row (b*NP + p) at token row (b*SEQ + 2 + p).
    sel = jnp.zeros((ROWS, BATCH * NUM_PATCHES), jnp.float32)
    r = (jnp.arange(BATCH)[:, None] * SEQ + 2 +
         jnp.arange(NUM_PATCHES)[None, :]).reshape(-1)
    c = (jnp.arange(BATCH)[:, None] * NUM_PATCHES +
         jnp.arange(NUM_PATCHES)[None, :]).reshape(-1)
    packed["sel"] = sel.at[r, c].set(1.0)

    # mask: block-diagonal additive attention mask over the flattened batch.
    row_b = jnp.arange(ROWS) // SEQ
    packed["mask"] = jnp.where(row_b[:, None] == row_b[None, :],
                               0.0, -1e9).astype(jnp.float32)

    # cls_sel: picks row b*SEQ (CLS token) for every batch element.
    cls_sel = jnp.zeros((BATCH, ROWS), jnp.float32)
    packed["cls_sel"] = cls_sel.at[jnp.arange(BATCH),
                                   jnp.arange(BATCH) * SEQ].set(1.0)

    packed["ln1_g"] = stk("ln1_g").reshape(L, 1, HIDDEN)
    packed["ln1_b"] = stk("ln1_b").reshape(L, 1, HIDDEN)
    packed["qkv_w"] = jnp.stack(
        [jnp.concatenate([l["q_w"], l["k_w"], l["v_w"]], axis=1) for l in layers])
    packed["qkv_b"] = jnp.stack(
        [jnp.concatenate([l["q_b"], l["k_b"], l["v_b"]]) for l in layers]
    ).reshape(L, 1, 3 * HIDDEN)
    packed["o_w"] = stk("o_w")
    packed["o_b"] = stk("o_b").reshape(L, 1, HIDDEN)
    packed["ln2_g"] = stk("ln2_g").reshape(L, 1, HIDDEN)
    packed["ln2_b"] = stk("ln2_b").reshape(L, 1, HIDDEN)
    packed["fc1_w"] = stk("fc1_w")
    packed["fc1_b"] = stk("fc1_b").reshape(L, 1, MLP_DIM)
    packed["fc2_w"] = stk("fc2_w")
    packed["fc2_b"] = stk("fc2_b").reshape(L, 1, HIDDEN)

    packed["lnf_g"] = params["lnf_g"].reshape(1, HIDDEN)
    packed["lnf_b"] = params["lnf_b"].reshape(1, HIDDEN)
    packed["pool_w"] = params["pool_w"]
    packed["pool_b"] = params["pool_b"].reshape(1, HIDDEN)

    head_w = jnp.zeros((HIDDEN, HEAD_PAD), jnp.float32)
    head_b = jnp.zeros((1, HEAD_PAD), jnp.float32)
    packed["head_w"] = head_w.at[:, :NUM_LABELS].set(params["head_w"])
    packed["head_b"] = head_b.at[0, :NUM_LABELS].set(params["head_b"])
    return packed


# ----------------------------- forward pass ----------------------------------
def deit_forward(pixel_values, packed):
    # pixel_values layout: NCHW (PyTorch convention).
    B, C, H, W = pixel_values.shape
    P = PATCH
    # Patchify (layout glue only); contraction dim (C*P*P) last.
    x = pixel_values.reshape(B, C, H // P, P, W // P, P)
    x = x.transpose(0, 2, 4, 1, 3, 5).reshape(B * NUM_PATCHES, C * P * P)

    inputs = (x, packed["sel"], packed["tok"], packed["mask"],
              packed["patch_w"], packed["patch_b"],
              packed["ln1_g"], packed["ln1_b"], packed["qkv_w"], packed["qkv_b"],
              packed["o_w"], packed["o_b"], packed["ln2_g"], packed["ln2_b"],
              packed["fc1_w"], packed["fc1_b"], packed["fc2_w"], packed["fc2_b"],
              packed["lnf_g"], packed["lnf_b"], packed["cls_sel"],
              packed["pool_w"], packed["pool_b"], packed["head_w"], packed["head_b"])

    vmem = pl.BlockSpec(memory_space=pltpu.MemorySpace.VMEM)
    logits_pad = pl.pallas_call(
        _deit_kernel,
        out_shape=jax.ShapeDtypeStruct((BATCH, HEAD_PAD), jnp.float32),
        in_specs=[vmem] * len(inputs),
        out_specs=vmem,
    )(*inputs)
    return logits_pad[:, :NUM_LABELS]


# ----------------------------- main ------------------------------------------
if __name__ == "__main__":
    key = jax.random.PRNGKey(0)
    k_params, k_input = jax.random.split(key)
    params = init_params(k_params)
    packed = pack_params(params)
    pixel_values = jax.random.normal(
        k_input, (BATCH, CHANNELS, IMG, IMG), jnp.float32)  # NCHW

    fwd = jax.jit(deit_forward)
    logits = jax.block_until_ready(fwd(pixel_values, packed))
    assert logits.shape == (BATCH, NUM_LABELS)
    assert jnp.all(jnp.isfinite(logits))
    print("KERNEL_OK")
</pallas_src>

<mosaic_0001>
module attributes {stable_mosaic.version = 11 : i64} {
  func.func @_deit_kernel(%arg0: memref<8x192xf32, #tpu.memory_space<vmem>>, %arg1: memref<12x8xf32, #tpu.memory_space<vmem>>, %arg2: memref<12x32xf32, #tpu.memory_space<vmem>>, %arg3: memref<12x12xf32, #tpu.memory_space<vmem>>, %arg4: memref<192x32xf32, #tpu.memory_space<vmem>>, %arg5: memref<1x32xf32, #tpu.memory_space<vmem>>, %arg6: memref<2x1x32xf32, #tpu.memory_space<vmem>>, %arg7: memref<2x1x32xf32, #tpu.memory_space<vmem>>, %arg8: memref<2x32x96xf32, #tpu.memory_space<vmem>>, %arg9: memref<2x1x96xf32, #tpu.memory_space<vmem>>, %arg10: memref<2x32x32xf32, #tpu.memory_space<vmem>>, %arg11: memref<2x1x32xf32, #tpu.memory_space<vmem>>, %arg12: memref<2x1x32xf32, #tpu.memory_space<vmem>>, %arg13: memref<2x1x32xf32, #tpu.memory_space<vmem>>, %arg14: memref<2x32x64xf32, #tpu.memory_space<vmem>>, %arg15: memref<2x1x64xf32, #tpu.memory_space<vmem>>, %arg16: memref<2x64x32xf32, #tpu.memory_space<vmem>>, %arg17: memref<2x1x32xf32, #tpu.memory_space<vmem>>, %arg18: memref<1x32xf32, #tpu.memory_space<vmem>>, %arg19: memref<1x32xf32, #tpu.memory_space<vmem>>, %arg20: memref<2x12xf32, #tpu.memory_space<vmem>>, %arg21: memref<32x32xf32, #tpu.memory_space<vmem>>, %arg22: memref<1x32xf32, #tpu.memory_space<vmem>>, %arg23: memref<32x128xf32, #tpu.memory_space<vmem>>, %arg24: memref<1x128xf32, #tpu.memory_space<vmem>>, %arg25: memref<2x128xf32, #tpu.memory_space<vmem>>) attributes {dimension_semantics = [], scalar_prefetch = 0 : i64, scratch_operands = 0 : i64, tpu.core_type = #tpu.core_type<tc>} {
    %c0 = arith.constant 0 : index
    %c0_0 = arith.constant 0 : index
    %0 = vector.load %arg0[%c0, %c0_0] : memref<8x192xf32, #tpu.memory_space<vmem>>, vector<8x192xf32>
    %c0_1 = arith.constant 0 : index
    %c0_2 = arith.constant 0 : index
    %1 = vector.load %arg4[%c0_1, %c0_2] : memref<192x32xf32, #tpu.memory_space<vmem>>, vector<192x32xf32>
    %cst = arith.constant dense<0.000000e+00> : vector<8x32xf32>
    %2 = tpu.matmul %0, %1, %cst {dimension_numbers = #tpu.dot_dimension_numbers<[1], [0], [0], [1], [0, 0, 1, 1], [], []>} : vector<8x192xf32>, vector<192x32xf32>, vector<8x32xf32> -> vector<8x32xf32>
    %c0_3 = arith.constant 0 : index
    %c0_4 = arith.constant 0 : index
    %3 = vector.load %arg5[%c0_3, %c0_4] : memref<1x32xf32, #tpu.memory_space<vmem>>, vector<1x32xf32>
    %4 = vector.broadcast %3 : vector<1x32xf32> to vector<8x32xf32>
    %5 = arith.addf %2, %4 : vector<8x32xf32>
    %c0_5 = arith.constant 0 : index
    %c0_6 = arith.constant 0 : index
    %6 = vector.load %arg1[%c0_5, %c0_6] : memref<12x8xf32, #tpu.memory_space<vmem>>, vector<12x8xf32>
    %cst_7 = arith.constant dense<0.000000e+00> : vector<12x32xf32>
    %7 = tpu.matmul %6, %5, %cst_7 {dimension_numbers = #tpu.dot_dimension_numbers<[1], [0], [0], [1], [0, 0, 1, 1], [], []>} : vector<12x8xf32>, vector<8x32xf32>, vector<12x32xf32> -> vector<12x32xf32>
    %c0_8 = arith.constant 0 : index
    %c0_9 = arith.constant 0 : index
    %8 = vector.load %arg2[%c0_8, %c0_9] : memref<12x32xf32, #tpu.memory_space<vmem>>, vector<12x32xf32>
    %9 = arith.addf %7, %8 : vector<12x32xf32>
    %c0_10 = arith.constant 0 : index
    %c0_11 = arith.constant 0 : index
    %10 = vector.load %arg3[%c0_10, %c0_11] : memref<12x12xf32, #tpu.memory_space<vmem>>, vector<12x12xf32>
    %c0_12 = arith.constant 0 : index
    %c0_13 = arith.constant 0 : index
    %c0_14 = arith.constant 0 : index
    %11 = vector.load %arg6[%c0_12, %c0_13, %c0_14] : memref<2x1x32xf32, #tpu.memory_space<vmem>>, vector<1x1x32xf32>
    %12 = vector.shape_cast %11 : vector<1x1x32xf32> to vector<1x32xf32>
    %c0_15 = arith.constant 0 : index
    %c0_16 = arith.constant 0 : index
    %c0_17 = arith.constant 0 : index
    %13 = vector.load %arg7[%c0_15, %c0_16, %c0_17] : memref<2x1x32xf32, #tpu.memory_space<vmem>>, vector<1x1x32xf32>
    %14 = vector.shape_cast %13 : vector<1x1x32xf32> to vector<1x32xf32>
    %cst_18 = arith.constant dense<0.000000e+00> : vector<12xf32>
    %15 = vector.multi_reduction <add>, %9, %cst_18 [1] : vector<12x32xf32> to vector<12xf32>
    %16 = vector.shape_cast %15 : vector<12xf32> to vector<12x1xf32>
    %cst_19 = arith.constant 3.200000e+01 : f32
    %17 = vector.broadcast %cst_19 : f32 to vector<12x1xf32>
    %18 = arith.divf %16, %17 : vector<12x1xf32>
    %19 = vector.broadcast %18 : vector<12x1xf32> to vector<12x32xf32>
    %20 = arith.subf %9, %19 : vector<12x32xf32>
    %21 = arith.mulf %20, %20 : vector<12x32xf32>
    %cst_20 = arith.constant dense<0.000000e+00> : vector<12xf32>
    %22 = vector.multi_reduction <add>, %21, %cst_20 [1] : vector<12x32xf32> to vector<12xf32>
    %23 = vector.shape_cast %22 : vector<12xf32> to vector<12x1xf32>
    %cst_21 = arith.constant 3.200000e+01 : f32
    %24 = vector.broadcast %cst_21 : f32 to vector<12x1xf32>
    %25 = arith.divf %23, %24 : vector<12x1xf32>
    %cst_22 = arith.constant 9.99999997E-7 : f32
    %26 = vector.broadcast %cst_22 : f32 to vector<12x1xf32>
    %27 = arith.addf %25, %26 : vector<12x1xf32>
    %28 = math.rsqrt %27 : vector<12x1xf32>
    %29 = vector.broadcast %28 : vector<12x1xf32> to vector<12x32xf32>
    %30 = arith.mulf %20, %29 : vector<12x32xf32>
    %31 = vector.broadcast %12 : vector<1x32xf32> to vector<12x32xf32>
    %32 = arith.mulf %30, %31 : vector<12x32xf32>
    %33 = vector.broadcast %14 : vector<1x32xf32> to vector<12x32xf32>
    %34 = arith.addf %32, %33 : vector<12x32xf32>
    %c0_23 = arith.constant 0 : index
    %c0_24 = arith.constant 0 : index
    %c0_25 = arith.constant 0 : index
    %35 = vector.load %arg8[%c0_23, %c0_24, %c0_25] : memref<2x32x96xf32, #tpu.memory_space<vmem>>, vector<1x32x96xf32>
    %36 = vector.shape_cast %35 : vector<1x32x96xf32> to vector<32x96xf32>
    %cst_26 = arith.constant dense<0.000000e+00> : vector<12x96xf32>
    %37 = tpu.matmul %34, %36, %cst_26 {dimension_numbers = #tpu.dot_dimension_numbers<[1], [0], [0], [1], [0, 0, 1, 1], [], []>} : vector<12x32xf32>, vector<32x96xf32>, vector<12x96xf32> -> vector<12x96xf32>
    %c0_27 = arith.constant 0 : index
    %c0_28 = arith.constant 0 : index
    %c0_29 = arith.constant 0 : index
    %38 = vector.load %arg9[%c0_27, %c0_28, %c0_29] : memref<2x1x96xf32, #tpu.memory_space<vmem>>, vector<1x1x96xf32>
    %39 = vector.shape_cast %38 : vector<1x1x96xf32> to vector<1x96xf32>
    %40 = vector.broadcast %39 : vector<1x96xf32> to vector<12x96xf32>
    %41 = arith.addf %37, %40 : vector<12x96xf32>
    %c0_30 = arith.constant 0 : index
    %c0_31 = arith.constant 0 : index
    %c0_32 = arith.constant 0 : index
    %42 = vector.load %arg10[%c0_30, %c0_31, %c0_32] : memref<2x32x32xf32, #tpu.memory_space<vmem>>, vector<1x32x32xf32>
    %43 = vector.shape_cast %42 : vector<1x32x32xf32> to vector<32x32xf32>
    %cst_33 = arith.constant 0.000000e+00 : f32
    %44 = vector.broadcast %cst_33 : f32 to vector<12x32xf32>
    %45 = vector.extract_strided_slice %41 {offsets = [0, 0], sizes = [12, 8], strides = [1, 1]} : vector<12x96xf32> to vector<12x8xf32>
    %46 = vector.extract_strided_slice %41 {offsets = [0, 32], sizes = [12, 8], strides = [1, 1]} : vector<12x96xf32> to vector<12x8xf32>
    %47 = vector.extract_strided_slice %41 {offsets = [0, 64], sizes = [12, 8], strides = [1, 1]} : vector<12x96xf32> to vector<12x8xf32>
    %cst_34 = arith.constant dense<0.000000e+00> : vector<12x12xf32>
    %48 = tpu.matmul %45, %46, %cst_34 {dimension_numbers = #tpu.dot_dimension_numbers<[1], [1], [0], [0], [0, 0, 1, 0], [], []>} : vector<12x8xf32>, vector<12x8xf32>, vector<12x12xf32> -> vector<12x12xf32>
    %cst_35 = arith.constant 0.353553385 : f32
    %49 = vector.broadcast %cst_35 : f32 to vector<12x12xf32>
    %50 = arith.mulf %48, %49 : vector<12x12xf32>
    %51 = arith.addf %50, %10 : vector<12x12xf32>
    %cst_36 = arith.constant dense<0xFF800000> : vector<12xf32>
    %52 = vector.multi_reduction <maximumf>, %51, %cst_36 [1] : vector<12x12xf32> to vector<12xf32>
    %53 = vector.shape_cast %52 : vector<12xf32> to vector<12x1xf32>
    %54 = vector.broadcast %53 : vector<12x1xf32> to vector<12x12xf32>
    %55 = arith.subf %51, %54 : vector<12x12xf32>
    %56 = math.exp %55 : vector<12x12xf32>
    %cst_37 = arith.constant dense<0.000000e+00> : vector<12xf32>
    %57 = vector.multi_reduction <add>, %56, %cst_37 [1] : vector<12x12xf32> to vector<12xf32>
    %58 = vector.shape_cast %57 : vector<12xf32> to vector<12x1xf32>
    %59 = vector.broadcast %58 : vector<12x1xf32> to vector<12x12xf32>
    %60 = arith.divf %56, %59 : vector<12x12xf32>
    %cst_38 = arith.constant dense<0.000000e+00> : vector<12x8xf32>
    %61 = tpu.matmul %60, %47, %cst_38 {dimension_numbers = #tpu.dot_dimension_numbers<[1], [0], [0], [1], [0, 0, 1, 1], [], []>} : vector<12x12xf32>, vector<12x8xf32>, vector<12x8xf32> -> vector<12x8xf32>
    %62 = vector.extract_strided_slice %43 {offsets = [0, 0], sizes = [8, 32], strides = [1, 1]} : vector<32x32xf32> to vector<8x32xf32>
    %cst_39 = arith.constant dense<0.000000e+00> : vector<12x32xf32>
    %63 = tpu.matmul %61, %62, %cst_39 {dimension_numbers = #tpu.dot_dimension_numbers<[1], [0], [0], [1], [0, 0, 1, 1], [], []>} : vector<12x8xf32>, vector<8x32xf32>, vector<12x32xf32> -> vector<12x32xf32>
    %64 = arith.addf %44, %63 : vector<12x32xf32>
    %65 = vector.extract_strided_slice %41 {offsets = [0, 8], sizes = [12, 8], strides = [1, 1]} : vector<12x96xf32> to vector<12x8xf32>
    %66 = vector.extract_strided_slice %41 {offsets = [0, 40], sizes = [12, 8], strides = [1, 1]} : vector<12x96xf32> to vector<12x8xf32>
    %67 = vector.extract_strided_slice %41 {offsets = [0, 72], sizes = [12, 8], strides = [1, 1]} : vector<12x96xf32> to vector<12x8xf32>
    %cst_40 = arith.constant dense<0.000000e+00> : vector<12x12xf32>
    %68 = tpu.matmul %65, %66, %cst_40 {dimension_numbers = #tpu.dot_dimension_numbers<[1], [1], [0], [0], [0, 0, 1, 0], [], []>} : vector<12x8xf32>, vector<12x8xf32>, vector<12x12xf32> -> vector<12x12xf32>
    %cst_41 = arith.constant 0.353553385 : f32
    %69 = vector.broadcast %cst_41 : f32 to vector<12x12xf32>
    %70 = arith.mulf %68, %69 : vector<12x12xf32>
    %71 = arith.addf %70, %10 : vector<12x12xf32>
    %cst_42 = arith.constant dense<0xFF800000> : vector<12xf32>
    %72 = vector.multi_reduction <maximumf>, %71, %cst_42 [1] : vector<12x12xf32> to vector<12xf32>
    %73 = vector.shape_cast %72 : vector<12xf32> to vector<12x1xf32>
    %74 = vector.broadcast %73 : vector<12x1xf32> to vector<12x12xf32>
    %75 = arith.subf %71, %74 : vector<12x12xf32>
    %76 = math.exp %75 : vector<12x12xf32>
    %cst_43 = arith.constant dense<0.000000e+00> : vector<12xf32>
    %77 = vector.multi_reduction <add>, %76, %cst_43 [1] : vector<12x12xf32> to vector<12xf32>
    %78 = vector.shape_cast %77 : vector<12xf32> to vector<12x1xf32>
    %79 = vector.broadcast %78 : vector<12x1xf32> to vector<12x12xf32>
    %80 = arith.divf %76, %79 : vector<12x12xf32>
    %cst_44 = arith.constant dense<0.000000e+00> : vector<12x8xf32>
    %81 = tpu.matmul %80, %67, %cst_44 {dimension_numbers = #tpu.dot_dimension_numbers<[1], [0], [0], [1], [0, 0, 1, 1], [], []>} : vector<12x12xf32>, vector<12x8xf32>, vector<12x8xf32> -> vector<12x8xf32>
    %82 = vector.extract_strided_slice %43 {offsets = [8, 0], sizes = [8, 32], strides = [1, 1]} : vector<32x32xf32> to vector<8x32xf32>
    %cst_45 = arith.constant dense<0.000000e+00> : vector<12x32xf32>
    %83 = tpu.matmul %81, %82, %cst_45 {dimension_numbers = #tpu.dot_dimension_numbers<[1], [0], [0], [1], [0, 0, 1, 1], [], []>} : vector<12x8xf32>, vector<8x32xf32>, vector<12x32xf32> -> vector<12x32xf32>
    %84 = arith.addf %64, %83 : vector<12x32xf32>
    %85 = vector.extract_strided_slice %41 {offsets = [0, 16], sizes = [12, 8], strides = [1, 1]} : vector<12x96xf32> to vector<12x8xf32>
    %86 = vector.extract_strided_slice %41 {offsets = [0, 48], sizes = [12, 8], strides = [1, 1]} : vector<12x96xf32> to vector<12x8xf32>
    %87 = vector.extract_strided_slice %41 {offsets = [0, 80], sizes = [12, 8], strides = [1, 1]} : vector<12x96xf32> to vector<12x8xf32>
    %cst_46 = arith.constant dense<0.000000e+00> : vector<12x12xf32>
    %88 = tpu.matmul %85, %86, %cst_46 {dimension_numbers = #tpu.dot_dimension_numbers<[1], [1], [0], [0], [0, 0, 1, 0], [], []>} : vector<12x8xf32>, vector<12x8xf32>, vector<12x12xf32> -> vector<12x12xf32>
    %cst_47 = arith.constant 0.353553385 : f32
    %89 = vector.broadcast %cst_47 : f32 to vector<12x12xf32>
    %90 = arith.mulf %88, %89 : vector<12x12xf32>
    %91 = arith.addf %90, %10 : vector<12x12xf32>
    %cst_48 = arith.constant dense<0xFF800000> : vector<12xf32>
    %92 = vector.multi_reduction <maximumf>, %91, %cst_48 [1] : vector<12x12xf32> to vector<12xf32>
    %93 = vector.shape_cast %92 : vector<12xf32> to vector<12x1xf32>
    %94 = vector.broadcast %93 : vector<12x1xf32> to vector<12x12xf32>
    %95 = arith.subf %91, %94 : vector<12x12xf32>
    %96 = math.exp %95 : vector<12x12xf32>
    %cst_49 = arith.constant dense<0.000000e+00> : vector<12xf32>
    %97 = vector.multi_reduction <add>, %96, %cst_49 [1] : vector<12x12xf32> to vector<12xf32>
    %98 = vector.shape_cast %97 : vector<12xf32> to vector<12x1xf32>
    %99 = vector.broadcast %98 : vector<12x1xf32> to vector<12x12xf32>
    %100 = arith.divf %96, %99 : vector<12x12xf32>
    %cst_50 = arith.constant dense<0.000000e+00> : vector<12x8xf32>
    %101 = tpu.matmul %100, %87, %cst_50 {dimension_numbers = #tpu.dot_dimension_numbers<[1], [0], [0], [1], [0, 0, 1, 1], [], []>} : vector<12x12xf32>, vector<12x8xf32>, vector<12x8xf32> -> vector<12x8xf32>
    %102 = vector.extract_strided_slice %43 {offsets = [16, 0], sizes = [8, 32], strides = [1, 1]} : vector<32x32xf32> to vector<8x32xf32>
    %cst_51 = arith.constant dense<0.000000e+00> : vector<12x32xf32>
    %103 = tpu.matmul %101, %102, %cst_51 {dimension_numbers = #tpu.dot_dimension_numbers<[1], [0], [0], [1], [0, 0, 1, 1], [], []>} : vector<12x8xf32>, vector<8x32xf32>, vector<12x32xf32> -> vector<12x32xf32>
    %104 = arith.addf %84, %103 : vector<12x32xf32>
    %105 = vector.extract_strided_slice %41 {offsets = [0, 24], sizes = [12, 8], strides = [1, 1]} : vector<12x96xf32> to vector<12x8xf32>
    %106 = vector.extract_strided_slice %41 {offsets = [0, 56], sizes = [12, 8], strides = [1, 1]} : vector<12x96xf32> to vector<12x8xf32>
    %107 = vector.extract_strided_slice %41 {offsets = [0, 88], sizes = [12, 8], strides = [1, 1]} : vector<12x96xf32> to vector<12x8xf32>
    %cst_52 = arith.constant dense<0.000000e+00> : vector<12x12xf32>
    %108 = tpu.matmul %105, %106, %cst_52 {dimension_numbers = #tpu.dot_dimension_numbers<[1], [1], [0], [0], [0, 0, 1, 0], [], []>} : vector<12x8xf32>, vector<12x8xf32>, vector<12x12xf32> -> vector<12x12xf32>
    %cst_53 = arith.constant 0.353553385 : f32
    %109 = vector.broadcast %cst_53 : f32 to vector<12x12xf32>
    %110 = arith.mulf %108, %109 : vector<12x12xf32>
    %111 = arith.addf %110, %10 : vector<12x12xf32>
    %cst_54 = arith.constant dense<0xFF800000> : vector<12xf32>
    %112 = vector.multi_reduction <maximumf>, %111, %cst_54 [1] : vector<12x12xf32> to vector<12xf32>
    %113 = vector.shape_cast %112 : vector<12xf32> to vector<12x1xf32>
    %114 = vector.broadcast %113 : vector<12x1xf32> to vector<12x12xf32>
    %115 = arith.subf %111, %114 : vector<12x12xf32>
    %116 = math.exp %115 : vector<12x12xf32>
    %cst_55 = arith.constant dense<0.000000e+00> : vector<12xf32>
    %117 = vector.multi_reduction <add>, %116, %cst_55 [1] : vector<12x12xf32> to vector<12xf32>
    %118 = vector.shape_cast %117 : vector<12xf32> to vector<12x1xf32>
    %119 = vector.broadcast %118 : vector<12x1xf32> to vector<12x12xf32>
    %120 = arith.divf %116, %119 : vector<12x12xf32>
    %cst_56 = arith.constant dense<0.000000e+00> : vector<12x8xf32>
    %121 = tpu.matmul %120, %107, %cst_56 {dimension_numbers = #tpu.dot_dimension_numbers<[1], [0], [0], [1], [0, 0, 1, 1], [], []>} : vector<12x12xf32>, vector<12x8xf32>, vector<12x8xf32> -> vector<12x8xf32>
    %122 = vector.extract_strided_slice %43 {offsets = [24, 0], sizes = [8, 32], strides = [1, 1]} : vector<32x32xf32> to vector<8x32xf32>
    %cst_57 = arith.constant dense<0.000000e+00> : vector<12x32xf32>
    %123 = tpu.matmul %121, %122, %cst_57 {dimension_numbers = #tpu.dot_dimension_numbers<[1], [0], [0], [1], [0, 0, 1, 1], [], []>} : vector<12x8xf32>, vector<8x32xf32>, vector<12x32xf32> -> vector<12x32xf32>
    %124 = arith.addf %104, %123 : vector<12x32xf32>
    %125 = arith.addf %9, %124 : vector<12x32xf32>
    %c0_58 = arith.constant 0 : index
    %c0_59 = arith.constant 0 : index
    %c0_60 = arith.constant 0 : index
    %126 = vector.load %arg11[%c0_58, %c0_59, %c0_60] : memref<2x1x32xf32, #tpu.memory_space<vmem>>, vector<1x1x32xf32>
    %127 = vector.shape_cast %126 : vector<1x1x32xf32> to vector<1x32xf32>
    %128 = vector.broadcast %127 : vector<1x32xf32> to vector<12x32xf32>
    %129 = arith.addf %125, %128 : vector<12x32xf32>
    %c0_61 = arith.constant 0 : index
    %c0_62 = arith.constant 0 : index
    %c0_63 = arith.constant 0 : index
    %130 = vector.load %arg12[%c0_61, %c0_62, %c0_63] : memref<2x1x32xf32, #tpu.memory_space<vmem>>, vector<1x1x32xf32>
    %131 = vector.shape_cast %130 : vector<1x1x32xf32> to vector<1x32xf32>
    %c0_64 = arith.constant 0 : index
    %c0_65 = arith.constant 0 : index
    %c0_66 = arith.constant 0 : index
    %132 = vector.load %arg13[%c0_64, %c0_65, %c0_66] : memref<2x1x32xf32, #tpu.memory_space<vmem>>, vector<1x1x32xf32>
    %133 = vector.shape_cast %132 : vector<1x1x32xf32> to vector<1x32xf32>
    %cst_67 = arith.constant dense<0.000000e+00> : vector<12xf32>
    %134 = vector.multi_reduction <add>, %129, %cst_67 [1] : vector<12x32xf32> to vector<12xf32>
    %135 = vector.shape_cast %134 : vector<12xf32> to vector<12x1xf32>
    %cst_68 = arith.constant 3.200000e+01 : f32
    %136 = vector.broadcast %cst_68 : f32 to vector<12x1xf32>
    %137 = arith.divf %135, %136 : vector<12x1xf32>
    %138 = vector.broadcast %137 : vector<12x1xf32> to vector<12x32xf32>
    %139 = arith.subf %129, %138 : vector<12x32xf32>
    %140 = arith.mulf %139, %139 : vector<12x32xf32>
    %cst_69 = arith.constant dense<0.000000e+00> : vector<12xf32>
    %141 = vector.multi_reduction <add>, %140, %cst_69 [1] : vector<12x32xf32> to vector<12xf32>
    %142 = vector.shape_cast %141 : vector<12xf32> to vector<12x1xf32>
    %cst_70 = arith.constant 3.200000e+01 : f32
    %143 = vector.broadcast %cst_70 : f32 to vector<12x1xf32>
    %144 = arith.divf %142, %143 : vector<12x1xf32>
    %cst_71 = arith.constant 9.99999997E-7 : f32
    %145 = vector.broadcast %cst_71 : f32 to vector<12x1xf32>
    %146 = arith.addf %144, %145 : vector<12x1xf32>
    %147 = math.rsqrt %146 : vector<12x1xf32>
    %148 = vector.broadcast %147 : vector<12x1xf32> to vector<12x32xf32>
    %149 = arith.mulf %139, %148 : vector<12x32xf32>
    %150 = vector.broadcast %131 : vector<1x32xf32> to vector<12x32xf32>
    %151 = arith.mulf %149, %150 : vector<12x32xf32>
    %152 = vector.broadcast %133 : vector<1x32xf32> to vector<12x32xf32>
    %153 = arith.addf %151, %152 : vector<12x32xf32>
    %c0_72 = arith.constant 0 : index
    %c0_73 = arith.constant 0 : index
    %c0_74 = arith.constant 0 : index
    %154 = vector.load %arg14[%c0_72, %c0_73, %c0_74] : memref<2x32x64xf32, #tpu.memory_space<vmem>>, vector<1x32x64xf32>
    %155 = vector.shape_cast %154 : vector<1x32x64xf32> to vector<32x64xf32>
    %cst_75 = arith.constant dense<0.000000e+00> : vector<12x64xf32>
    %156 = tpu.matmul %153, %155, %cst_75 {dimension_numbers = #tpu.dot_dimension_numbers<[1], [0], [0], [1], [0, 0, 1, 1], [], []>} : vector<12x32xf32>, vector<32x64xf32>, vector<12x64xf32> -> vector<12x64xf32>
    %c0_76 = arith.constant 0 : index
    %c0_77 = arith.constant 0 : index
    %c0_78 = arith.constant 0 : index
    %157 = vector.load %arg15[%c0_76, %c0_77, %c0_78] : memref<2x1x64xf32, #tpu.memory_space<vmem>>, vector<1x1x64xf32>
    %158 = vector.shape_cast %157 : vector<1x1x64xf32> to vector<1x64xf32>
    %159 = vector.broadcast %158 : vector<1x64xf32> to vector<12x64xf32>
    %160 = arith.addf %156, %159 : vector<12x64xf32>
    %cst_79 = arith.constant 5.000000e-01 : f32
    %161 = vector.broadcast %cst_79 : f32 to vector<12x64xf32>
    %162 = arith.mulf %161, %160 : vector<12x64xf32>
    %cst_80 = arith.constant 4.471500e-02 : f32
    %163 = vector.broadcast %cst_80 : f32 to vector<12x64xf32>
    %164 = arith.mulf %163, %160 : vector<12x64xf32>
    %165 = arith.mulf %164, %160 : vector<12x64xf32>
    %166 = arith.mulf %165, %160 : vector<12x64xf32>
    %167 = arith.addf %160, %166 : vector<12x64xf32>
    %cst_81 = arith.constant 0.797884583 : f32
    %168 = vector.broadcast %cst_81 : f32 to vector<12x64xf32>
    %169 = arith.mulf %168, %167 : vector<12x64xf32>
    %170 = math.tanh %169 : vector<12x64xf32>
    %cst_82 = arith.constant 1.000000e+00 : f32
    %171 = vector.broadcast %cst_82 : f32 to vector<12x64xf32>
    %172 = arith.addf %171, %170 : vector<12x64xf32>
    %173 = arith.mulf %162, %172 : vector<12x64xf32>
    %c0_83 = arith.constant 0 : index
    %c0_84 = arith.constant 0 : index
    %c0_85 = arith.constant 0 : index
    %174 = vector.load %arg16[%c0_83, %c0_84, %c0_85] : memref<2x64x32xf32, #tpu.memory_space<vmem>>, vector<1x64x32xf32>
    %175 = vector.shape_cast %174 : vector<1x64x32xf32> to vector<64x32xf32>
    %cst_86 = arith.constant dense<0.000000e+00> : vector<12x32xf32>
    %176 = tpu.matmul %173, %175, %cst_86 {dimension_numbers = #tpu.dot_dimension_numbers<[1], [0], [0], [1], [0, 0, 1, 1], [], []>} : vector<12x64xf32>, vector<64x32xf32>, vector<12x32xf32> -> vector<12x32xf32>
    %177 = arith.addf %129, %176 : vector<12x32xf32>
    %c0_87 = arith.constant 0 : index
    %c0_88 = arith.constant 0 : index
    %c0_89 = arith.constant 0 : index
    %178 = vector.load %arg17[%c0_87, %c0_88, %c0_89] : memref<2x1x32xf32, #tpu.memory_space<vmem>>, vector<1x1x32xf32>
    %179 = vector.shape_cast %178 : vector<1x1x32xf32> to vector<1x32xf32>
    %180 = vector.broadcast %179 : vector<1x32xf32> to vector<12x32xf32>
    %181 = arith.addf %177, %180 : vector<12x32xf32>
    %c1 = arith.constant 1 : index
    %c0_90 = arith.constant 0 : index
    %c0_91 = arith.constant 0 : index
    %182 = vector.load %arg6[%c1, %c0_90, %c0_91] : memref<2x1x32xf32, #tpu.memory_space<vmem>>, vector<1x1x32xf32>
    %183 = vector.shape_cast %182 : vector<1x1x32xf32> to vector<1x32xf32>
    %c1_92 = arith.constant 1 : index
    %c0_93 = arith.constant 0 : index
    %c0_94 = arith.constant 0 : index
    %184 = vector.load %arg7[%c1_92, %c0_93, %c0_94] : memref<2x1x32xf32, #tpu.memory_space<vmem>>, vector<1x1x32xf32>
    %185 = vector.shape_cast %184 : vector<1x1x32xf32> to vector<1x32xf32>
    %cst_95 = arith.constant dense<0.000000e+00> : vector<12xf32>
    %186 = vector.multi_reduction <add>, %181, %cst_95 [1] : vector<12x32xf32> to vector<12xf32>
    %187 = vector.shape_cast %186 : vector<12xf32> to vector<12x1xf32>
    %cst_96 = arith.constant 3.200000e+01 : f32
    %188 = vector.broadcast %cst_96 : f32 to vector<12x1xf32>
    %189 = arith.divf %187, %188 : vector<12x1xf32>
    %190 = vector.broadcast %189 : vector<12x1xf32> to vector<12x32xf32>
    %191 = arith.subf %181, %190 : vector<12x32xf32>
    %192 = arith.mulf %191, %191 : vector<12x32xf32>
    %cst_97 = arith.constant dense<0.000000e+00> : vector<12xf32>
    %193 = vector.multi_reduction <add>, %192, %cst_97 [1] : vector<12x32xf32> to vector<12xf32>
    %194 = vector.shape_cast %193 : vector<12xf32> to vector<12x1xf32>
    %cst_98 = arith.constant 3.200000e+01 : f32
    %195 = vector.broadcast %cst_98 : f32 to vector<12x1xf32>
    %196 = arith.divf %194, %195 : vector<12x1xf32>
    %cst_99 = arith.constant 9.99999997E-7 : f32
    %197 = vector.broadcast %cst_99 : f32 to vector<12x1xf32>
    %198 = arith.addf %196, %197 : vector<12x1xf32>
    %199 = math.rsqrt %198 : vector<12x1xf32>
    %200 = vector.broadcast %199 : vector<12x1xf32> to vector<12x32xf32>
    %201 = arith.mulf %191, %200 : vector<12x32xf32>
    %202 = vector.broadcast %183 : vector<1x32xf32> to vector<12x32xf32>
    %203 = arith.mulf %201, %202 : vector<12x32xf32>
    %204 = vector.broadcast %185 : vector<1x32xf32> to vector<12x32xf32>
    %205 = arith.addf %203, %204 : vector<12x32xf32>
    %c1_100 = arith.constant 1 : index
    %c0_101 = arith.constant 0 : index
    %c0_102 = arith.constant 0 : index
    %206 = vector.load %arg8[%c1_100, %c0_101, %c0_102] : memref<2x32x96xf32, #tpu.memory_space<vmem>>, vector<1x32x96xf32>
    %207 = vector.shape_cast %206 : vector<1x32x96xf32> to vector<32x96xf32>
    %cst_103 = arith.constant dense<0.000000e+00> : vector<12x96xf32>
    %208 = tpu.matmul %205, %207, %cst_103 {dimension_numbers = #tpu.dot_dimension_numbers<[1], [0], [0], [1], [0, 0, 1, 1], [], []>} : vector<12x32xf32>, vector<32x96xf32>, vector<12x96xf32> -> vector<12x96xf32>
    %c1_104 = arith.constant 1 : index
    %c0_105 = arith.constant 0 : index
    %c0_106 = arith.constant 0 : index
    %209 = vector.load %arg9[%c1_104, %c0_105, %c0_106] : memref<2x1x96xf32, #tpu.memory_space<vmem>>, vector<1x1x96xf32>
    %210 = vector.shape_cast %209 : vector<1x1x96xf32> to vector<1x96xf32>
    %211 = vector.broadcast %210 : vector<1x96xf32> to vector<12x96xf32>
    %212 = arith.addf %208, %211 : vector<12x96xf32>
    %c1_107 = arith.constant 1 : index
    %c0_108 = arith.constant 0 : index
    %c0_109 = arith.constant 0 : index
    %213 = vector.load %arg10[%c1_107, %c0_108, %c0_109] : memref<2x32x32xf32, #tpu.memory_space<vmem>>, vector<1x32x32xf32>
    %214 = vector.shape_cast %213 : vector<1x32x32xf32> to vector<32x32xf32>
    %cst_110 = arith.constant 0.000000e+00 : f32
    %215 = vector.broadcast %cst_110 : f32 to vector<12x32xf32>
    %216 = vector.extract_strided_slice %212 {offsets = [0, 0], sizes = [12, 8], strides = [1, 1]} : vector<12x96xf32> to vector<12x8xf32>
    %217 = vector.extract_strided_slice %212 {offsets = [0, 32], sizes = [12, 8], strides = [1, 1]} : vector<12x96xf32> to vector<12x8xf32>
    %218 = vector.extract_strided_slice %212 {offsets = [0, 64], sizes = [12, 8], strides = [1, 1]} : vector<12x96xf32> to vector<12x8xf32>
    %cst_111 = arith.constant dense<0.000000e+00> : vector<12x12xf32>
    %219 = tpu.matmul %216, %217, %cst_111 {dimension_numbers = #tpu.dot_dimension_numbers<[1], [1], [0], [0], [0, 0, 1, 0], [], []>} : vector<12x8xf32>, vector<12x8xf32>, vector<12x12xf32> -> vector<12x12xf32>
    %cst_112 = arith.constant 0.353553385 : f32
    %220 = vector.broadcast %cst_112 : f32 to vector<12x12xf32>
    %221 = arith.mulf %219, %220 : vector<12x12xf32>
    %222 = arith.addf %221, %10 : vector<12x12xf32>
    %cst_113 = arith.constant dense<0xFF800000> : vector<12xf32>
    %223 = vector.multi_reduction <maximumf>, %222, %cst_113 [1] : vector<12x12xf32> to vector<12xf32>
    %224 = vector.shape_cast %223 : vector<12xf32> to vector<12x1xf32>
    %225 = vector.broadcast %224 : vector<12x1xf32> to vector<12x12xf32>
    %226 = arith.subf %222, %225 : vector<12x12xf32>
    %227 = math.exp %226 : vector<12x12xf32>
    %cst_114 = arith.constant dense<0.000000e+00> : vector<12xf32>
    %228 = vector.multi_reduction <add>, %227, %cst_114 [1] : vector<12x12xf32> to vector<12xf32>
    %229 = vector.shape_cast %228 : vector<12xf32> to vector<12x1xf32>
    %230 = vector.broadcast %229 : vector<12x1xf32> to vector<12x12xf32>
    %231 = arith.divf %227, %230 : vector<12x12xf32>
    %cst_115 = arith.constant dense<0.000000e+00> : vector<12x8xf32>
    %232 = tpu.matmul %231, %218, %cst_115 {dimension_numbers = #tpu.dot_dimension_numbers<[1], [0], [0], [1], [0, 0, 1, 1], [], []>} : vector<12x12xf32>, vector<12x8xf32>, vector<12x8xf32> -> vector<12x8xf32>
    %233 = vector.extract_strided_slice %214 {offsets = [0, 0], sizes = [8, 32], strides = [1, 1]} : vector<32x32xf32> to vector<8x32xf32>
    %cst_116 = arith.constant dense<0.000000e+00> : vector<12x32xf32>
    %234 = tpu.matmul %232, %233, %cst_116 {dimension_numbers = #tpu.dot_dimension_numbers<[1], [0], [0], [1], [0, 0, 1, 1], [], []>} : vector<12x8xf32>, vector<8x32xf32>, vector<12x32xf32> -> vector<12x32xf32>
    %235 = arith.addf %215, %234 : vector<12x32xf32>
    %236 = vector.extract_strided_slice %212 {offsets = [0, 8], sizes = [12, 8], strides = [1, 1]} : vector<12x96xf32> to vector<12x8xf32>
    %237 = vector.extract_strided_slice %212 {offsets = [0, 40], sizes = [12, 8], strides = [1, 1]} : vector<12x96xf32> to vector<12x8xf32>
    %238 = vector.extract_strided_slice %212 {offsets = [0, 72], sizes = [12, 8], strides = [1, 1]} : vector<12x96xf32> to vector<12x8xf32>
    %cst_117 = arith.constant dense<0.000000e+00> : vector<12x12xf32>
    %239 = tpu.matmul %236, %237, %cst_117 {dimension_numbers = #tpu.dot_dimension_numbers<[1], [1], [0], [0], [0, 0, 1, 0], [], []>} : vector<12x8xf32>, vector<12x8xf32>, vector<12x12xf32> -> vector<12x12xf32>
    %cst_118 = arith.constant 0.353553385 : f32
    %240 = vector.broadcast %cst_118 : f32 to vector<12x12xf32>
    %241 = arith.mulf %239, %240 : vector<12x12xf32>
    %242 = arith.addf %241, %10 : vector<12x12xf32>
    %cst_119 = arith.constant dense<0xFF800000> : vector<12xf32>
    %243 = vector.multi_reduction <maximumf>, %242, %cst_119 [1] : vector<12x12xf32> to vector<12xf32>
    %244 = vector.shape_cast %243 : vector<12xf32> to vector<12x1xf32>
    %245 = vector.broadcast %244 : vector<12x1xf32> to vector<12x12xf32>
    %246 = arith.subf %242, %245 : vector<12x12xf32>
    %247 = math.exp %246 : vector<12x12xf32>
    %cst_120 = arith.constant dense<0.000000e+00> : vector<12xf32>
    %248 = vector.multi_reduction <add>, %247, %cst_120 [1] : vector<12x12xf32> to vector<12xf32>
    %249 = vector.shape_cast %248 : vector<12xf32> to vector<12x1xf32>
    %250 = vector.broadcast %249 : vector<12x1xf32> to vector<12x12xf32>
    %251 = arith.divf %247, %250 : vector<12x12xf32>
    %cst_121 = arith.constant dense<0.000000e+00> : vector<12x8xf32>
    %252 = tpu.matmul %251, %238, %cst_121 {dimension_numbers = #tpu.dot_dimension_numbers<[1], [0], [0], [1], [0, 0, 1, 1], [], []>} : vector<12x12xf32>, vector<12x8xf32>, vector<12x8xf32> -> vector<12x8xf32>
    %253 = vector.extract_strided_slice %214 {offsets = [8, 0], sizes = [8, 32], strides = [1, 1]} : vector<32x32xf32> to vector<8x32xf32>
    %cst_122 = arith.constant dense<0.000000e+00> : vector<12x32xf32>
    %254 = tpu.matmul %252, %253, %cst_122 {dimension_numbers = #tpu.dot_dimension_numbers<[1], [0], [0], [1], [0, 0, 1, 1], [], []>} : vector<12x8xf32>, vector<8x32xf32>, vector<12x32xf32> -> vector<12x32xf32>
    %255 = arith.addf %235, %254 : vector<12x32xf32>
    %256 = vector.extract_strided_slice %212 {offsets = [0, 16], sizes = [12, 8], strides = [1, 1]} : vector<12x96xf32> to vector<12x8xf32>
    %257 = vector.extract_strided_slice %212 {offsets = [0, 48], sizes = [12, 8], strides = [1, 1]} : vector<12x96xf32> to vector<12x8xf32>
    %258 = vector.extract_strided_slice %212 {offsets = [0, 80], sizes = [12, 8], strides = [1, 1]} : vector<12x96xf32> to vector<12x8xf32>
    %cst_123 = arith.constant dense<0.000000e+00> : vector<12x12xf32>
    %259 = tpu.matmul %256, %257, %cst_123 {dimension_numbers = #tpu.dot_dimension_numbers<[1], [1], [0], [0], [0, 0, 1, 0], [], []>} : vector<12x8xf32>, vector<12x8xf32>, vector<12x12xf32> -> vector<12x12xf32>
    %cst_124 = arith.constant 0.353553385 : f32
    %260 = vector.broadcast %cst_124 : f32 to vector<12x12xf32>
    %261 = arith.mulf %259, %260 : vector<12x12xf32>
    %262 = arith.addf %261, %10 : vector<12x12xf32>
    %cst_125 = arith.constant dense<0xFF800000> : vector<12xf32>
    %263 = vector.multi_reduction <maximumf>, %262, %cst_125 [1] : vector<12x12xf32> to vector<12xf32>
    %264 = vector.shape_cast %263 : vector<12xf32> to vector<12x1xf32>
    %265 = vector.broadcast %264 : vector<12x1xf32> to vector<12x12xf32>
    %266 = arith.subf %262, %265 : vector<12x12xf32>
    %267 = math.exp %266 : vector<12x12xf32>
    %cst_126 = arith.constant dense<0.000000e+00> : vector<12xf32>
    %268 = vector.multi_reduction <add>, %267, %cst_126 [1] : vector<12x12xf32> to vector<12xf32>
    %269 = vector.shape_cast %268 : vector<12xf32> to vector<12x1xf32>
    %270 = vector.broadcast %269 : vector<12x1xf32> to vector<12x12xf32>
    %271 = arith.divf %267, %270 : vector<12x12xf32>
    %cst_127 = arith.constant dense<0.000000e+00> : vector<12x8xf32>
    %272 = tpu.matmul %271, %258, %cst_127 {dimension_numbers = #tpu.dot_dimension_numbers<[1], [0], [0], [1], [0, 0, 1, 1], [], []>} : vector<12x12xf32>, vector<12x8xf32>, vector<12x8xf32> -> vector<12x8xf32>
    %273 = vector.extract_strided_slice %214 {offsets = [16, 0], sizes = [8, 32], strides = [1, 1]} : vector<32x32xf32> to vector<8x32xf32>
    %cst_128 = arith.constant dense<0.000000e+00> : vector<12x32xf32>
    %274 = tpu.matmul %272, %273, %cst_128 {dimension_numbers = #tpu.dot_dimension_numbers<[1], [0], [0], [1], [0, 0, 1, 1], [], []>} : vector<12x8xf32>, vector<8x32xf32>, vector<12x32xf32> -> vector<12x32xf32>
    %275 = arith.addf %255, %274 : vector<12x32xf32>
    %276 = vector.extract_strided_slice %212 {offsets = [0, 24], sizes = [12, 8], strides = [1, 1]} : vector<12x96xf32> to vector<12x8xf32>
    %277 = vector.extract_strided_slice %212 {offsets = [0, 56], sizes = [12, 8], strides = [1, 1]} : vector<12x96xf32> to vector<12x8xf32>
    %278 = vector.extract_strided_slice %212 {offsets = [0, 88], sizes = [12, 8], strides = [1, 1]} : vector<12x96xf32> to vector<12x8xf32>
    %cst_129 = arith.constant dense<0.000000e+00> : vector<12x12xf32>
    %279 = tpu.matmul %276, %277, %cst_129 {dimension_numbers = #tpu.dot_dimension_numbers<[1], [1], [0], [0], [0, 0, 1, 0], [], []>} : vector<12x8xf32>, vector<12x8xf32>, vector<12x12xf32> -> vector<12x12xf32>
    %cst_130 = arith.constant 0.353553385 : f32
    %280 = vector.broadcast %cst_130 : f32 to vector<12x12xf32>
    %281 = arith.mulf %279, %280 : vector<12x12xf32>
    %282 = arith.addf %281, %10 : vector<12x12xf32>
    %cst_131 = arith.constant dense<0xFF800000> : vector<12xf32>
    %283 = vector.multi_reduction <maximumf>, %282, %cst_131 [1] : vector<12x12xf32> to vector<12xf32>
    %284 = vector.shape_cast %283 : vector<12xf32> to vector<12x1xf32>
    %285 = vector.broadcast %284 : vector<12x1xf32> to vector<12x12xf32>
    %286 = arith.subf %282, %285 : vector<12x12xf32>
    %287 = math.exp %286 : vector<12x12xf32>
    %cst_132 = arith.constant dense<0.000000e+00> : vector<12xf32>
    %288 = vector.multi_reduction <add>, %287, %cst_132 [1] : vector<12x12xf32> to vector<12xf32>
    %289 = vector.shape_cast %288 : vector<12xf32> to vector<12x1xf32>
    %290 = vector.broadcast %289 : vector<12x1xf32> to vector<12x12xf32>
    %291 = arith.divf %287, %290 : vector<12x12xf32>
    %cst_133 = arith.constant dense<0.000000e+00> : vector<12x8xf32>
    %292 = tpu.matmul %291, %278, %cst_133 {dimension_numbers = #tpu.dot_dimension_numbers<[1], [0], [0], [1], [0, 0, 1, 1], [], []>} : vector<12x12xf32>, vector<12x8xf32>, vector<12x8xf32> -> vector<12x8xf32>
    %293 = vector.extract_strided_slice %214 {offsets = [24, 0], sizes = [8, 32], strides = [1, 1]} : vector<32x32xf32> to vector<8x32xf32>
    %cst_134 = arith.constant dense<0.000000e+00> : vector<12x32xf32>
    %294 = tpu.matmul %292, %293, %cst_134 {dimension_numbers = #tpu.dot_dimension_numbers<[1], [0], [0], [1], [0, 0, 1, 1], [], []>} : vector<12x8xf32>, vector<8x32xf32>, vector<12x32xf32> -> vector<12x32xf32>
    %295 = arith.addf %275, %294 : vector<12x32xf32>
    %296 = arith.addf %181, %295 : vector<12x32xf32>
    %c1_135 = arith.constant 1 : index
    %c0_136 = arith.constant 0 : index
    %c0_137 = arith.constant 0 : index
    %297 = vector.load %arg11[%c1_135, %c0_136, %c0_137] : memref<2x1x32xf32, #tpu.memory_space<vmem>>, vector<1x1x32xf32>
    %298 = vector.shape_cast %297 : vector<1x1x32xf32> to vector<1x32xf32>
    %299 = vector.broadcast %298 : vector<1x32xf32> to vector<12x32xf32>
    %300 = arith.addf %296, %299 : vector<12x32xf32>
    %c1_138 = arith.constant 1 : index
    %c0_139 = arith.constant 0 : index
    %c0_140 = arith.constant 0 : index
    %301 = vector.load %arg12[%c1_138, %c0_139, %c0_140] : memref<2x1x32xf32, #tpu.memory_space<vmem>>, vector<1x1x32xf32>
    %302 = vector.shape_cast %301 : vector<1x1x32xf32> to vector<1x32xf32>
    %c1_141 = arith.constant 1 : index
    %c0_142 = arith.constant 0 : index
    %c0_143 = arith.constant 0 : index
    %303 = vector.load %arg13[%c1_141, %c0_142, %c0_143] : memref<2x1x32xf32, #tpu.memory_space<vmem>>, vector<1x1x32xf32>
    %304 = vector.shape_cast %303 : vector<1x1x32xf32> to vector<1x32xf32>
    %cst_144 = arith.constant dense<0.000000e+00> : vector<12xf32>
    %305 = vector.multi_reduction <add>, %300, %cst_144 [1] : vector<12x32xf32> to vector<12xf32>
    %306 = vector.shape_cast %305 : vector<12xf32> to vector<12x1xf32>
    %cst_145 = arith.constant 3.200000e+01 : f32
    %307 = vector.broadcast %cst_145 : f32 to vector<12x1xf32>
    %308 = arith.divf %306, %307 : vector<12x1xf32>
    %309 = vector.broadcast %308 : vector<12x1xf32> to vector<12x32xf32>
    %310 = arith.subf %300, %309 : vector<12x32xf32>
    %311 = arith.mulf %310, %310 : vector<12x32xf32>
    %cst_146 = arith.constant dense<0.000000e+00> : vector<12xf32>
    %312 = vector.multi_reduction <add>, %311, %cst_146 [1] : vector<12x32xf32> to vector<12xf32>
    %313 = vector.shape_cast %312 : vector<12xf32> to vector<12x1xf32>
    %cst_147 = arith.constant 3.200000e+01 : f32
    %314 = vector.broadcast %cst_147 : f32 to vector<12x1xf32>
    %315 = arith.divf %313, %314 : vector<12x1xf32>
    %cst_148 = arith.constant 9.99999997E-7 : f32
    %316 = vector.broadcast %cst_148 : f32 to vector<12x1xf32>
    %317 = arith.addf %315, %316 : vector<12x1xf32>
    %318 = math.rsqrt %317 : vector<12x1xf32>
    %319 = vector.broadcast %318 : vector<12x1xf32> to vector<12x32xf32>
    %320 = arith.mulf %310, %319 : vector<12x32xf32>
    %321 = vector.broadcast %302 : vector<1x32xf32> to vector<12x32xf32>
    %322 = arith.mulf %320, %321 : vector<12x32xf32>
    %323 = vector.broadcast %304 : vector<1x32xf32> to vector<12x32xf32>
    %324 = arith.addf %322, %323 : vector<12x32xf32>
    %c1_149 = arith.constant 1 : index
    %c0_150 = arith.constant 0 : index
    %c0_151 = arith.constant 0 : index
    %325 = vector.load %arg14[%c1_149, %c0_150, %c0_151] : memref<2x32x64xf32, #tpu.memory_space<vmem>>, vector<1x32x64xf32>
    %326 = vector.shape_cast %325 : vector<1x32x64xf32> to vector<32x64xf32>
    %cst_152 = arith.constant dense<0.000000e+00> : vector<12x64xf32>
    %327 = tpu.matmul %324, %326, %cst_152 {dimension_numbers = #tpu.dot_dimension_numbers<[1], [0], [0], [1], [0, 0, 1, 1], [], []>} : vector<12x32xf32>, vector<32x64xf32>, vector<12x64xf32> -> vector<12x64xf32>
    %c1_153 = arith.constant 1 : index
    %c0_154 = arith.constant 0 : index
    %c0_155 = arith.constant 0 : index
    %328 = vector.load %arg15[%c1_153, %c0_154, %c0_155] : memref<2x1x64xf32, #tpu.memory_space<vmem>>, vector<1x1x64xf32>
    %329 = vector.shape_cast %328 : vector<1x1x64xf32> to vector<1x64xf32>
    %330 = vector.broadcast %329 : vector<1x64xf32> to vector<12x64xf32>
    %331 = arith.addf %327, %330 : vector<12x64xf32>
    %cst_156 = arith.constant 5.000000e-01 : f32
    %332 = vector.broadcast %cst_156 : f32 to vector<12x64xf32>
    %333 = arith.mulf %332, %331 : vector<12x64xf32>
    %cst_157 = arith.constant 4.471500e-02 : f32
    %334 = vector.broadcast %cst_157 : f32 to vector<12x64xf32>
    %335 = arith.mulf %334, %331 : vector<12x64xf32>
    %336 = arith.mulf %335, %331 : vector<12x64xf32>
    %337 = arith.mulf %336, %331 : vector<12x64xf32>
    %338 = arith.addf %331, %337 : vector<12x64xf32>
    %cst_158 = arith.constant 0.797884583 : f32
    %339 = vector.broadcast %cst_158 : f32 to vector<12x64xf32>
    %340 = arith.mulf %339, %338 : vector<12x64xf32>
    %341 = math.tanh %340 : vector<12x64xf32>
    %cst_159 = arith.constant 1.000000e+00 : f32
    %342 = vector.broadcast %cst_159 : f32 to vector<12x64xf32>
    %343 = arith.addf %342, %341 : vector<12x64xf32>
    %344 = arith.mulf %333, %343 : vector<12x64xf32>
    %c1_160 = arith.constant 1 : index
    %c0_161 = arith.constant 0 : index
    %c0_162 = arith.constant 0 : index
    %345 = vector.load %arg16[%c1_160, %c0_161, %c0_162] : memref<2x64x32xf32, #tpu.memory_space<vmem>>, vector<1x64x32xf32>
    %346 = vector.shape_cast %345 : vector<1x64x32xf32> to vector<64x32xf32>
    %cst_163 = arith.constant dense<0.000000e+00> : vector<12x32xf32>
    %347 = tpu.matmul %344, %346, %cst_163 {dimension_numbers = #tpu.dot_dimension_numbers<[1], [0], [0], [1], [0, 0, 1, 1], [], []>} : vector<12x64xf32>, vector<64x32xf32>, vector<12x32xf32> -> vector<12x32xf32>
    %348 = arith.addf %300, %347 : vector<12x32xf32>
    %c1_164 = arith.constant 1 : index
    %c0_165 = arith.constant 0 : index
    %c0_166 = arith.constant 0 : index
    %349 = vector.load %arg17[%c1_164, %c0_165, %c0_166] : memref<2x1x32xf32, #tpu.memory_space<vmem>>, vector<1x1x32xf32>
    %350 = vector.shape_cast %349 : vector<1x1x32xf32> to vector<1x32xf32>
    %351 = vector.broadcast %350 : vector<1x32xf32> to vector<12x32xf32>
    %352 = arith.addf %348, %351 : vector<12x32xf32>
    %c0_167 = arith.constant 0 : index
    %c0_168 = arith.constant 0 : index
    %353 = vector.load %arg18[%c0_167, %c0_168] : memref<1x32xf32, #tpu.memory_space<vmem>>, vector<1x32xf32>
    %c0_169 = arith.constant 0 : index
    %c0_170 = arith.constant 0 : index
    %354 = vector.load %arg19[%c0_169, %c0_170] : memref<1x32xf32, #tpu.memory_space<vmem>>, vector<1x32xf32>
    %cst_171 = arith.constant dense<0.000000e+00> : vector<12xf32>
    %355 = vector.multi_reduction <add>, %352, %cst_171 [1] : vector<12x32xf32> to vector<12xf32>
    %356 = vector.shape_cast %355 : vector<12xf32> to vector<12x1xf32>
    %cst_172 = arith.constant 3.200000e+01 : f32
    %357 = vector.broadcast %cst_172 : f32 to vector<12x1xf32>
    %358 = arith.divf %356, %357 : vector<12x1xf32>
    %359 = vector.broadcast %358 : vector<12x1xf32> to vector<12x32xf32>
    %360 = arith.subf %352, %359 : vector<12x32xf32>
    %361 = arith.mulf %360, %360 : vector<12x32xf32>
    %cst_173 = arith.constant dense<0.000000e+00> : vector<12xf32>
    %362 = vector.multi_reduction <add>, %361, %cst_173 [1] : vector<12x32xf32> to vector<12xf32>
    %363 = vector.shape_cast %362 : vector<12xf32> to vector<12x1xf32>
    %cst_174 = arith.constant 3.200000e+01 : f32
    %364 = vector.broadcast %cst_174 : f32 to vector<12x1xf32>
    %365 = arith.divf %363, %364 : vector<12x1xf32>
    %cst_175 = arith.constant 9.99999997E-7 : f32
    %366 = vector.broadcast %cst_175 : f32 to vector<12x1xf32>
    %367 = arith.addf %365, %366 : vector<12x1xf32>
    %368 = math.rsqrt %367 : vector<12x1xf32>
    %369 = vector.broadcast %368 : vector<12x1xf32> to vector<12x32xf32>
    %370 = arith.mulf %360, %369 : vector<12x32xf32>
    %371 = vector.broadcast %353 : vector<1x32xf32> to vector<12x32xf32>
    %372 = arith.mulf %370, %371 : vector<12x32xf32>
    %373 = vector.broadcast %354 : vector<1x32xf32> to vector<12x32xf32>
    %374 = arith.addf %372, %373 : vector<12x32xf32>
    %c0_176 = arith.constant 0 : index
    %c0_177 = arith.constant 0 : index
    %375 = vector.load %arg20[%c0_176, %c0_177] : memref<2x12xf32, #tpu.memory_space<vmem>>, vector<2x12xf32>
    %cst_178 = arith.constant dense<0.000000e+00> : vector<2x32xf32>
    %376 = tpu.matmul %375, %374, %cst_178 {dimension_numbers = #tpu.dot_dimension_numbers<[1], [0], [0], [1], [0, 0, 1, 1], [], []>} : vector<2x12xf32>, vector<12x32xf32>, vector<2x32xf32> -> vector<2x32xf32>
    %c0_179 = arith.constant 0 : index
    %c0_180 = arith.constant 0 : index
    %377 = vector.load %arg21[%c0_179, %c0_180] : memref<32x32xf32, #tpu.memory_space<vmem>>, vector<32x32xf32>
    %cst_181 = arith.constant dense<0.000000e+00> : vector<2x32xf32>
    %378 = tpu.matmul %376, %377, %cst_181 {dimension_numbers = #tpu.dot_dimension_numbers<[1], [0], [0], [1], [0, 0, 1, 1], [], []>} : vector<2x32xf32>, vector<32x32xf32>, vector<2x32xf32> -> vector<2x32xf32>
    %c0_182 = arith.constant 0 : index
    %c0_183 = arith.constant 0 : index
    %379 = vector.load %arg22[%c0_182, %c0_183] : memref<1x32xf32, #tpu.memory_space<vmem>>, vector<1x32xf32>
    %380 = vector.broadcast %379 : vector<1x32xf32> to vector<2x32xf32>
    %381 = arith.addf %378, %380 : vector<2x32xf32>
    %382 = math.tanh %381 : vector<2x32xf32>
    %c0_184 = arith.constant 0 : index
    %c0_185 = arith.constant 0 : index
    %383 = vector.load %arg23[%c0_184, %c0_185] : memref<32x128xf32, #tpu.memory_space<vmem>>, vector<32x128xf32>
    %cst_186 = arith.constant dense<0.000000e+00> : vector<2x128xf32>
    %384 = tpu.matmul %382, %383, %cst_186 {dimension_numbers = #tpu.dot_dimension_numbers<[1], [0], [0], [1], [0, 0, 1, 1], [], []>} : vector<2x32xf32>, vector<32x128xf32>, vector<2x128xf32> -> vector<2x128xf32>
    %c0_187 = arith.constant 0 : index
    %c0_188 = arith.constant 0 : index
    %385 = vector.load %arg24[%c0_187, %c0_188] : memref<1x128xf32, #tpu.memory_space<vmem>>, vector<1x128xf32>
    %386 = vector.broadcast %385 : vector<1x128xf32> to vector<2x128xf32>
    %387 = arith.addf %384, %386 : vector<2x128xf32>
    %c0_189 = arith.constant 0 : index
    %c0_190 = arith.constant 0 : index
    %388 = vector.load %arg25[%c0_189, %c0_190] : memref<2x128xf32, #tpu.memory_space<vmem>>, vector<2x128xf32>
    tpu.vector_store %arg25[%c0_189, %c0_190], %387 {strides = array<i32>} : memref<2x128xf32, #tpu.memory_space<vmem>>, vector<2x128xf32>,
    return
  }
}

</mosaic_0001>

<llo_original>
// kernel: deit_forward.1
$region0: #{deit_forward.1}
  #allocation0 [shape = 'u32[]', space=smem, size = 0x4, offset = 0x4, fixed_abs, tag = 'smem constant byte address 0x4 - core index']
  #allocation1 [shape = 'u32[144,128]{1,0:T(1,128)}', space=vmem, size = 0x12000, scoped, tag = 'internal scratch']
  %s0 = inlined_call_operand.vmem [shape: f32[8,192], index: 0, kind: input, shape index: {}]
  %s1 = inlined_call_operand.vmem [shape: f32[12,8], index: 1, kind: input, shape index: {}]
  %s2 = inlined_call_operand.vmem [shape: f32[12,32], index: 2, kind: input, shape index: {}]
  %s3 = inlined_call_operand.vmem [shape: f32[12,12], index: 3, kind: input, shape index: {}]
  %s4 = inlined_call_operand.vmem [shape: f32[192,32], index: 4, kind: input, shape index: {}]
  %s5 = inlined_call_operand.vmem [shape: f32[1,32], index: 5, kind: input, shape index: {}]
  %s6 = inlined_call_operand.vmem [shape: f32[2,1,32], index: 6, kind: input, shape index: {}]
  %s7 = inlined_call_operand.vmem [shape: f32[2,1,32], index: 7, kind: input, shape index: {}]
  %s8 = inlined_call_operand.vmem [shape: f32[2,32,96], index: 8, kind: input, shape index: {}]
  %s9 = inlined_call_operand.vmem [shape: f32[2,1,96], index: 9, kind: input, shape index: {}]
  %s10 = inlined_call_operand.vmem [shape: f32[2,32,32], index: 10, kind: input, shape index: {}]
  %s11 = inlined_call_operand.vmem [shape: f32[2,1,32], index: 11, kind: input, shape index: {}]
  %s12 = inlined_call_operand.vmem [shape: f32[2,1,32], index: 12, kind: input, shape index: {}]
  %s13 = inlined_call_operand.vmem [shape: f32[2,1,32], index: 13, kind: input, shape index: {}]
  %s14 = inlined_call_operand.vmem [shape: f32[2,32,64], index: 14, kind: input, shape index: {}]
  %s15 = inlined_call_operand.vmem [shape: f32[2,1,64], index: 15, kind: input, shape index: {}]
  %s16 = inlined_call_operand.vmem [shape: f32[2,64,32], index: 16, kind: input, shape index: {}]
  %s17 = inlined_call_operand.vmem [shape: f32[2,1,32], index: 17, kind: input, shape index: {}]
  %s18 = inlined_call_operand.vmem [shape: f32[1,32], index: 18, kind: input, shape index: {}]
  %s19 = inlined_call_operand.vmem [shape: f32[1,32], index: 19, kind: input, shape index: {}]
  %s20 = inlined_call_operand.vmem [shape: f32[2,12], index: 20, kind: input, shape index: {}]
  %s21 = inlined_call_operand.vmem [shape: f32[32,32], index: 21, kind: input, shape index: {}]
  %s22 = inlined_call_operand.vmem [shape: f32[1,32], index: 22, kind: input, shape index: {}]
  %s23 = inlined_call_operand.vmem [shape: f32[32,128], index: 23, kind: input, shape index: {}]
  %s24 = inlined_call_operand.vmem [shape: f32[1,128], index: 24, kind: input, shape index: {}]
  %s25 = inlined_call_operand.hbm [shape: f32[2,128], index: 25, kind: output, shape index: {}]
  %s26 = sld [smem:[#allocation0]]
  $region110: #{deit_forward.1} parent=0
    _
  %s28 = ssub.s32 1, %s26
  %s29 = scalar_select 0, %s28, %s26
  $region1: #{deit_forward.1} parent=0
    #allocation2 [shape = 'u8[1024]{0}', space=vmem, size = 0x400, scoped, tag = 'output window, operand 0, single buffered']
    #allocation3 [shape = 's32[1]{0}', space=sflag, size = 0x4, scoped, tag = 'scoped memory for deit_forward.1']
    %30 = vsyncpa [#allocation3], 0
    // Predicated region
    $region2: #{deit_forward.1} parent=1 // pred_check
      _
    $region3: #{deit_forward.1} parent=1 // pred_check_branch
      %32 = sbr.rel (0) target = $region5
    $region4: #{deit_forward.1} parent=1 // pred_region
      _
    $region5: #{deit_forward.1} parent=1 // pred_fallthru
      _
    // Predicated region
    $region6: #{deit_forward.1} parent=1 // pred_check
      _
    $region7: #{deit_forward.1} parent=1 // pred_check_branch
      %34 = sbr.rel (0) target = $region9
    $region8: #{deit_forward.1} parent=1 // pred_region
      _
    $region9: #{deit_forward.1} parent=1 // pred_fallthru
      _
    // Predicated region
    $region10: #{deit_forward.1} parent=1 // pred_check
      _
    $region11: #{deit_forward.1} parent=1 // pred_check_branch
      %36 = sbr.rel (0) target = $region13
    $region12: #{deit_forward.1} parent=1 // pred_region
      _
    $region13: #{deit_forward.1} parent=1 // pred_fallthru
      _
    // Predicated region
    $region14: #{deit_forward.1} parent=1 // pred_check
      _
    $region15: #{deit_forward.1} parent=1 // pred_check_branch
      %38 = sbr.rel (0) target = $region17
    $region16: #{deit_forward.1} parent=1 // pred_region
      _
    $region17: #{deit_forward.1} parent=1 // pred_fallthru
      _
    // Predicated region
    $region18: #{deit_forward.1} parent=1 // pred_check
      _
    $region19: #{deit_forward.1} parent=1 // pred_check_branch
      %40 = sbr.rel (0) target = $region21
    $region20: #{deit_forward.1} parent=1 // pred_region
      _
    $region21: #{deit_forward.1} parent=1 // pred_fallthru
      _
    // Predicated region
    $region22: #{deit_forward.1} parent=1 // pred_check
      _
    $region23: #{deit_forward.1} parent=1 // pred_check_branch
      %42 = sbr.rel (0) target = $region25
    $region24: #{deit_forward.1} parent=1 // pred_region
      _
    $region25: #{deit_forward.1} parent=1 // pred_fallthru
      _
    // Predicated region
    $region26: #{deit_forward.1} parent=1 // pred_check
      _
    $region27: #{deit_forward.1} parent=1 // pred_check_branch
      %44 = sbr.rel (0) target = $region29
    $region28: #{deit_forward.1} parent=1 // pred_region
      _
    $region29: #{deit_forward.1} parent=1 // pred_fallthru
      _
    // Predicated region
    $region30: #{deit_forward.1} parent=1 // pred_check
      _
    $region31: #{deit_forward.1} parent=1 // pred_check_branch
      %46 = sbr.rel (0) target = $region33
    $region32: #{deit_forward.1} parent=1 // pred_region
      _
    $region33: #{deit_forward.1} parent=1 // pred_fallthru
      _
    // Predicated region
    $region34: #{deit_forward.1} parent=1 // pred_check
      _
    $region35: #{deit_forward.1} parent=1 // pred_check_branch
      %48 = sbr.rel (0) target = $region37
    $region36: #{deit_forward.1} parent=1 // pred_region
      _
    $region37: #{deit_forward.1} parent=1 // pred_fallthru
      _
    // Predicated region
    $region38: #{deit_forward.1} parent=1 // pred_check
      _
    $region39: #{deit_forward.1} parent=1 // pred_check_branch
      %50 = sbr.rel (0) target = $region41
    $region40: #{deit_forward.1} parent=1 // pred_region
      _
    $region41: #{deit_forward.1} parent=1 // pred_fallthru
      _
    // Predicated region
    $region42: #{deit_forward.1} parent=1 // pred_check
      _
    $region43: #{deit_forward.1} parent=1 // pred_check_branch
      %52 = sbr.rel (0) target = $region45
    $region44: #{deit_forward.1} parent=1 // pred_region
      _
    $region45: #{deit_forward.1} parent=1 // pred_fallthru
      _
    // Predicated region
    $region46: #{deit_forward.1} parent=1 // pred_check
      _
    $region47: #{deit_forward.1} parent=1 // pred_check_branch
      %54 = sbr.rel (0) target = $region49
    $region48: #{deit_forward.1} parent=1 // pred_region
      _
    $region49: #{deit_forward.1} parent=1 // pred_fallthru
      _
    // Predicated region
    $region50: #{deit_forward.1} parent=1 // pred_check
      _
    $region51: #{deit_forward.1} parent=1 // pred_check_branch
      %56 = sbr.rel (0) target = $region53
    $region52: #{deit_forward.1} parent=1 // pred_region
      _
    $region53: #{deit_forward.1} parent=1 // pred_fallthru
      _
    // Predicated region
    $region54: #{deit_forward.1} parent=1 // pred_check
      _
    $region55: #{deit_forward.1} parent=1 // pred_check_branch
      %58 = sbr.rel (0) target = $region57
    $region56: #{deit_forward.1} parent=1 // pred_region
      _
    $region57: #{deit_forward.1} parent=1 // pred_fallthru
      _
    // Predicated region
    $region58: #{deit_forward.1} parent=1 // pred_check
      _
    $region59: #{deit_forward.1} parent=1 // pred_check_branch
      %60 = sbr.rel (0) target = $region61
    $region60: #{deit_forward.1} parent=1 // pred_region
      _
    $region61: #{deit_forward.1} parent=1 // pred_fallthru
      _
    // Predicated region
    $region62: #{deit_forward.1} parent=1 // pred_check
      _
    $region63: #{deit_forward.1} parent=1 // pred_check_branch
      %62 = sbr.rel (0) target = $region65
    $region64: #{deit_forward.1} parent=1 // pred_region
      _
    $region65: #{deit_forward.1} parent=1 // pred_fallthru
      _
    // Predicated region
    $region66: #{deit_forward.1} parent=1 // pred_check
      _
    $region67: #{deit_forward.1} parent=1 // pred_check_branch
      %64 = sbr.rel (0) target = $region69
    $region68: #{deit_forward.1} parent=1 // pred_region
      _
    $region69: #{deit_forward.1} parent=1 // pred_fallthru
      _
    // Predicated region
    $region70: #{deit_forward.1} parent=1 // pred_check
      _
    $region71: #{deit_forward.1} parent=1 // pred_check_branch
      %66 = sbr.rel (0) target = $region73
    $region72: #{deit_forward.1} parent=1 // pred_region
      _
    $region73: #{deit_forward.1} parent=1 // pred_fallthru
      _
    // Predicated region
    $region74: #{deit_forward.1} parent=1 // pred_check
      _
    $region75: #{deit_forward.1} parent=1 // pred_check_branch
      %68 = sbr.rel (0) target = $region77
    $region76: #{deit_forward.1} parent=1 // pred_region
      _
    $region77: #{deit_forward.1} parent=1 // pred_fallthru
      _
    // Predicated region
    $region78: #{deit_forward.1} parent=1 // pred_check
      _
    $region79: #{deit_forward.1} parent=1 // pred_check_branch
      %70 = sbr.rel (0) target = $region81
    $region80: #{deit_forward.1} parent=1 // pred_region
      _
    $region81: #{deit_forward.1} parent=1 // pred_fallthru
      _
    // Predicated region
    $region82: #{deit_forward.1} parent=1 // pred_check
      _
    $region83: #{deit_forward.1} parent=1 // pred_check_branch
      %72 = sbr.rel (0) target = $region85
    $region84: #{deit_forward.1} parent=1 // pred_region
      _
    $region85: #{deit_forward.1} parent=1 // pred_fallthru
      _
    // Predicated region
    $region86: #{deit_forward.1} parent=1 // pred_check
      _
    $region87: #{deit_forward.1} parent=1 // pred_check_branch
      %74 = sbr.rel (0) target = $region89
    $region88: #{deit_forward.1} parent=1 // pred_region
      _
    $region89: #{deit_forward.1} parent=1 // pred_fallthru
      _
    // Predicated region
    $region90: #{deit_forward.1} parent=1 // pred_check
      _
    $region91: #{deit_forward.1} parent=1 // pred_check_branch
      %76 = sbr.rel (0) target = $region93
    $region92: #{deit_forward.1} parent=1 // pred_region
      _
    $region93: #{deit_forward.1} parent=1 // pred_fallthru
      _
    // Predicated region
    $region94: #{deit_forward.1} parent=1 // pred_check
      _
    $region95: #{deit_forward.1} parent=1 // pred_check_branch
      %78 = sbr.rel (0) target = $region97
    $region96: #{deit_forward.1} parent=1 // pred_region
      _
    $region97: #{deit_forward.1} parent=1 // pred_fallthru
      _
    // Predicated region
    $region98: #{deit_forward.1} parent=1 // pred_check
      _
    $region99: #{deit_forward.1} parent=1 // pred_check_branch
      %80 = sbr.rel (0) target = $region101
    $region100: #{deit_forward.1} parent=1 // pred_region
      _
    $region101: #{deit_forward.1} parent=1 // pred_fallthru
      _
    %v81 = vld [vmem:[%s0] sm:$0xff]
    %v82 = vld [vmem:[%s0 + $0x8] sm:$0xff]
    %v83 = vld [vmem:[%s4] sm:$0xff]
    %v84 = vld [vmem:[%s4 + $0x8] sm:$0xff]
    %v85 = vld [vmem:[%s4 + $0x10] sm:$0xff]
    %v86 = vld [vmem:[%s4 + $0x18] sm:$0xff]
    %v87 = vld [vmem:[%s4 + $0x20] sm:$0xff]
    %v88 = vld [vmem:[%s4 + $0x28] sm:$0xff]
    %v89 = vld [vmem:[%s4 + $0x30] sm:$0xff]
    %v90 = vld [vmem:[%s4 + $0x38] sm:$0xff]
    %v91 = vld [vmem:[%s4 + $0x40] sm:$0xff]
    %v92 = vld [vmem:[%s4 + $0x48] sm:$0xff]
    %v93 = vld [vmem:[%s4 + $0x50] sm:$0xff]
    %v94 = vld [vmem:[%s4 + $0x58] sm:$0xff]
    %v95 = vld [vmem:[%s4 + $0x60] sm:$0xff]
    %v96 = vld [vmem:[%s4 + $0x68] sm:$0xff]
    %v97 = vld [vmem:[%s4 + $0x70] sm:$0xff]
    %v98 = vld [vmem:[%s4 + $0x78] sm:$0xff]
    %v99 = vld [vmem:[%s4 + $0x80] sm:$0xff]
    %v100 = vld [vmem:[%s4 + $0x88] sm:$0xff]
    %v101 = vld [vmem:[%s4 + $0x90] sm:$0xff]
    %v102 = vld [vmem:[%s4 + $0x98] sm:$0xff]
    %v103 = vld [vmem:[%s4 + $0xa0] sm:$0xff]
    %v104 = vld [vmem:[%s4 + $0xa8] sm:$0xff]
    %v105 = vld [vmem:[%s4 + $0xb0] sm:$0xff]
    %v106 = vld [vmem:[%s4 + $0xb8] sm:$0xff]
    %v107 = vld [vmem:[%s5] sm:$0x1]
    %v109 = vlaneseq
    %v110 = vshrl.u32 %v109, 7
    %v111 = vsub.s32 0, %v110
    %v112 = vrot.slane %v107, %v111
    %vm114 = vcmask 523264
    %v116 = vsel %vm114, %v82, 0
    %118 = vmatprep.subr.mxu0 0.0
    %119 = vmatpush1.msra.mxu0 %v83
    %120 = vmatprep.subr.mxu0 0.0
    %121 = vmatpush1.msra.mxu0 %v84
    %122 = vmatprep.subr.mxu0 0.0
    %123 = vmatpush1.msra.mxu0 %v85
    %124 = vmatprep.subr.mxu0 0.0
    %125 = vmatpush1.msra.mxu0 %v86
    %126 = vmatprep.subr.mxu0 0.0
    %127 = vmatpush1.msra.mxu0 %v87
    %128 = vmatprep.subr.mxu0 0.0
    %129 = vmatpush1.msra.mxu0 %v88
    %130 = vmatprep.subr.mxu0 0.0
    %131 = vmatpush1.msra.mxu0 %v89
    %132 = vmatprep.subr.mxu0 0.0
    %133 = vmatpush1.msra.mxu0 %v90
    %134 = vmatprep.subr.mxu0 0.0
    %135 = vmatpush1.msra.mxu0 %v91
    %136 = vmatprep.subr.mxu0 0.0
    %137 = vmatpush1.msra.mxu0 %v92
    %138 = vmatprep.subr.mxu0 0.0
    %139 = vmatpush1.msra.mxu0 %v93
    %140 = vmatprep.subr.mxu0 0.0
    %141 = vmatpush1.msra.mxu0 %v94
    %142 = vmatprep.subr.mxu0 0.0
    %143 = vmatpush1.msra.mxu0 %v95
    %144 = vmatprep.subr.mxu0 0.0
    %145 = vmatpush1.msra.mxu0 %v96
    %146 = vmatprep.subr.mxu0 0.0
    %147 = vmatpush1.msra.mxu0 %v97
    %148 = vmatprep.subr.mxu0 0.0
    %149 = vmatpush1.msra.mxu0 %v98
    %150 = vmatprep.subr.mxu0 0.0
    %151 = vmatpush1.msra.mxu0 %v99
    %152 = vmatprep.subr.mxu0 0.0
    %153 = vmatpush1.msra.mxu0 %v100
    %154 = vmatprep.subr.mxu0 0.0
    %155 = vmatpush1.msra.mxu0 %v101
    %156 = vmatprep.subr.mxu0 0.0
    %157 = vmatpush1.msra.mxu0 %v102
    %158 = vmatprep.subr.mxu0 0.0
    %159 = vmatpush1.msra.mxu0 %v103
    %160 = vmatprep.subr.mxu0 0.0
    %161 = vmatpush1.msra.mxu0 %v104
    %162 = vmatprep.subr.mxu0 0.0
    %163 = vmatpush1.msra.mxu0 %v105
    %164 = vmatprep.subr.mxu0 0.0
    %165 = vmatpush1.msra.mxu0 %v106
    %166 = vmatprep.subr.mxu0 0.0
    %167 = vmatpush1.msra.mxu0 0.0
    %168 = vmatprep.subr.mxu0 0.0
    %169 = vmatpush1.msra.mxu0 0.0
    %170 = vmatprep.subr.mxu0 0.0
    %171 = vmatpush1.msra.mxu0 0.0
    %172 = vmatprep.subr.mxu0 0.0
    %173 = vmatpush1.msra.mxu0 0.0
    %174 = vmatprep.subr.mxu0 0.0
    %175 = vmatpush1.msra.mxu0 0.0
    %176 = vmatprep.subr.mxu0 0.0
    %177 = vmatpush1.msra.mxu0 0.0
    %178 = vmatprep.subr.mxu0 0.0
    %179 = vmatpush1.msra.mxu0 0.0
    %180 = vmatprep.subr.mxu0 0.0
    %181 = vmatpush1.msra.mxu0 0.0
    %182 = vmatprep.mubr.f32.mxu0 %v116
    %183 = vmatmul.mubr.f32.gmra.mrb[0].mxu0 %v81
    %v184 = vpop.f32.mrb[0].mxu0
    %v185 = vadd.f32 %v112, %v184
    %v186 = vpop.f32.mrb[0].mxu0
    %187 = vdwg.mxu0
    %v188 = vld [vmem:[%s1] sm:$0xff]
    %v189 = vld [vmem:[%s1 + $0x8] sm:$0xf]
    %v190 = vld [vmem:[%s2] sm:$0xff]
    %v191 = vld [vmem:[%s2 + $0x8] sm:$0xf]
    %vm192 = vcmask 64512
    %v194 = vsel %vm192, %v188, 0
    %v197 = vsel %vm192, %v189, 0
    %199 = vmatprep.subr.mxu0 0.0
    %200 = vmatpush1.msra.mxu0 %v185
    %201 = vmatprep.subr.mxu0 0.0
    %202 = vmatpush1.msra.mxu0 0.0
    %203 = vmatprep.subr.mxu0 0.0
    %204 = vmatpush1.msra.mxu0 0.0
    %205 = vmatprep.subr.mxu0 0.0
    %206 = vmatpush1.msra.mxu0 0.0
    %207 = vmatprep.subr.mxu0 0.0
    %208 = vmatpush1.msra.mxu0 0.0
    %209 = vmatprep.subr.mxu0 0.0
    %210 = vmatpush1.msra.mxu0 0.0
    %211 = vmatprep.subr.mxu0 0.0
    %212 = vmatpush1.msra.mxu0 0.0
    %213 = vmatprep.subr.mxu0 0.0
    %214 = vmatpush1.msra.mxu0 0.0
    %215 = vmatprep.subr.mxu0 0.0
    %216 = vmatpush1.msra.mxu0 0.0
    %217 = vmatprep.subr.mxu0 0.0
    %218 = vmatpush1.msra.mxu0 0.0
    %219 = vmatprep.subr.mxu0 0.0
    %220 = vmatpush1.msra.mxu0 0.0
    %221 = vmatprep.subr.mxu0 0.0
    %222 = vmatpush1.msra.mxu0 0.0
    %223 = vmatprep.subr.mxu0 0.0
    %224 = vmatpush1.msra.mxu0 0.0
    %225 = vmatprep.subr.mxu0 0.0
    %226 = vmatpush1.msra.mxu0 0.0
    %227 = vmatprep.subr.mxu0 0.0
    %228 = vmatpush1.msra.mxu0 0.0
    %229 = vmatprep.subr.mxu0 0.0
    %230 = vmatpush1.msra.mxu0 0.0
    %231 = vmatprep.subr.mxu0 0.0
    %232 = vmatpush1.msra.mxu0 0.0
    %233 = vmatprep.subr.mxu0 0.0
    %234 = vmatpush1.msra.mxu0 0.0
    %235 = vmatprep.subr.mxu0 0.0
    %236 = vmatpush1.msra.mxu0 0.0
    %237 = vmatprep.subr.mxu0 0.0
    %238 = vmatpush1.msra.mxu0 0.0
    %239 = vmatprep.subr.mxu0 0.0
    %240 = vmatpush1.msra.mxu0 0.0
    %241 = vmatprep.subr.mxu0 0.0
    %242 = vmatpush1.msra.mxu0 0.0
    %243 = vmatprep.subr.mxu0 0.0
    %244 = vmatpush1.msra.mxu0 0.0
    %245 = vmatprep.subr.mxu0 0.0
    %246 = vmatpush1.msra.mxu0 0.0
    %247 = vmatprep.subr.mxu0 0.0
    %248 = vmatpush1.msra.mxu0 0.0
    %249 = vmatprep.subr.mxu0 0.0
    %250 = vmatpush1.msra.mxu0 0.0
    %251 = vmatprep.subr.mxu0 0.0
    %252 = vmatpush1.msra.mxu0 0.0
    %253 = vmatprep.subr.mxu0 0.0
    %254 = vmatpush1.msra.mxu0 0.0
    %255 = vmatprep.subr.mxu0 0.0
    %256 = vmatpush1.msra.mxu0 0.0
    %257 = vmatprep.subr.mxu0 0.0
    %258 = vmatpush1.msra.mxu0 0.0
    %259 = vmatprep.subr.mxu0 0.0
    %260 = vmatpush1.msra.mxu0 0.0
    %261 = vmatprep.subr.mxu0 0.0
    %262 = vmatpush1.msra.mxu0 0.0
    %263 = vmatprep.mubr.f32.mxu0 0.0
    %264 = vmatmul.mubr.f32.gmra.mrb[0].mxu0 %v194
    %v265 = vpop.f32.mrb[0].mxu0
    %v266 = vadd.f32 %v190, %v265
    %v267 = vpop.f32.mrb[0].mxu0
    %268 = vmatprep.mubr.f32.mxu0 0.0
    %269 = vmatmul.mubr.f32.gmra.mrb[0].mxu0 %v197
    %v270 = vpop.f32.mrb[0].mxu0
    %v271 = vadd.f32 %v191, %v270
    %v272 = vpop.f32.mrb[0].mxu0
    %273 = vdwg.mxu0
    %v274 = vld [vmem:[%s3] sm:$0xff]
    %v275 = vld [vmem:[%s3 + $0x8] sm:$0xf]
    %v276 = vld [vmem:[%s6] sm:$0x1]
    %v277 = vld [vmem:[%s7] sm:$0x1]
    %vm278 = vcmask 261120
    %v279 = vsel %vm278, %v266, 0.0
    %280 = vadd.xlane.f32.xlu0 %v279
    %v281 = vpop.xlane.xlu0 %280
    %vm282 = vcmask 257024
    %v283 = vsel %vm282, %v271, 0.0
    %284 = vadd.xlane.f32.xlu0 %v283
    %v285 = vpop.xlane.xlu0 %284
    %v286 = vrcp.pop 32.0
    %v287 = vmul.f32 %v281, %v286
    %v288 = vmul.f32 %v285, %v286
    %v289 = vsub.f32 %v266, %v287
    %v290 = vsub.f32 %v271, %v288
    %v291 = vmul.f32 %v289, %v289
    %v292 = vmul.f32 %v290, %v290
    %v293 = vsel %vm278, %v291, 0.0
    %294 = vadd.xlane.f32.xlu0 %v293
    %v295 = vpop.xlane.xlu0 %294
    %v296 = vsel %vm282, %v292, 0.0
    %297 = vadd.xlane.f32.xlu0 %v296
    %v298 = vpop.xlane.xlu0 %297
    %v299 = vmul.f32 %v295, %v286
    %v300 = vmul.f32 %v298, %v286
    %v301 = vadd.f32 %v299, 1e-06
    %v302 = vadd.f32 %v300, 1e-06
    %v303 = vrsqrt.pop %v301
    %v304 = vrsqrt.pop %v302
    %v305 = vmul.f32 %v289, %v303
    %v306 = vmul.f32 %v290, %v304
    %v308 = vlaneseq
    %v309 = vshrl.u32 %v308, 7
    %v310 = vsub.s32 0, %v309
    %v311 = vrot.slane %v276, %v310
    %v313 = vmul.f32 %v305, %v311
    %v314 = vmul.f32 %v306, %v311
    %v316 = vlaneseq
    %v317 = vshrl.u32 %v316, 7
    %v318 = vsub.s32 0, %v317
    %v319 = vrot.slane %v277, %v318
    %v321 = vadd.f32 %v313, %v319
    %v322 = vadd.f32 %v314, %v319
    %v323 = vld [vmem:[%s8] sm:$0xff]
    %v324 = vld [vmem:[%s8 + $0x8] sm:$0xff]
    %v325 = vld [vmem:[%s8 + $0x10] sm:$0xff]
    %v326 = vld [vmem:[%s8 + $0x18] sm:$0xff]
    %v327 = vld [vmem:[%s9] sm:$0x1]
    %v329 = vlaneseq
    %v330 = vshrl.u32 %v329, 7
    %v331 = vsub.s32 0, %v330
    %v332 = vrot.slane %v327, %v331
    %v335 = vsel %vm278, %v321, 0
    %v338 = vsel %vm278, %v322, 0
    %340 = vmatprep.subr.mxu0 0.0
    %341 = vmatpush1.msra.mxu0 %v323
    %342 = vmatprep.subr.mxu0 0.0
    %343 = vmatpush1.msra.mxu0 %v324
    %344 = vmatprep.subr.mxu0 0.0
    %345 = vmatpush1.msra.mxu0 %v325
    %346 = vmatprep.subr.mxu0 0.0
    %347 = vmatpush1.msra.mxu0 %v326
    %348 = vmatprep.subr.mxu0 0.0
    %349 = vmatpush1.msra.mxu0 0.0
    %350 = vmatprep.subr.mxu0 0.0
    %351 = vmatpush1.msra.mxu0 0.0
    %352 = vmatprep.subr.mxu0 0.0
    %353 = vmatpush1.msra.mxu0 0.0
    %354 = vmatprep.subr.mxu0 0.0
    %355 = vmatpush1.msra.mxu0 0.0
    %356 = vmatprep.subr.mxu0 0.0
    %357 = vmatpush1.msra.mxu0 0.0
    %358 = vmatprep.subr.mxu0 0.0
    %359 = vmatpush1.msra.mxu0 0.0
    %360 = vmatprep.subr.mxu0 0.0
    %361 = vmatpush1.msra.mxu0 0.0
    %362 = vmatprep.subr.mxu0 0.0
    %363 = vmatpush1.msra.mxu0 0.0
    %364 = vmatprep.subr.mxu0 0.0
    %365 = vmatpush1.msra.mxu0 0.0
    %366 = vmatprep.subr.mxu0 0.0
    %367 = vmatpush1.msra.mxu0 0.0
    %368 = vmatprep.subr.mxu0 0.0
    %369 = vmatpush1.msra.mxu0 0.0
    %370 = vmatprep.subr.mxu0 0.0
    %371 = vmatpush1.msra.mxu0 0.0
    %372 = vmatprep.subr.mxu0 0.0
    %373 = vmatpush1.msra.mxu0 0.0
    %374 = vmatprep.subr.mxu0 0.0
    %375 = vmatpush1.msra.mxu0 0.0
    %376 = vmatprep.subr.mxu0 0.0
    %377 = vmatpush1.msra.mxu0 0.0
    %378 = vmatprep.subr.mxu0 0.0
    %379 = vmatpush1.msra.mxu0 0.0
    %380 = vmatprep.subr.mxu0 0.0
    %381 = vmatpush1.msra.mxu0 0.0
    %382 = vmatprep.subr.mxu0 0.0
    %383 = vmatpush1.msra.mxu0 0.0
    %384 = vmatprep.subr.mxu0 0.0
    %385 = vmatpush1.msra.mxu0 0.0
    %386 = vmatprep.subr.mxu0 0.0
    %387 = vmatpush1.msra.mxu0 0.0
    %388 = vmatprep.subr.mxu0 0.0
    %389 = vmatpush1.msra.mxu0 0.0
    %390 = vmatprep.subr.mxu0 0.0
    %391 = vmatpush1.msra.mxu0 0.0
    %392 = vmatprep.subr.mxu0 0.0
    %393 = vmatpush1.msra.mxu0 0.0
    %394 = vmatprep.subr.mxu0 0.0
    %395 = vmatpush1.msra.mxu0 0.0
    %396 = vmatprep.subr.mxu0 0.0
    %397 = vmatpush1.msra.mxu0 0.0
    %398 = vmatprep.subr.mxu0 0.0
    %399 = vmatpush1.msra.mxu0 0.0
    %400 = vmatprep.subr.mxu0 0.0
    %401 = vmatpush1.msra.mxu0 0.0
    %402 = vmatprep.subr.mxu0 0.0
    %403 = vmatpush1.msra.mxu0 0.0
    %404 = vmatprep.mubr.f32.mxu0 0.0
    %405 = vmatmul.mubr.f32.gmra.mrb[0].mxu0 %v335
    %v406 = vpop.f32.mrb[0].mxu0
    %v407 = vadd.f32 %v332, %v406
    %v408 = vpop.f32.mrb[0].mxu0
    %409 = vmatprep.mubr.f32.mxu0 0.0
    %410 = vmatmul.mubr.f32.gmra.mrb[0].mxu0 %v338
    %v411 = vpop.f32.mrb[0].mxu0
    %v412 = vadd.f32 %v332, %v411
    %v413 = vpop.f32.mrb[0].mxu0
    %414 = vdwg.mxu0
    %v415 = vld [vmem:[%s10] sm:$0xff]
    %v416 = vld [vmem:[%s10 + $0x8] sm:$0xff]
    %v417 = vld [vmem:[%s10 + $0x10] sm:$0xff]
    %v418 = vld [vmem:[%s10 + $0x18] sm:$0xff]
    %421 = vrot.lane.b32.xlu0 %v407, 96
    %v422 = vpop.permute.xlu0 %421
    %423 = vrot.lane.b32.xlu0 %v412, 96
    %v424 = vpop.permute.xlu0 %423
    %v425 = vsel %vm192, %v407, 0
    %v427 = vsel %vm192, %v412, 0
    %v429 = vsel %vm192, %v422, 0
    %v431 = vsel %vm192, %v424, 0
    %433 = vmatprep.subr.mxu0 0.0
    %434 = vmatpush1.xpose.msra.mxu0 %v429
    %435 = vmatprep.subr.mxu0 0.0
    %436 = vmatpush1.xpose.msra.mxu0 %v431
    %437 = vmatprep.subr.mxu0 0.0
    %438 = vmatpush1.xpose.msra.mxu0 0.0
    %439 = vmatprep.subr.mxu0 0.0
    %440 = vmatpush1.xpose.msra.mxu0 0.0
    %441 = vmatprep.subr.mxu0 0.0
    %442 = vmatpush1.xpose.msra.mxu0 0.0
    %443 = vmatprep.subr.mxu0 0.0
    %444 = vmatpush1.xpose.msra.mxu0 0.0
    %445 = vmatprep.subr.mxu0 0.0
    %446 = vmatpush1.xpose.msra.mxu0 0.0
    %447 = vmatprep.subr.mxu0 0.0
    %448 = vmatpush1.xpose.msra.mxu0 0.0
    %449 = vmatprep.subr.mxu0 0.0
    %450 = vmatpush1.xpose.msra.mxu0 0.0
    %451 = vmatprep.subr.mxu0 0.0
    %452 = vmatpush1.xpose.msra.mxu0 0.0
    %453 = vmatprep.subr.mxu0 0.0
    %454 = vmatpush1.xpose.msra.mxu0 0.0
    %455 = vmatprep.subr.mxu0 0.0
    %456 = vmatpush1.xpose.msra.mxu0 0.0
    %457 = vmatprep.subr.mxu0 0.0
    %458 = vmatpush1.xpose.msra.mxu0 0.0
    %459 = vmatprep.subr.mxu0 0.0
    %460 = vmatpush1.xpose.msra.mxu0 0.0
    %461 = vmatprep.subr.mxu0 0.0
    %462 = vmatpush1.xpose.msra.mxu0 0.0
    %463 = vmatprep.subr.mxu0 0.0
    %464 = vmatpush1.xpose.msra.mxu0 0.0
    %465 = vmatprep.subr.mxu0 0.0
    %466 = vmatpush1.xpose.msra.mxu0 0.0
    %467 = vmatprep.subr.mxu0 0.0
    %468 = vmatpush1.xpose.msra.mxu0 0.0
    %469 = vmatprep.subr.mxu0 0.0
    %470 = vmatpush1.xpose.msra.mxu0 0.0
    %471 = vmatprep.subr.mxu0 0.0
    %472 = vmatpush1.xpose.msra.mxu0 0.0
    %473 = vmatprep.subr.mxu0 0.0
    %474 = vmatpush1.xpose.msra.mxu0 0.0
    %475 = vmatprep.subr.mxu0 0.0
    %476 = vmatpush1.xpose.msra.mxu0 0.0
    %477 = vmatprep.subr.mxu0 0.0
    %478 = vmatpush1.xpose.msra.mxu0 0.0
    %479 = vmatprep.subr.mxu0 0.0
    %480 = vmatpush1.xpose.msra.mxu0 0.0
    %481 = vmatprep.subr.mxu0 0.0
    %482 = vmatpush1.xpose.msra.mxu0 0.0
    %483 = vmatprep.subr.mxu0 0.0
    %484 = vmatpush1.xpose.msra.mxu0 0.0
    %485 = vmatprep.subr.mxu0 0.0
    %486 = vmatpush1.xpose.msra.mxu0 0.0
    %487 = vmatprep.subr.mxu0 0.0
    %488 = vmatpush1.xpose.msra.mxu0 0.0
    %489 = vmatprep.subr.mxu0 0.0
    %490 = vmatpush1.xpose.msra.mxu0 0.0
    %491 = vmatprep.subr.mxu0 0.0
    %492 = vmatpush1.xpose.msra.mxu0 0.0
    %493 = vmatprep.subr.mxu0 0.0
    %494 = vmatpush1.xpose.msra.mxu0 0.0
    %495 = vmatprep.subr.mxu0 0.0
    %496 = vmatpush1.xpose.msra.mxu0 0.0
    %497 = vmatprep.mubr.f32.mxu0 0.0
    %498 = vmatmul.mubr.f32.gmra.mrb[0].mxu0 %v425
    %v499 = vpop.f32.mrb[0].mxu0
    %v500 = vadd.f32 0.0, %v499
    %v501 = vpop.f32.mrb[0].mxu0
    %502 = vmatprep.mubr.f32.mxu0 0.0
    %503 = vmatmul.mubr.f32.gmra.mrb[0].mxu0 %v427
    %v504 = vpop.f32.mrb[0].mxu0
    %v505 = vadd.f32 0.0, %v504
    %v506 = vpop.f32.mrb[0].mxu0
    %507 = vdwg.mxu0
    %v508 = vmul.f32 %v500, 0.35355338
    %v509 = vmul.f32 %v505, 0.35355338
    %v510 = vadd.f32 %v508, %v274
    %v511 = vadd.f32 %v509, %v275
    %vm512 = vcmask 97280
    %v513 = vsel %vm512, %v510, -inf
    %514 = vmax.xlane.f32.xlu0 %v513
    %v515 = vpop.xlane.xlu0 %514
    %vm516 = vcmask 93184
    %v517 = vsel %vm516, %v511, -inf
    %518 = vmax.xlane.f32.xlu0 %v517
    %v519 = vpop.xlane.xlu0 %518
    %v520 = vsub.f32 %v510, %v515
    %v521 = vsub.f32 %v511, %v519
    %v522 = vmul.f32 %v520, 1.442695
    %v523 = vpow.pop %v522
    %v524 = vmul.f32 %v521, 1.442695
    %v525 = vpow.pop %v524
    %v526 = vsel %vm512, %v523, 0.0
    %527 = vadd.xlane.f32.xlu0 %v526
    %v528 = vpop.xlane.xlu0 %527
    %v529 = vsel %vm516, %v525, 0.0
    %530 = vadd.xlane.f32.xlu0 %v529
    %v531 = vpop.xlane.xlu0 %530
    %v532 = vrcp.pop %v528
    %v533 = vmul.f32 %v523, %v532
    %v534 = vrcp.pop %v531
    %v535 = vmul.f32 %v525, %v534
    %536 = vrot.lane.b32.xlu0 %v407, 64
    %v537 = vpop.permute.xlu0 %536
    %538 = vrot.lane.b32.xlu0 %v412, 64
    %v539 = vpop.permute.xlu0 %538
    %v542 = vsel %vm512, %v533, 0
    %v545 = vsel %vm512, %v535, 0
    %vm547 = vcmask 1043456
    %v548 = vsel %vm547, %v539, 0
    %550 = vmatprep.subr.mxu0 0.0
    %551 = vmatpush1.msra.mxu0 %v537
    %552 = vmatprep.subr.mxu0 0.0
    %553 = vmatpush1.msra.mxu0 %v548
    %554 = vmatprep.subr.mxu0 0.0
    %555 = vmatpush1.msra.mxu0 0.0
    %556 = vmatprep.subr.mxu0 0.0
    %557 = vmatpush1.msra.mxu0 0.0
    %558 = vmatprep.subr.mxu0 0.0
    %559 = vmatpush1.msra.mxu0 0.0
    %560 = vmatprep.subr.mxu0 0.0
    %561 = vmatpush1.msra.mxu0 0.0
    %562 = vmatprep.subr.mxu0 0.0
    %563 = vmatpush1.msra.mxu0 0.0
    %564 = vmatprep.subr.mxu0 0.0
    %565 = vmatpush1.msra.mxu0 0.0
    %566 = vmatprep.subr.mxu0 0.0
    %567 = vmatpush1.msra.mxu0 0.0
    %568 = vmatprep.subr.mxu0 0.0
    %569 = vmatpush1.msra.mxu0 0.0
    %570 = vmatprep.subr.mxu0 0.0
    %571 = vmatpush1.msra.mxu0 0.0
    %572 = vmatprep.subr.mxu0 0.0
    %573 = vmatpush1.msra.mxu0 0.0
    %574 = vmatprep.subr.mxu0 0.0
    %575 = vmatpush1.msra.mxu0 0.0
    %576 = vmatprep.subr.mxu0 0.0
    %577 = vmatpush1.msra.mxu0 0.0
    %578 = vmatprep.subr.mxu0 0.0
    %579 = vmatpush1.msra.mxu0 0.0
    %580 = vmatprep.subr.mxu0 0.0
    %581 = vmatpush1.msra.mxu0 0.0
    %582 = vmatprep.subr.mxu0 0.0
    %583 = vmatpush1.msra.mxu0 0.0
    %584 = vmatprep.subr.mxu0 0.0
    %585 = vmatpush1.msra.mxu0 0.0
    %586 = vmatprep.subr.mxu0 0.0
    %587 = vmatpush1.msra.mxu0 0.0
    %588 = vmatprep.subr.mxu0 0.0
    %589 = vmatpush1.msra.mxu0 0.0
    %590 = vmatprep.subr.mxu0 0.0
    %591 = vmatpush1.msra.mxu0 0.0
    %592 = vmatprep.subr.mxu0 0.0
    %593 = vmatpush1.msra.mxu0 0.0
    %594 = vmatprep.subr.mxu0 0.0
    %595 = vmatpush1.msra.mxu0 0.0
    %596 = vmatprep.subr.mxu0 0.0
    %597 = vmatpush1.msra.mxu0 0.0
    %598 = vmatprep.subr.mxu0 0.0
    %599 = vmatpush1.msra.mxu0 0.0
    %600 = vmatprep.subr.mxu0 0.0
    %601 = vmatpush1.msra.mxu0 0.0
    %602 = vmatprep.subr.mxu0 0.0
    %603 = vmatpush1.msra.mxu0 0.0
    %604 = vmatprep.subr.mxu0 0.0
    %605 = vmatpush1.msra.mxu0 0.0
    %606 = vmatprep.subr.mxu0 0.0
    %607 = vmatpush1.msra.mxu0 0.0
    %608 = vmatprep.subr.mxu0 0.0
    %609 = vmatpush1.msra.mxu0 0.0
    %610 = vmatprep.subr.mxu0 0.0
    %611 = vmatpush1.msra.mxu0 0.0
    %612 = vmatprep.subr.mxu0 0.0
    %613 = vmatpush1.msra.mxu0 0.0
    %614 = vmatprep.mubr.f32.mxu0 0.0
    %615 = vmatmul.mubr.f32.gmra.mrb[0].mxu0 %v542
    %v616 = vpop.f32.mrb[0].mxu0
    %v617 = vadd.f32 0.0, %v616
    %v618 = vpop.f32.mrb[0].mxu0
    %619 = vmatprep.mubr.f32.mxu0 0.0
    %620 = vmatmul.mubr.f32.gmra.mrb[0].mxu0 %v545
    %v621 = vpop.f32.mrb[0].mxu0
    %v622 = vadd.f32 0.0, %v621
    %v623 = vpop.f32.mrb[0].mxu0
    %624 = vdwg.mxu0
    %625 = vrot.lane.b32.xlu0 %v407, 120
    %v626 = vpop.permute.xlu0 %625
    %627 = vrot.lane.b32.xlu0 %v412, 120
    %v628 = vpop.permute.xlu0 %627
    %629 = vrot.lane.b32.xlu0 %v407, 88
    %v630 = vpop.permute.xlu0 %629
    %631 = vrot.lane.b32.xlu0 %v412, 88
    %v632 = vpop.permute.xlu0 %631
    %v633 = vsel %vm192, %v626, 0
    %v635 = vsel %vm192, %v628, 0
    %v637 = vsel %vm192, %v630, 0
    %v639 = vsel %vm192, %v632, 0
    %641 = vmatprep.subr.mxu0 0.0
    %642 = vmatpush1.xpose.msra.mxu0 %v637
    %643 = vmatprep.subr.mxu0 0.0
    %644 = vmatpush1.xpose.msra.mxu0 %v639
    %645 = vmatprep.subr.mxu0 0.0
    %646 = vmatpush1.xpose.msra.mxu0 0.0
    %647 = vmatprep.subr.mxu0 0.0
    %648 = vmatpush1.xpose.msra.mxu0 0.0
    %649 = vmatprep.subr.mxu0 0.0
    %650 = vmatpush1.xpose.msra.mxu0 0.0
    %651 = vmatprep.subr.mxu0 0.0
    %652 = vmatpush1.xpose.msra.mxu0 0.0
    %653 = vmatprep.subr.mxu0 0.0
    %654 = vmatpush1.xpose.msra.mxu0 0.0
    %655 = vmatprep.subr.mxu0 0.0
    %656 = vmatpush1.xpose.msra.mxu0 0.0
    %657 = vmatprep.subr.mxu0 0.0
    %658 = vmatpush1.xpose.msra.mxu0 0.0
    %659 = vmatprep.subr.mxu0 0.0
    %660 = vmatpush1.xpose.msra.mxu0 0.0
    %661 = vmatprep.subr.mxu0 0.0
    %662 = vmatpush1.xpose.msra.mxu0 0.0
    %663 = vmatprep.subr.mxu0 0.0
    %664 = vmatpush1.xpose.msra.mxu0 0.0
    %665 = vmatprep.subr.mxu0 0.0
    %666 = vmatpush1.xpose.msra.mxu0 0.0
    %667 = vmatprep.subr.mxu0 0.0
    %668 = vmatpush1.xpose.msra.mxu0 0.0
    %669 = vmatprep.subr.mxu0 0.0
    %670 = vmatpush1.xpose.msra.mxu0 0.0
    %671 = vmatprep.subr.mxu0 0.0
    %672 = vmatpush1.xpose.msra.mxu0 0.0
    %673 = vmatprep.subr.mxu0 0.0
    %674 = vmatpush1.xpose.msra.mxu0 0.0
    %675 = vmatprep.subr.mxu0 0.0
    %676 = vmatpush1.xpose.msra.mxu0 0.0
    %677 = vmatprep.subr.mxu0 0.0
    %678 = vmatpush1.xpose.msra.mxu0 0.0
    %679 = vmatprep.subr.mxu0 0.0
    %680 = vmatpush1.xpose.msra.mxu0 0.0
    %681 = vmatprep.subr.mxu0 0.0
    %682 = vmatpush1.xpose.msra.mxu0 0.0
    %683 = vmatprep.subr.mxu0 0.0
    %684 = vmatpush1.xpose.msra.mxu0 0.0
    %685 = vmatprep.subr.mxu0 0.0
    %686 = vmatpush1.xpose.msra.mxu0 0.0
    %687 = vmatprep.subr.mxu0 0.0
    %688 = vmatpush1.xpose.msra.mxu0 0.0
    %689 = vmatprep.subr.mxu0 0.0
    %690 = vmatpush1.xpose.msra.mxu0 0.0
    %691 = vmatprep.subr.mxu0 0.0
    %692 = vmatpush1.xpose.msra.mxu0 0.0
    %693 = vmatprep.subr.mxu0 0.0
    %694 = vmatpush1.xpose.msra.mxu0 0.0
    %695 = vmatprep.subr.mxu0 0.0
    %696 = vmatpush1.xpose.msra.mxu0 0.0
    %697 = vmatprep.subr.mxu0 0.0
    %698 = vmatpush1.xpose.msra.mxu0 0.0
    %699 = vmatprep.subr.mxu0 0.0
    %700 = vmatpush1.xpose.msra.mxu0 0.0
    %701 = vmatprep.subr.mxu0 0.0
    %702 = vmatpush1.xpose.msra.mxu0 0.0
    %703 = vmatprep.subr.mxu0 0.0
    %704 = vmatpush1.xpose.msra.mxu0 0.0
    %705 = vmatprep.mubr.f32.mxu0 0.0
    %706 = vmatmul.mubr.f32.gmra.mrb[0].mxu0 %v633
    %v707 = vpop.f32.mrb[0].mxu0
    %v708 = vadd.f32 0.0, %v707
    %v709 = vpop.f32.mrb[0].mxu0
    %710 = vmatprep.mubr.f32.mxu0 0.0
    %711 = vmatmul.mubr.f32.gmra.mrb[0].mxu0 %v635
    %v712 = vpop.f32.mrb[0].mxu0
    %v713 = vadd.f32 0.0, %v712
    %v714 = vpop.f32.mrb[0].mxu0
    %715 = vdwg.mxu0
    %v716 = vmul.f32 %v708, 0.35355338
    %v717 = vmul.f32 %v713, 0.35355338
    %v718 = vadd.f32 %v716, %v274
    %v719 = vadd.f32 %v717, %v275
    %v720 = vsel %vm512, %v718, -inf
    %721 = vmax.xlane.f32.xlu0 %v720
    %v722 = vpop.xlane.xlu0 %721
    %v723 = vsel %vm516, %v719, -inf
    %724 = vmax.xlane.f32.xlu0 %v723
    %v725 = vpop.xlane.xlu0 %724
    %v726 = vsub.f32 %v718, %v722
    %v727 = vsub.f32 %v719, %v725
    %v728 = vmul.f32 %v726, 1.442695
    %v729 = vpow.pop %v728
    %v730 = vmul.f32 %v727, 1.442695
    %v731 = vpow.pop %v730
    %v732 = vsel %vm512, %v729, 0.0
    %733 = vadd.xlane.f32.xlu0 %v732
    %v734 = vpop.xlane.xlu0 %733
    %v735 = vsel %vm516, %v731, 0.0
    %736 = vadd.xlane.f32.xlu0 %v735
    %v737 = vpop.xlane.xlu0 %736
    %v738 = vrcp.pop %v734
    %v739 = vmul.f32 %v729, %v738
    %v740 = vrcp.pop %v737
    %v741 = vmul.f32 %v731, %v740
    %742 = vrot.lane.b32.xlu0 %v407, 56
    %v743 = vpop.permute.xlu0 %742
    %744 = vrot.lane.b32.xlu0 %v412, 56
    %v745 = vpop.permute.xlu0 %744
    %v748 = vsel %vm512, %v739, 0
    %v751 = vsel %vm512, %v741, 0
    %v753 = vsel %vm547, %v745, 0
    %755 = vmatprep.subr.mxu0 0.0
    %756 = vmatpush1.msra.mxu0 %v743
    %757 = vmatprep.subr.mxu0 0.0
    %758 = vmatpush1.msra.mxu0 %v753
    %759 = vmatprep.subr.mxu0 0.0
    %760 = vmatpush1.msra.mxu0 0.0
    %761 = vmatprep.subr.mxu0 0.0
    %762 = vmatpush1.msra.mxu0 0.0
    %763 = vmatprep.subr.mxu0 0.0
    %764 = vmatpush1.msra.mxu0 0.0
    %765 = vmatprep.subr.mxu0 0.0
    %766 = vmatpush1.msra.mxu0 0.0
    %767 = vmatprep.subr.mxu0 0.0
    %768 = vmatpush1.msra.mxu0 0.0
    %769 = vmatprep.subr.mxu0 0.0
    %770 = vmatpush1.msra.mxu0 0.0
    %771 = vmatprep.subr.mxu0 0.0
    %772 = vmatpush1.msra.mxu0 0.0
    %773 = vmatprep.subr.mxu0 0.0
    %774 = vmatpush1.msra.mxu0 0.0
    %775 = vmatprep.subr.mxu0 0.0
    %776 = vmatpush1.msra.mxu0 0.0
    %777 = vmatprep.subr.mxu0 0.0
    %778 = vmatpush1.msra.mxu0 0.0
    %779 = vmatprep.subr.mxu0 0.0
    %780 = vmatpush1.msra.mxu0 0.0
    %781 = vmatprep.subr.mxu0 0.0
    %782 = vmatpush1.msra.mxu0 0.0
    %783 = vmatprep.subr.mxu0 0.0
    %784 = vmatpush1.msra.mxu0 0.0
    %785 = vmatprep.subr.mxu0 0.0
    %786 = vmatpush1.msra.mxu0 0.0
    %787 = vmatprep.subr.mxu0 0.0
    %788 = vmatpush1.msra.mxu0 0.0
    %789 = vmatprep.subr.mxu0 0.0
    %790 = vmatpush1.msra.mxu0 0.0
    %791 = vmatprep.subr.mxu0 0.0
    %792 = vmatpush1.msra.mxu0 0.0
    %793 = vmatprep.subr.mxu0 0.0
    %794 = vmatpush1.msra.mxu0 0.0
    %795 = vmatprep.subr.mxu0 0.0
    %796 = vmatpush1.msra.mxu0 0.0
    %797 = vmatprep.subr.mxu0 0.0
    %798 = vmatpush1.msra.mxu0 0.0
    %799 = vmatprep.subr.mxu0 0.0
    %800 = vmatpush1.msra.mxu0 0.0
    %801 = vmatprep.subr.mxu0 0.0
    %802 = vmatpush1.msra.mxu0 0.0
    %803 = vmatprep.subr.mxu0 0.0
    %804 = vmatpush1.msra.mxu0 0.0
    %805 = vmatprep.subr.mxu0 0.0
    %806 = vmatpush1.msra.mxu0 0.0
    %807 = vmatprep.subr.mxu0 0.0
    %808 = vmatpush1.msra.mxu0 0.0
    %809 = vmatprep.subr.mxu0 0.0
    %810 = vmatpush1.msra.mxu0 0.0
    %811 = vmatprep.subr.mxu0 0.0
    %812 = vmatpush1.msra.mxu0 0.0
    %813 = vmatprep.subr.mxu0 0.0
    %814 = vmatpush1.msra.mxu0 0.0
    %815 = vmatprep.subr.mxu0 0.0
    %816 = vmatpush1.msra.mxu0 0.0
    %817 = vmatprep.subr.mxu0 0.0
    %818 = vmatpush1.msra.mxu0 0.0
    %819 = vmatprep.mubr.f32.mxu0 0.0
    %820 = vmatmul.mubr.f32.gmra.mrb[0].mxu0 %v748
    %v821 = vpop.f32.mrb[0].mxu0
    %v822 = vadd.f32 0.0, %v821
    %v823 = vpop.f32.mrb[0].mxu0
    %824 = vmatprep.mubr.f32.mxu0 0.0
    %825 = vmatmul.mubr.f32.gmra.mrb[0].mxu0 %v751
    %v826 = vpop.f32.mrb[0].mxu0
    %v827 = vadd.f32 0.0, %v826
    %v828 = vpop.f32.mrb[0].mxu0
    %829 = vdwg.mxu0
    %v831 = vsel %vm192, %v822, 0
    %v834 = vsel %vm192, %v827, 0
    %836 = vmatprep.subr.mxu0 0.0
    %837 = vmatpush1.msra.mxu0 %v416
    %838 = vmatprep.subr.mxu0 0.0
    %839 = vmatpush1.msra.mxu0 0.0
    %840 = vmatprep.subr.mxu0 0.0
    %841 = vmatpush1.msra.mxu0 0.0
    %842 = vmatprep.subr.mxu0 0.0
    %843 = vmatpush1.msra.mxu0 0.0
    %844 = vmatprep.subr.mxu0 0.0
    %845 = vmatpush1.msra.mxu0 0.0
    %846 = vmatprep.subr.mxu0 0.0
    %847 = vmatpush1.msra.mxu0 0.0
    %848 = vmatprep.subr.mxu0 0.0
    %849 = vmatpush1.msra.mxu0 0.0
    %850 = vmatprep.subr.mxu0 0.0
    %851 = vmatpush1.msra.mxu0 0.0
    %852 = vmatprep.subr.mxu0 0.0
    %853 = vmatpush1.msra.mxu0 0.0
    %854 = vmatprep.subr.mxu0 0.0
    %855 = vmatpush1.msra.mxu0 0.0
    %856 = vmatprep.subr.mxu0 0.0
    %857 = vmatpush1.msra.mxu0 0.0
    %858 = vmatprep.subr.mxu0 0.0
    %859 = vmatpush1.msra.mxu0 0.0
    %860 = vmatprep.subr.mxu0 0.0
    %861 = vmatpush1.msra.mxu0 0.0
    %862 = vmatprep.subr.mxu0 0.0
    %863 = vmatpush1.msra.mxu0 0.0
    %864 = vmatprep.subr.mxu0 0.0
    %865 = vmatpush1.msra.mxu0 0.0
    %866 = vmatprep.subr.mxu0 0.0
    %867 = vmatpush1.msra.mxu0 0.0
    %868 = vmatprep.subr.mxu0 0.0
    %869 = vmatpush1.msra.mxu0 0.0
    %870 = vmatprep.subr.mxu0 0.0
    %871 = vmatpush1.msra.mxu0 0.0
    %872 = vmatprep.subr.mxu0 0.0
    %873 = vmatpush1.msra.mxu0 0.0
    %874 = vmatprep.subr.mxu0 0.0
    %875 = vmatpush1.msra.mxu0 0.0
    %876 = vmatprep.subr.mxu0 0.0
    %877 = vmatpush1.msra.mxu0 0.0
    %878 = vmatprep.subr.mxu0 0.0
    %879 = vmatpush1.msra.mxu0 0.0
    %880 = vmatprep.subr.mxu0 0.0
    %881 = vmatpush1.msra.mxu0 0.0
    %882 = vmatprep.subr.mxu0 0.0
    %883 = vmatpush1.msra.mxu0 0.0
    %884 = vmatprep.subr.mxu0 0.0
    %885 = vmatpush1.msra.mxu0 0.0
    %886 = vmatprep.subr.mxu0 0.0
    %887 = vmatpush1.msra.mxu0 0.0
    %888 = vmatprep.subr.mxu0 0.0
    %889 = vmatpush1.msra.mxu0 0.0
    %890 = vmatprep.subr.mxu0 0.0
    %891 = vmatpush1.msra.mxu0 0.0
    %892 = vmatprep.subr.mxu0 0.0
    %893 = vmatpush1.msra.mxu0 0.0
    %894 = vmatprep.subr.mxu0 0.0
    %895 = vmatpush1.msra.mxu0 0.0
    %896 = vmatprep.subr.mxu0 0.0
    %897 = vmatpush1.msra.mxu0 0.0
    %898 = vmatprep.subr.mxu0 0.0
    %899 = vmatpush1.msra.mxu0 0.0
    %900 = vmatprep.mubr.f32.mxu0 0.0
    %901 = vmatmul.mubr.f32.gmra.mrb[0].mxu0 %v831
    %v902 = vpop.f32.mrb[0].mxu0
    %v903 = vadd.f32 0.0, %v902
    %v904 = vpop.f32.mrb[0].mxu0
    %905 = vmatprep.mubr.f32.mxu0 0.0
    %906 = vmatmul.mubr.f32.gmra.mrb[0].mxu0 %v834
    %v907 = vpop.f32.mrb[0].mxu0
    %v908 = vadd.f32 0.0, %v907
    %v909 = vpop.f32.mrb[0].mxu0
    %910 = vdwg.mxu0
    %v912 = vsel %vm192, %v617, 0
    %v915 = vsel %vm192, %v622, 0
    %917 = vmatprep.subr.mxu0 0.0
    %918 = vmatpush1.msra.mxu0 %v415
    %919 = vmatprep.subr.mxu0 0.0
    %920 = vmatpush1.msra.mxu0 0.0
    %921 = vmatprep.subr.mxu0 0.0
    %922 = vmatpush1.msra.mxu0 0.0
    %923 = vmatprep.subr.mxu0 0.0
    %924 = vmatpush1.msra.mxu0 0.0
    %925 = vmatprep.subr.mxu0 0.0
    %926 = vmatpush1.msra.mxu0 0.0
    %927 = vmatprep.subr.mxu0 0.0
    %928 = vmatpush1.msra.mxu0 0.0
    %929 = vmatprep.subr.mxu0 0.0
    %930 = vmatpush1.msra.mxu0 0.0
    %931 = vmatprep.subr.mxu0 0.0
    %932 = vmatpush1.msra.mxu0 0.0
    %933 = vmatprep.subr.mxu0 0.0
    %934 = vmatpush1.msra.mxu0 0.0
    %935 = vmatprep.subr.mxu0 0.0
    %936 = vmatpush1.msra.mxu0 0.0
    %937 = vmatprep.subr.mxu0 0.0
    %938 = vmatpush1.msra.mxu0 0.0
    %939 = vmatprep.subr.mxu0 0.0
    %940 = vmatpush1.msra.mxu0 0.0
    %941 = vmatprep.subr.mxu0 0.0
    %942 = vmatpush1.msra.mxu0 0.0
    %943 = vmatprep.subr.mxu0 0.0
    %944 = vmatpush1.msra.mxu0 0.0
    %945 = vmatprep.subr.mxu0 0.0
    %946 = vmatpush1.msra.mxu0 0.0
    %947 = vmatprep.subr.mxu0 0.0
    %948 = vmatpush1.msra.mxu0 0.0
    %949 = vmatprep.subr.mxu0 0.0
    %950 = vmatpush1.msra.mxu0 0.0
    %951 = vmatprep.subr.mxu0 0.0
    %952 = vmatpush1.msra.mxu0 0.0
    %953 = vmatprep.subr.mxu0 0.0
    %954 = vmatpush1.msra.mxu0 0.0
    %955 = vmatprep.subr.mxu0 0.0
    %956 = vmatpush1.msra.mxu0 0.0
    %957 = vmatprep.subr.mxu0 0.0
    %958 = vmatpush1.msra.mxu0 0.0
    %959 = vmatprep.subr.mxu0 0.0
    %960 = vmatpush1.msra.mxu0 0.0
    %961 = vmatprep.subr.mxu0 0.0
    %962 = vmatpush1.msra.mxu0 0.0
    %963 = vmatprep.subr.mxu0 0.0
    %964 = vmatpush1.msra.mxu0 0.0
    %965 = vmatprep.subr.mxu0 0.0
    %966 = vmatpush1.msra.mxu0 0.0
    %967 = vmatprep.subr.mxu0 0.0
    %968 = vmatpush1.msra.mxu0 0.0
    %969 = vmatprep.subr.mxu0 0.0
    %970 = vmatpush1.msra.mxu0 0.0
    %971 = vmatprep.subr.mxu0 0.0
    %972 = vmatpush1.msra.mxu0 0.0
    %973 = vmatprep.subr.mxu0 0.0
    %974 = vmatpush1.msra.mxu0 0.0
    %975 = vmatprep.subr.mxu0 0.0
    %976 = vmatpush1.msra.mxu0 0.0
    %977 = vmatprep.subr.mxu0 0.0
    %978 = vmatpush1.msra.mxu0 0.0
    %979 = vmatprep.subr.mxu0 0.0
    %980 = vmatpush1.msra.mxu0 0.0
    %981 = vmatprep.mubr.f32.mxu0 0.0
    %982 = vmatmul.mubr.f32.gmra.mrb[0].mxu0 %v912
    %v983 = vpop.f32.mrb[0].mxu0
    %v984 = vadd.f32 %v903, %v983
    %v985 = vpop.f32.mrb[0].mxu0
    %986 = vmatprep.mubr.f32.mxu0 0.0
    %987 = vmatmul.mubr.f32.gmra.mrb[0].mxu0 %v915
    %v988 = vpop.f32.mrb[0].mxu0
    %v989 = vadd.f32 %v908, %v988
    %v990 = vpop.f32.mrb[0].mxu0
    %991 = vdwg.mxu0
    %992 = vrot.lane.b32.xlu0 %v407, 112
    %v993 = vpop.permute.xlu0 %992
    %994 = vrot.lane.b32.xlu0 %v412, 112
    %v995 = vpop.permute.xlu0 %994
    %996 = vrot.lane.b32.xlu0 %v407, 80
    %v997 = vpop.permute.xlu0 %996
    %998 = vrot.lane.b32.xlu0 %v412, 80
    %v999 = vpop.permute.xlu0 %998
    %v1000 = vsel %vm192, %v993, 0
    %v1002 = vsel %vm192, %v995, 0
    %v1004 = vsel %vm192, %v997, 0
    %v1006 = vsel %vm192, %v999, 0
    %1008 = vmatprep.subr.mxu0 0.0
    %1009 = vmatpush1.xpose.msra.mxu0 %v1004
    %1010 = vmatprep.subr.mxu0 0.0
    %1011 = vmatpush1.xpose.msra.mxu0 %v1006
    %1012 = vmatprep.subr.mxu0 0.0
    %1013 = vmatpush1.xpose.msra.mxu0 0.0
    %1014 = vmatprep.subr.mxu0 0.0
    %1015 = vmatpush1.xpose.msra.mxu0 0.0
    %1016 = vmatprep.subr.mxu0 0.0
    %1017 = vmatpush1.xpose.msra.mxu0 0.0
    %1018 = vmatprep.subr.mxu0 0.0
    %1019 = vmatpush1.xpose.msra.mxu0 0.0
    %1020 = vmatprep.subr.mxu0 0.0
    %1021 = vmatpush1.xpose.msra.mxu0 0.0
    %1022 = vmatprep.subr.mxu0 0.0
    %1023 = vmatpush1.xpose.msra.mxu0 0.0
    %1024 = vmatprep.subr.mxu0 0.0
    %1025 = vmatpush1.xpose.msra.mxu0 0.0
    %1026 = vmatprep.subr.mxu0 0.0
    %1027 = vmatpush1.xpose.msra.mxu0 0.0
    %1028 = vmatprep.subr.mxu0 0.0
    %1029 = vmatpush1.xpose.msra.mxu0 0.0
    %1030 = vmatprep.subr.mxu0 0.0
    %1031 = vmatpush1.xpose.msra.mxu0 0.0
    %1032 = vmatprep.subr.mxu0 0.0
    %1033 = vmatpush1.xpose.msra.mxu0 0.0
    %1034 = vmatprep.subr.mxu0 0.0
    %1035 = vmatpush1.xpose.msra.mxu0 0.0
    %1036 = vmatprep.subr.mxu0 0.0
    %1037 = vmatpush1.xpose.msra.mxu0 0.0
    %1038 = vmatprep.subr.mxu0 0.0
    %1039 = vmatpush1.xpose.msra.mxu0 0.0
    %1040 = vmatprep.subr.mxu0 0.0
    %1041 = vmatpush1.xpose.msra.mxu0 0.0
    %1042 = vmatprep.subr.mxu0 0.0
    %1043 = vmatpush1.xpose.msra.mxu0 0.0
    %1044 = vmatprep.subr.mxu0 0.0
    %1045 = vmatpush1.xpose.msra.mxu0 0.0
    %1046 = vmatprep.subr.mxu0 0.0
    %1047 = vmatpush1.xpose.msra.mxu0 0.0
    %1048 = vmatprep.subr.mxu0 0.0
    %1049 = vmatpush1.xpose.msra.mxu0 0.0
    %1050 = vmatprep.subr.mxu0 0.0
    %1051 = vmatpush1.xpose.msra.mxu0 0.0
    %1052 = vmatprep.subr.mxu0 0.0
    %1053 = vmatpush1.xpose.msra.mxu0 0.0
    %1054 = vmatprep.subr.mxu0 0.0
    %1055 = vmatpush1.xpose.msra.mxu0 0.0
    %1056 = vmatprep.subr.mxu0 0.0
    %1057 = vmatpush1.xpose.msra.mxu0 0.0
    %1058 = vmatprep.subr.mxu0 0.0
    %1059 = vmatpush1.xpose.msra.mxu0 0.0
    %1060 = vmatprep.subr.mxu0 0.0
    %1061 = vmatpush1.xpose.msra.mxu0 0.0
    %1062 = vmatprep.subr.mxu0 0.0
    %1063 = vmatpush1.xpose.msra.mxu0 0.0
    %1064 = vmatprep.subr.mxu0 0.0
    %1065 = vmatpush1.xpose.msra.mxu0 0.0
    %1066 = vmatprep.subr.mxu0 0.0
    %1067 = vmatpush1.xpose.msra.mxu0 0.0
    %1068 = vmatprep.subr.mxu0 0.0
    %1069 = vmatpush1.xpose.msra.mxu0 0.0
    %1070 = vmatprep.subr.mxu0 0.0
    %1071 = vmatpush1.xpose.msra.mxu0 0.0
    %1072 = vmatprep.mubr.f32.mxu0 0.0
    %1073 = vmatmul.mubr.f32.gmra.mrb[0].mxu0 %v1000
    %v1074 = vpop.f32.mrb[0].mxu0
    %v1075 = vadd.f32 0.0, %v1074
    %v1076 = vpop.f32.mrb[0].mxu0
    %1077 = vmatprep.mubr.f32.mxu0 0.0
    %1078 = vmatmul.mubr.f32.gmra.mrb[0].mxu0 %v1002
    %v1079 = vpop.f32.mrb[0].mxu0
    %v1080 = vadd.f32 0.0, %v1079
    %v1081 = vpop.f32.mrb[0].mxu0
    %1082 = vdwg.mxu0
    %v1083 = vmul.f32 %v1075, 0.35355338
    %v1084 = vmul.f32 %v1080, 0.35355338
    %v1085 = vadd.f32 %v1083, %v274
    %v1086 = vadd.f32 %v1084, %v275
    %v1087 = vsel %vm512, %v1085, -inf
    %1088 = vmax.xlane.f32.xlu0 %v1087
    %v1089 = vpop.xlane.xlu0 %1088
    %v1090 = vsel %vm516, %v1086, -inf
    %1091 = vmax.xlane.f32.xlu0 %v1090
    %v1092 = vpop.xlane.xlu0 %1091
    %v1093 = vsub.f32 %v1085, %v1089
    %v1094 = vsub.f32 %v1086, %v1092
    %v1095 = vmul.f32 %v1093, 1.442695
    %v1096 = vpow.pop %v1095
    %v1097 = vmul.f32 %v1094, 1.442695
    %v1098 = vpow.pop %v1097
    %v1099 = vsel %vm512, %v1096, 0.0
    %1100 = vadd.xlane.f32.xlu0 %v1099
    %v1101 = vpop.xlane.xlu0 %1100
    %v1102 = vsel %vm516, %v1098, 0.0
    %1103 = vadd.xlane.f32.xlu0 %v1102
    %v1104 = vpop.xlane.xlu0 %1103
    %v1105 = vrcp.pop %v1101
    %v1106 = vmul.f32 %v1096, %v1105
    %v1107 = vrcp.pop %v1104
    %v1108 = vmul.f32 %v1098, %v1107
    %1109 = vrot.lane.b32.xlu0 %v407, 48
    %v1110 = vpop.permute.xlu0 %1109
    %1111 = vrot.lane.b32.xlu0 %v412, 48
    %v1112 = vpop.permute.xlu0 %1111
    %v1115 = vsel %vm512, %v1106, 0
    %v1118 = vsel %vm512, %v1108, 0
    %v1120 = vsel %vm547, %v1112, 0
    %1122 = vmatprep.subr.mxu0 0.0
    %1123 = vmatpush1.msra.mxu0 %v1110
    %1124 = vmatprep.subr.mxu0 0.0
    %1125 = vmatpush1.msra.mxu0 %v1120
    %1126 = vmatprep.subr.mxu0 0.0
    %1127 = vmatpush1.msra.mxu0 0.0
    %1128 = vmatprep.subr.mxu0 0.0
    %1129 = vmatpush1.msra.mxu0 0.0
    %1130 = vmatprep.subr.mxu0 0.0
    %1131 = vmatpush1.msra.mxu0 0.0
    %1132 = vmatprep.subr.mxu0 0.0
    %1133 = vmatpush1.msra.mxu0 0.0
    %1134 = vmatprep.subr.mxu0 0.0
    %1135 = vmatpush1.msra.mxu0 0.0
    %1136 = vmatprep.subr.mxu0 0.0
    %1137 = vmatpush1.msra.mxu0 0.0
    %1138 = vmatprep.subr.mxu0 0.0
    %1139 = vmatpush1.msra.mxu0 0.0
    %1140 = vmatprep.subr.mxu0 0.0
    %1141 = vmatpush1.msra.mxu0 0.0
    %1142 = vmatprep.subr.mxu0 0.0
    %1143 = vmatpush1.msra.mxu0 0.0
    %1144 = vmatprep.subr.mxu0 0.0
    %1145 = vmatpush1.msra.mxu0 0.0
    %1146 = vmatprep.subr.mxu0 0.0
    %1147 = vmatpush1.msra.mxu0 0.0
    %1148 = vmatprep.subr.mxu0 0.0
    %1149 = vmatpush1.msra.mxu0 0.0
    %1150 = vmatprep.subr.mxu0 0.0
    %1151 = vmatpush1.msra.mxu0 0.0
    %1152 = vmatprep.subr.mxu0 0.0
    %1153 = vmatpush1.msra.mxu0 0.0
    %1154 = vmatprep.subr.mxu0 0.0
    %1155 = vmatpush1.msra.mxu0 0.0
    %1156 = vmatprep.subr.mxu0 0.0
    %1157 = vmatpush1.msra.mxu0 0.0
    %1158 = vmatprep.subr.mxu0 0.0
    %1159 = vmatpush1.msra.mxu0 0.0
    %1160 = vmatprep.subr.mxu0 0.0
    %1161 = vmatpush1.msra.mxu0 0.0
    %1162 = vmatprep.subr.mxu0 0.0
    %1163 = vmatpush1.msra.mxu0 0.0
    %1164 = vmatprep.subr.mxu0 0.0
    %1165 = vmatpush1.msra.mxu0 0.0
    %1166 = vmatprep.subr.mxu0 0.0
    %1167 = vmatpush1.msra.mxu0 0.0
    %1168 = vmatprep.subr.mxu0 0.0
    %1169 = vmatpush1.msra.mxu0 0.0
    %1170 = vmatprep.subr.mxu0 0.0
    %1171 = vmatpush1.msra.mxu0 0.0
    %1172 = vmatprep.subr.mxu0 0.0
    %1173 = vmatpush1.msra.mxu0 0.0
    %1174 = vmatprep.subr.mxu0 0.0
    %1175 = vmatpush1.msra.mxu0 0.0
    %1176 = vmatprep.subr.mxu0 0.0
    %1177 = vmatpush1.msra.mxu0 0.0
    %1178 = vmatprep.subr.mxu0 0.0
    %1179 = vmatpush1.msra.mxu0 0.0
    %1180 = vmatprep.subr.mxu0 0.0
    %1181 = vmatpush1.msra.mxu0 0.0
    %1182 = vmatprep.subr.mxu0 0.0
    %1183 = vmatpush1.msra.mxu0 0.0
    %1184 = vmatprep.subr.mxu0 0.0
    %1185 = vmatpush1.msra.mxu0 0.0
    %1186 = vmatprep.mubr.f32.mxu0 0.0
    %1187 = vmatmul.mubr.f32.gmra.mrb[0].mxu0 %v1115
    %v1188 = vpop.f32.mrb[0].mxu0
    %v1189 = vadd.f32 0.0, %v1188
    %v1190 = vpop.f32.mrb[0].mxu0
    %1191 = vmatprep.mubr.f32.mxu0 0.0
    %1192 = vmatmul.mubr.f32.gmra.mrb[0].mxu0 %v1118
    %v1193 = vpop.f32.mrb[0].mxu0
    %v1194 = vadd.f32 0.0, %v1193
    %v1195 = vpop.f32.mrb[0].mxu0
    %1196 = vdwg.mxu0
    %v1198 = vsel %vm192, %v1189, 0
    %v1201 = vsel %vm192, %v1194, 0
    %1203 = vmatprep.subr.mxu0 0.0
    %1204 = vmatpush1.msra.mxu0 %v417
    %1205 = vmatprep.subr.mxu0 0.0
    %1206 = vmatpush1.msra.mxu0 0.0
    %1207 = vmatprep.subr.mxu0 0.0
    %1208 = vmatpush1.msra.mxu0 0.0
    %1209 = vmatprep.subr.mxu0 0.0
    %1210 = vmatpush1.msra.mxu0 0.0
    %1211 = vmatprep.subr.mxu0 0.0
    %1212 = vmatpush1.msra.mxu0 0.0
    %1213 = vmatprep.subr.mxu0 0.0
    %1214 = vmatpush1.msra.mxu0 0.0
    %1215 = vmatprep.subr.mxu0 0.0
    %1216 = vmatpush1.msra.mxu0 0.0
    %1217 = vmatprep.subr.mxu0 0.0
    %1218 = vmatpush1.msra.mxu0 0.0
    %1219 = vmatprep.subr.mxu0 0.0
    %1220 = vmatpush1.msra.mxu0 0.0
    %1221 = vmatprep.subr.mxu0 0.0
    %1222 = vmatpush1.msra.mxu0 0.0
    %1223 = vmatprep.subr.mxu0 0.0
    %1224 = vmatpush1.msra.mxu0 0.0
    %1225 = vmatprep.subr.mxu0 0.0
    %1226 = vmatpush1.msra.mxu0 0.0
    %1227 = vmatprep.subr.mxu0 0.0
    %1228 = vmatpush1.msra.mxu0 0.0
    %1229 = vmatprep.subr.mxu0 0.0
    %1230 = vmatpush1.msra.mxu0 0.0
    %1231 = vmatprep.subr.mxu0 0.0
    %1232 = vmatpush1.msra.mxu0 0.0
    %1233 = vmatprep.subr.mxu0 0.0
    %1234 = vmatpush1.msra.mxu0 0.0
    %1235 = vmatprep.subr.mxu0 0.0
    %1236 = vmatpush1.msra.mxu0 0.0
    %1237 = vmatprep.subr.mxu0 0.0
    %1238 = vmatpush1.msra.mxu0 0.0
    %1239 = vmatprep.subr.mxu0 0.0
    %1240 = vmatpush1.msra.mxu0 0.0
    %1241 = vmatprep.subr.mxu0 0.0
    %1242 = vmatpush1.msra.mxu0 0.0
    %1243 = vmatprep.subr.mxu0 0.0
    %1244 = vmatpush1.msra.mxu0 0.0
    %1245 = vmatprep.subr.mxu0 0.0
    %1246 = vmatpush1.msra.mxu0 0.0
    %1247 = vmatprep.subr.mxu0 0.0
    %1248 = vmatpush1.msra.mxu0 0.0
    %1249 = vmatprep.subr.mxu0 0.0
    %1250 = vmatpush1.msra.mxu0 0.0
    %1251 = vmatprep.subr.mxu0 0.0
    %1252 = vmatpush1.msra.mxu0 0.0
    %1253 = vmatprep.subr.mxu0 0.0
    %1254 = vmatpush1.msra.mxu0 0.0
    %1255 = vmatprep.subr.mxu0 0.0
    %1256 = vmatpush1.msra.mxu0 0.0
    %1257 = vmatprep.subr.mxu0 0.0
    %1258 = vmatpush1.msra.mxu0 0.0
    %1259 = vmatprep.subr.mxu0 0.0
    %1260 = vmatpush1.msra.mxu0 0.0
    %1261 = vmatprep.subr.mxu0 0.0
    %1262 = vmatpush1.msra.mxu0 0.0
    %1263 = vmatprep.subr.mxu0 0.0
    %1264 = vmatpush1.msra.mxu0 0.0
    %1265 = vmatprep.subr.mxu0 0.0
    %1266 = vmatpush1.msra.mxu0 0.0
    %1267 = vmatprep.mubr.f32.mxu0 0.0
    %1268 = vmatmul.mubr.f32.gmra.mrb[0].mxu0 %v1198
    %v1269 = vpop.f32.mrb[0].mxu0
    %v1270 = vadd.f32 0.0, %v1269
    %v1271 = vpop.f32.mrb[0].mxu0
    %1272 = vmatprep.mubr.f32.mxu0 0.0
    %1273 = vmatmul.mubr.f32.gmra.mrb[0].mxu0 %v1201
    %v1274 = vpop.f32.mrb[0].mxu0
    %v1275 = vadd.f32 0.0, %v1274
    %v1276 = vpop.f32.mrb[0].mxu0
    %1277 = vdwg.mxu0
    %v1278 = vadd.f32 %v984, %v1270
    %v1279 = vadd.f32 %v989, %v1275
    %1280 = vrot.lane.b32.xlu0 %v407, 104
    %v1281 = vpop.permute.xlu0 %1280
    %1282 = vrot.lane.b32.xlu0 %v412, 104
    %v1283 = vpop.permute.xlu0 %1282
    %1284 = vrot.lane.b32.xlu0 %v407, 72
    %v1285 = vpop.permute.xlu0 %1284
    %1286 = vrot.lane.b32.xlu0 %v412, 72
    %v1287 = vpop.permute.xlu0 %1286
    %v1288 = vsel %vm192, %v1281, 0
    %v1290 = vsel %vm192, %v1283, 0
    %v1292 = vsel %vm192, %v1285, 0
    %v1294 = vsel %vm192, %v1287, 0
    %1296 = vmatprep.subr.mxu0 0.0
    %1297 = vmatpush1.xpose.msra.mxu0 %v1292
    %1298 = vmatprep.subr.mxu0 0.0
    %1299 = vmatpush1.xpose.msra.mxu0 %v1294
    %1300 = vmatprep.subr.mxu0 0.0
    %1301 = vmatpush1.xpose.msra.mxu0 0.0
    %1302 = vmatprep.subr.mxu0 0.0
    %1303 = vmatpush1.xpose.msra.mxu0 0.0
    %1304 = vmatprep.subr.mxu0 0.0
    %1305 = vmatpush1.xpose.msra.mxu0 0.0
    %1306 = vmatprep.subr.mxu0 0.0
    %1307 = vmatpush1.xpose.msra.mxu0 0.0
    %1308 = vmatprep.subr.mxu0 0.0
    %1309 = vmatpush1.xpose.msra.mxu0 0.0
    %1310 = vmatprep.subr.mxu0 0.0
    %1311 = vmatpush1.xpose.msra.mxu0 0.0
    %1312 = vmatprep.subr.mxu0 0.0
    %1313 = vmatpush1.xpose.msra.mxu0 0.0
    %1314 = vmatprep.subr.mxu0 0.0
    %1315 = vmatpush1.xpose.msra.mxu0 0.0
    %1316 = vmatprep.subr.mxu0 0.0
    %1317 = vmatpush1.xpose.msra.mxu0 0.0
    %1318 = vmatprep.subr.mxu0 0.0
    %1319 = vmatpush1.xpose.msra.mxu0 0.0
    %1320 = vmatprep.subr.mxu0 0.0
    %1321 = vmatpush1.xpose.msra.mxu0 0.0
    %1322 = vmatprep.subr.mxu0 0.0
    %1323 = vmatpush1.xpose.msra.mxu0 0.0
    %1324 = vmatprep.subr.mxu0 0.0
    %1325 = vmatpush1.xpose.msra.mxu0 0.0
    %1326 = vmatprep.subr.mxu0 0.0
    %1327 = vmatpush1.xpose.msra.mxu0 0.0
    %1328 = vmatprep.subr.mxu0 0.0
    %1329 = vmatpush1.xpose.msra.mxu0 0.0
    %1330 = vmatprep.subr.mxu0 0.0
    %1331 = vmatpush1.xpose.msra.mxu0 0.0
    %1332 = vmatprep.subr.mxu0 0.0
    %1333 = vmatpush1.xpose.msra.mxu0 0.0
    %1334 = vmatprep.subr.mxu0 0.0
    %1335 = vmatpush1.xpose.msra.mxu0 0.0
    %1336 = vmatprep.subr.mxu0 0.0
    %1337 = vmatpush1.xpose.msra.mxu0 0.0
    %1338 = vmatprep.subr.mxu0 0.0
    %1339 = vmatpush1.xpose.msra.mxu0 0.0
    %1340 = vmatprep.subr.mxu0 0.0
    %1341 = vmatpush1.xpose.msra.mxu0 0.0
    %1342 = vmatprep.subr.mxu0 0.0
    %1343 = vmatpush1.xpose.msra.mxu0 0.0
    %1344 = vmatprep.subr.mxu0 0.0
    %1345 = vmatpush1.xpose.msra.mxu0 0.0
    %1346 = vmatprep.subr.mxu0 0.0
    %1347 = vmatpush1.xpose.msra.mxu0 0.0
    %1348 = vmatprep.subr.mxu0 0.0
    %1349 = vmatpush1.xpose.msra.mxu0 0.0
    %1350 = vmatprep.subr.mxu0 0.0
    %1351 = vmatpush1.xpose.msra.mxu0 0.0
    %1352 = vmatprep.subr.mxu0 0.0
    %1353 = vmatpush1.xpose.msra.mxu0 0.0
    %1354 = vmatprep.subr.mxu0 0.0
    %1355 = vmatpush1.xpose.msra.mxu0 0.0
    %1356 = vmatprep.subr.mxu0 0.0
    %1357 = vmatpush1.xpose.msra.mxu0 0.0
    %1358 = vmatprep.subr.mxu0 0.0
    %1359 = vmatpush1.xpose.msra.mxu0 0.0
    %1360 = vmatprep.mubr.f32.mxu0 0.0
    %1361 = vmatmul.mubr.f32.gmra.mrb[0].mxu0 %v1288
    %v1362 = vpop.f32.mrb[0].mxu0
    %v1363 = vadd.f32 0.0, %v1362
    %v1364 = vpop.f32.mrb[0].mxu0
    %1365 = vmatprep.mubr.f32.mxu0 0.0
    %1366 = vmatmul.mubr.f32.gmra.mrb[0].mxu0 %v1290
    %v1367 = vpop.f32.mrb[0].mxu0
    %v1368 = vadd.f32 0.0, %v1367
    %v1369 = vpop.f32.mrb[0].mxu0
    %1370 = vdwg.mxu0
    %v1371 = vmul.f32 %v1363, 0.35355338
    %v1372 = vmul.f32 %v1368, 0.35355338
    %v1373 = vadd.f32 %v1371, %v274
    %v1374 = vadd.f32 %v1372, %v275
    %v1375 = vsel %vm512, %v1373, -inf
    %1376 = vmax.xlane.f32.xlu0 %v1375
    %v1377 = vpop.xlane.xlu0 %1376
    %v1378 = vsel %vm516, %v1374, -inf
    %1379 = vmax.xlane.f32.xlu0 %v1378
    %v1380 = vpop.xlane.xlu0 %1379
    %v1381 = vsub.f32 %v1373, %v1377
    %v1382 = vsub.f32 %v1374, %v1380
    %v1383 = vmul.f32 %v1381, 1.442695
    %v1384 = vpow.pop %v1383
    %v1385 = vmul.f32 %v1382, 1.442695
    %v1386 = vpow.pop %v1385
    %v1387 = vsel %vm512, %v1384, 0.0
    %1388 = vadd.xlane.f32.xlu0 %v1387
    %v1389 = vpop.xlane.xlu0 %1388
    %v1390 = vsel %vm516, %v1386, 0.0
    %1391 = vadd.xlane.f32.xlu0 %v1390
    %v1392 = vpop.xlane.xlu0 %1391
    %v1393 = vrcp.pop %v1389
    %v1394 = vmul.f32 %v1384, %v1393
    %v1395 = vrcp.pop %v1392
    %v1396 = vmul.f32 %v1386, %v1395
    %1397 = vrot.lane.b32.xlu0 %v407, 40
    %v1398 = vpop.permute.xlu0 %1397
    %1399 = vrot.lane.b32.xlu0 %v412, 40
    %v1400 = vpop.permute.xlu0 %1399
    %v1403 = vsel %vm512, %v1394, 0
    %v1406 = vsel %vm512, %v1396, 0
    %v1408 = vsel %vm547, %v1400, 0
    %1410 = vmatprep.subr.mxu0 0.0
    %1411 = vmatpush1.msra.mxu0 %v1398
    %1412 = vmatprep.subr.mxu0 0.0
    %1413 = vmatpush1.msra.mxu0 %v1408
    %1414 = vmatprep.subr.mxu0 0.0
    %1415 = vmatpush1.msra.mxu0 0.0
    %1416 = vmatprep.subr.mxu0 0.0
    %1417 = vmatpush1.msra.mxu0 0.0
    %1418 = vmatprep.subr.mxu0 0.0
    %1419 = vmatpush1.msra.mxu0 0.0
    %1420 = vmatprep.subr.mxu0 0.0
    %1421 = vmatpush1.msra.mxu0 0.0
    %1422 = vmatprep.subr.mxu0 0.0
    %1423 = vmatpush1.msra.mxu0 0.0
    %1424 = vmatprep.subr.mxu0 0.0
    %1425 = vmatpush1.msra.mxu0 0.0
    %1426 = vmatprep.subr.mxu0 0.0
    %1427 = vmatpush1.msra.mxu0 0.0
    %1428 = vmatprep.subr.mxu0 0.0
    %1429 = vmatpush1.msra.mxu0 0.0
    %1430 = vmatprep.subr.mxu0 0.0
    %1431 = vmatpush1.msra.mxu0 0.0
    %1432 = vmatprep.subr.mxu0 0.0
    %1433 = vmatpush1.msra.mxu0 0.0
    %1434 = vmatprep.subr.mxu0 0.0
    %1435 = vmatpush1.msra.mxu0 0.0
    %1436 = vmatprep.subr.mxu0 0.0
    %1437 = vmatpush1.msra.mxu0 0.0
    %1438 = vmatprep.subr.mxu0 0.0
    %1439 = vmatpush1.msra.mxu0 0.0
    %1440 = vmatprep.subr.mxu0 0.0
    %1441 = vmatpush1.msra.mxu0 0.0
    %1442 = vmatprep.subr.mxu0 0.0
    %1443 = vmatpush1.msra.mxu0 0.0
    %1444 = vmatprep.subr.mxu0 0.0
    %1445 = vmatpush1.msra.mxu0 0.0
    %1446 = vmatprep.subr.mxu0 0.0
    %1447 = vmatpush1.msra.mxu0 0.0
    %1448 = vmatprep.subr.mxu0 0.0
    %1449 = vmatpush1.msra.mxu0 0.0
    %1450 = vmatprep.subr.mxu0 0.0
    %1451 = vmatpush1.msra.mxu0 0.0
    %1452 = vmatprep.subr.mxu0 0.0
    %1453 = vmatpush1.msra.mxu0 0.0
    %1454 = vmatprep.subr.mxu0 0.0
    %1455 = vmatpush1.msra.mxu0 0.0
    %1456 = vmatprep.subr.mxu0 0.0
    %1457 = vmatpush1.msra.mxu0 0.0
    %1458 = vmatprep.subr.mxu0 0.0
    %1459 = vmatpush1.msra.mxu0 0.0
    %1460 = vmatprep.subr.mxu0 0.0
    %1461 = vmatpush1.msra.mxu0 0.0
    %1462 = vmatprep.subr.mxu0 0.0
    %1463 = vmatpush1.msra.mxu0 0.0
    %1464 = vmatprep.subr.mxu0 0.0
    %1465 = vmatpush1.msra.mxu0 0.0
    %1466 = vmatprep.subr.mxu0 0.0
    %1467 = vmatpush1.msra.mxu0 0.0
    %1468 = vmatprep.subr.mxu0 0.0
    %1469 = vmatpush1.msra.mxu0 0.0
    %1470 = vmatprep.subr.mxu0 0.0
    %1471 = vmatpush1.msra.mxu0 0.0
    %1472 = vmatprep.subr.mxu0 0.0
    %1473 = vmatpush1.msra.mxu0 0.0
    %1474 = vmatprep.mubr.f32.mxu0 0.0
    %1475 = vmatmul.mubr.f32.gmra.mrb[0].mxu0 %v1403
    %v1476 = vpop.f32.mrb[0].mxu0
    %v1477 = vadd.f32 0.0, %v1476
    %v1478 = vpop.f32.mrb[0].mxu0
    %1479 = vmatprep.mubr.f32.mxu0 0.0
    %1480 = vmatmul.mubr.f32.gmra.mrb[0].mxu0 %v1406
    %v1481 = vpop.f32.mrb[0].mxu0
    %v1482 = vadd.f32 0.0, %v1481
    %v1483 = vpop.f32.mrb[0].mxu0
    %1484 = vdwg.mxu0
    %v1486 = vsel %vm192, %v1477, 0
    %v1489 = vsel %vm192, %v1482, 0
    %1491 = vmatprep.subr.mxu0 0.0
    %1492 = vmatpush1.msra.mxu0 %v418
    %1493 = vmatprep.subr.mxu0 0.0
    %1494 = vmatpush1.msra.mxu0 0.0
    %1495 = vmatprep.subr.mxu0 0.0
    %1496 = vmatpush1.msra.mxu0 0.0
    %1497 = vmatprep.subr.mxu0 0.0
    %1498 = vmatpush1.msra.mxu0 0.0
    %1499 = vmatprep.subr.mxu0 0.0
    %1500 = vmatpush1.msra.mxu0 0.0
    %1501 = vmatprep.subr.mxu0 0.0
    %1502 = vmatpush1.msra.mxu0 0.0
    %1503 = vmatprep.subr.mxu0 0.0
    %1504 = vmatpush1.msra.mxu0 0.0
    %1505 = vmatprep.subr.mxu0 0.0
    %1506 = vmatpush1.msra.mxu0 0.0
    %1507 = vmatprep.subr.mxu0 0.0
    %1508 = vmatpush1.msra.mxu0 0.0
    %1509 = vmatprep.subr.mxu0 0.0
    %1510 = vmatpush1.msra.mxu0 0.0
    %1511 = vmatprep.subr.mxu0 0.0
    %1512 = vmatpush1.msra.mxu0 0.0
    %1513 = vmatprep.subr.mxu0 0.0
    %1514 = vmatpush1.msra.mxu0 0.0
    %1515 = vmatprep.subr.mxu0 0.0
    %1516 = vmatpush1.msra.mxu0 0.0
    %1517 = vmatprep.subr.mxu0 0.0
    %1518 = vmatpush1.msra.mxu0 0.0
    %1519 = vmatprep.subr.mxu0 0.0
    %1520 = vmatpush1.msra.mxu0 0.0
    %1521 = vmatprep.subr.mxu0 0.0
    %1522 = vmatpush1.msra.mxu0 0.0
    %1523 = vmatprep.subr.mxu0 0.0
    %1524 = vmatpush1.msra.mxu0 0.0
    %1525 = vmatprep.subr.mxu0 0.0
    %1526 = vmatpush1.msra.mxu0 0.0
    %1527 = vmatprep.subr.mxu0 0.0
    %1528 = vmatpush1.msra.mxu0 0.0
    %1529 = vmatprep.subr.mxu0 0.0
    %1530 = vmatpush1.msra.mxu0 0.0
    %1531 = vmatprep.subr.mxu0 0.0
    %1532 = vmatpush1.msra.mxu0 0.0
    %1533 = vmatprep.subr.mxu0 0.0
    %1534 = vmatpush1.msra.mxu0 0.0
    %1535 = vmatprep.subr.mxu0 0.0
    %1536 = vmatpush1.msra.mxu0 0.0
    %1537 = vmatprep.subr.mxu0 0.0
    %1538 = vmatpush1.msra.mxu0 0.0
    %1539 = vmatprep.subr.mxu0 0.0
    %1540 = vmatpush1.msra.mxu0 0.0
    %1541 = vmatprep.subr.mxu0 0.0
    %1542 = vmatpush1.msra.mxu0 0.0
    %1543 = vmatprep.subr.mxu0 0.0
    %1544 = vmatpush1.msra.mxu0 0.0
    %1545 = vmatprep.subr.mxu0 0.0
    %1546 = vmatpush1.msra.mxu0 0.0
    %1547 = vmatprep.subr.mxu0 0.0
    %1548 = vmatpush1.msra.mxu0 0.0
    %1549 = vmatprep.subr.mxu0 0.0
    %1550 = vmatpush1.msra.mxu0 0.0
    %1551 = vmatprep.subr.mxu0 0.0
    %1552 = vmatpush1.msra.mxu0 0.0
    %1553 = vmatprep.subr.mxu0 0.0
    %1554 = vmatpush1.msra.mxu0 0.0
    %1555 = vmatprep.mubr.f32.mxu0 0.0
    %1556 = vmatmul.mubr.f32.gmra.mrb[0].mxu0 %v1486
    %v1557 = vpop.f32.mrb[0].mxu0
    %v1558 = vadd.f32 0.0, %v1557
    %v1559 = vpop.f32.mrb[0].mxu0
    %1560 = vmatprep.mubr.f32.mxu0 0.0
    %1561 = vmatmul.mubr.f32.gmra.mrb[0].mxu0 %v1489
    %v1562 = vpop.f32.mrb[0].mxu0
    %v1563 = vadd.f32 0.0, %v1562
    %v1564 = vpop.f32.mrb[0].mxu0
    %1565 = vdwg.mxu0
    %v1566 = vadd.f32 %v1278, %v1558
    %v1567 = vadd.f32 %v1279, %v1563
    %v1568 = vadd.f32 %v266, %v1566
    %v1569 = vadd.f32 %v271, %v1567
    %v1570 = vld [vmem:[%s11] sm:$0x1]
    %v1572 = vlaneseq
    %v1573 = vshrl.u32 %v1572, 7
    %v1574 = vsub.s32 0, %v1573
    %v1575 = vrot.slane %v1570, %v1574
    %v1577 = vadd.f32 %v1568, %v1575
    %v1578 = vadd.f32 %v1569, %v1575
    %v1579 = vld [vmem:[%s12] sm:$0x1]
    %v1580 = vld [vmem:[%s13] sm:$0x1]
    %v1581 = vsel %vm278, %v1577, 0.0
    %1582 = vadd.xlane.f32.xlu0 %v1581
    %v1583 = vpop.xlane.xlu0 %1582
    %v1584 = vsel %vm282, %v1578, 0.0
    %1585 = vadd.xlane.f32.xlu0 %v1584
    %v1586 = vpop.xlane.xlu0 %1585
    %v1587 = vmul.f32 %v1583, %v286
    %v1588 = vmul.f32 %v1586, %v286
    %v1589 = vsub.f32 %v1577, %v1587
    %v1590 = vsub.f32 %v1578, %v1588
    %v1591 = vmul.f32 %v1589, %v1589
    %v1592 = vmul.f32 %v1590, %v1590
    %v1593 = vsel %vm278, %v1591, 0.0
    %1594 = vadd.xlane.f32.xlu0 %v1593
    %v1595 = vpop.xlane.xlu0 %1594
    %v1596 = vsel %vm282, %v1592, 0.0
    %1597 = vadd.xlane.f32.xlu0 %v1596
    %v1598 = vpop.xlane.xlu0 %1597
    %v1599 = vmul.f32 %v1595, %v286
    %v1600 = vmul.f32 %v1598, %v286
    %v1601 = vadd.f32 %v1599, 1e-06
    %v1602 = vadd.f32 %v1600, 1e-06
    %v1603 = vrsqrt.pop %v1601
    %v1604 = vrsqrt.pop %v1602
    %v1605 = vmul.f32 %v1589, %v1603
    %v1606 = vmul.f32 %v1590, %v1604
    %v1608 = vlaneseq
    %v1609 = vshrl.u32 %v1608, 7
    %v1610 = vsub.s32 0, %v1609
    %v1611 = vrot.slane %v1579, %v1610
    %v1613 = vmul.f32 %v1605, %v1611
    %v1614 = vmul.f32 %v1606, %v1611
    %v1616 = vlaneseq
    %v1617 = vshrl.u32 %v1616, 7
    %v1618 = vsub.s32 0, %v1617
    %v1619 = vrot.slane %v1580, %v1618
    %v1621 = vadd.f32 %v1613, %v1619
    %v1622 = vadd.f32 %v1614, %v1619
    %v1623 = vld [vmem:[%s14] sm:$0xff]
    %v1624 = vld [vmem:[%s14 + $0x8] sm:$0xff]
    %v1625 = vld [vmem:[%s14 + $0x10] sm:$0xff]
    %v1626 = vld [vmem:[%s14 + $0x18] sm:$0xff]
    %v1627 = vld [vmem:[%s15] sm:$0x1]
    %v1629 = vlaneseq
    %v1630 = vshrl.u32 %v1629, 7
    %v1631 = vsub.s32 0, %v1630
    %v1632 = vrot.slane %v1627, %v1631
    %v1635 = vsel %vm278, %v1621, 0
    %v1638 = vsel %vm278, %v1622, 0
    %1640 = vmatprep.subr.mxu0 0.0
    %1641 = vmatpush1.msra.mxu0 %v1623
    %1642 = vmatprep.subr.mxu0 0.0
    %1643 = vmatpush1.msra.mxu0 %v1624
    %1644 = vmatprep.subr.mxu0 0.0
    %1645 = vmatpush1.msra.mxu0 %v1625
    %1646 = vmatprep.subr.mxu0 0.0
    %1647 = vmatpush1.msra.mxu0 %v1626
    %1648 = vmatprep.subr.mxu0 0.0
    %1649 = vmatpush1.msra.mxu0 0.0
    %1650 = vmatprep.subr.mxu0 0.0
    %1651 = vmatpush1.msra.mxu0 0.0
    %1652 = vmatprep.subr.mxu0 0.0
    %1653 = vmatpush1.msra.mxu0 0.0
    %1654 = vmatprep.subr.mxu0 0.0
    %1655 = vmatpush1.msra.mxu0 0.0
    %1656 = vmatprep.subr.mxu0 0.0
    %1657 = vmatpush1.msra.mxu0 0.0
    %1658 = vmatprep.subr.mxu0 0.0
    %1659 = vmatpush1.msra.mxu0 0.0
    %1660 = vmatprep.subr.mxu0 0.0
    %1661 = vmatpush1.msra.mxu0 0.0
    %1662 = vmatprep.subr.mxu0 0.0
    %1663 = vmatpush1.msra.mxu0 0.0
    %1664 = vmatprep.subr.mxu0 0.0
    %1665 = vmatpush1.msra.mxu0 0.0
    %1666 = vmatprep.subr.mxu0 0.0
    %1667 = vmatpush1.msra.mxu0 0.0
    %1668 = vmatprep.subr.mxu0 0.0
    %1669 = vmatpush1.msra.mxu0 0.0
    %1670 = vmatprep.subr.mxu0 0.0
    %1671 = vmatpush1.msra.mxu0 0.0
    %1672 = vmatprep.subr.mxu0 0.0
    %1673 = vmatpush1.msra.mxu0 0.0
    %1674 = vmatprep.subr.mxu0 0.0
    %1675 = vmatpush1.msra.mxu0 0.0
    %1676 = vmatprep.subr.mxu0 0.0
    %1677 = vmatpush1.msra.mxu0 0.0
    %1678 = vmatprep.subr.mxu0 0.0
    %1679 = vmatpush1.msra.mxu0 0.0
    %1680 = vmatprep.subr.mxu0 0.0
    %1681 = vmatpush1.msra.mxu0 0.0
    %1682 = vmatprep.subr.mxu0 0.0
    %1683 = vmatpush1.msra.mxu0 0.0
    %1684 = vmatprep.subr.mxu0 0.0
    %1685 = vmatpush1.msra.mxu0 0.0
    %1686 = vmatprep.subr.mxu0 0.0
    %1687 = vmatpush1.msra.mxu0 0.0
    %1688 = vmatprep.subr.mxu0 0.0
    %1689 = vmatpush1.msra.mxu0 0.0
    %1690 = vmatprep.subr.mxu0 0.0
    %1691 = vmatpush1.msra.mxu0 0.0
    %1692 = vmatprep.subr.mxu0 0.0
    %1693 = vmatpush1.msra.mxu0 0.0
    %1694 = vmatprep.subr.mxu0 0.0
    %1695 = vmatpush1.msra.mxu0 0.0
    %1696 = vmatprep.subr.mxu0 0.0
    %1697 = vmatpush1.msra.mxu0 0.0
    %1698 = vmatprep.subr.mxu0 0.0
    %1699 = vmatpush1.msra.mxu0 0.0
    %1700 = vmatprep.subr.mxu0 0.0
    %1701 = vmatpush1.msra.mxu0 0.0
    %1702 = vmatprep.subr.mxu0 0.0
    %1703 = vmatpush1.msra.mxu0 0.0
    %1704 = vmatprep.mubr.f32.mxu0 0.0
    %1705 = vmatmul.mubr.f32.gmra.mrb[0].mxu0 %v1635
    %v1706 = vpop.f32.mrb[0].mxu0
    %v1707 = vadd.f32 %v1632, %v1706
    %v1708 = vpop.f32.mrb[0].mxu0
    %1709 = vmatprep.mubr.f32.mxu0 0.0
    %1710 = vmatmul.mubr.f32.gmra.mrb[0].mxu0 %v1638
    %v1711 = vpop.f32.mrb[0].mxu0
    %v1712 = vadd.f32 %v1632, %v1711
    %v1713 = vpop.f32.mrb[0].mxu0
    %1714 = vdwg.mxu0
    %v1715 = vmul.f32 %v1707, 0.5
    %v1716 = vmul.f32 %v1712, 0.5
    %v1717 = vmul.f32 %v1707, 0.044715
    %v1718 = vmul.f32 %v1712, 0.044715
    %v1719 = vmul.f32 %v1717, %v1707
    %v1720 = vmul.f32 %v1718, %v1712
    %v1721 = vmul.f32 %v1719, %v1707
    %v1722 = vmul.f32 %v1720, %v1712
    %v1723 = vadd.f32 %v1707, %v1721
    %v1724 = vadd.f32 %v1712, %v1722
    %v1725 = vmul.f32 %v1723, 0.7978846
    %v1726 = vmul.f32 %v1724, 0.7978846
    %v1727 = vtanh.pop %v1725
    %v1728 = vtanh.pop %v1726
    %v1729 = vadd.f32 %v1727, 1.0
    %v1730 = vadd.f32 %v1728, 1.0
    %v1731 = vmul.f32 %v1715, %v1729
    %v1732 = vmul.f32 %v1716, %v1730
    %v1733 = vld [vmem:[%s16] sm:$0xff]
    %v1734 = vld [vmem:[%s16 + $0x8] sm:$0xff]
    %v1735 = vld [vmem:[%s16 + $0x10] sm:$0xff]
    %v1736 = vld [vmem:[%s16 + $0x18] sm:$0xff]
    %v1737 = vld [vmem:[%s16 + $0x20] sm:$0xff]
    %v1738 = vld [vmem:[%s16 + $0x28] sm:$0xff]
    %v1739 = vld [vmem:[%s16 + $0x30] sm:$0xff]
    %v1740 = vld [vmem:[%s16 + $0x38] sm:$0xff]
    %v1742 = vsel %vm114, %v1731, 0
    %v1745 = vsel %vm114, %v1732, 0
    %1747 = vmatprep.subr.mxu0 0.0
    %1748 = vmatpush1.msra.mxu0 %v1733
    %1749 = vmatprep.subr.mxu0 0.0
    %1750 = vmatpush1.msra.mxu0 %v1734
    %1751 = vmatprep.subr.mxu0 0.0
    %1752 = vmatpush1.msra.mxu0 %v1735
    %1753 = vmatprep.subr.mxu0 0.0
    %1754 = vmatpush1.msra.mxu0 %v1736
    %1755 = vmatprep.subr.mxu0 0.0
    %1756 = vmatpush1.msra.mxu0 %v1737
    %1757 = vmatprep.subr.mxu0 0.0
    %1758 = vmatpush1.msra.mxu0 %v1738
    %1759 = vmatprep.subr.mxu0 0.0
    %1760 = vmatpush1.msra.mxu0 %v1739
    %1761 = vmatprep.subr.mxu0 0.0
    %1762 = vmatpush1.msra.mxu0 %v1740
    %1763 = vmatprep.subr.mxu0 0.0
    %1764 = vmatpush1.msra.mxu0 0.0
    %1765 = vmatprep.subr.mxu0 0.0
    %1766 = vmatpush1.msra.mxu0 0.0
    %1767 = vmatprep.subr.mxu0 0.0
    %1768 = vmatpush1.msra.mxu0 0.0
    %1769 = vmatprep.subr.mxu0 0.0
    %1770 = vmatpush1.msra.mxu0 0.0
    %1771 = vmatprep.subr.mxu0 0.0
    %1772 = vmatpush1.msra.mxu0 0.0
    %1773 = vmatprep.subr.mxu0 0.0
    %1774 = vmatpush1.msra.mxu0 0.0
    %1775 = vmatprep.subr.mxu0 0.0
    %1776 = vmatpush1.msra.mxu0 0.0
    %1777 = vmatprep.subr.mxu0 0.0
    %1778 = vmatpush1.msra.mxu0 0.0
    %1779 = vmatprep.subr.mxu0 0.0
    %1780 = vmatpush1.msra.mxu0 0.0
    %1781 = vmatprep.subr.mxu0 0.0
    %1782 = vmatpush1.msra.mxu0 0.0
    %1783 = vmatprep.subr.mxu0 0.0
    %1784 = vmatpush1.msra.mxu0 0.0
    %1785 = vmatprep.subr.mxu0 0.0
    %1786 = vmatpush1.msra.mxu0 0.0
    %1787 = vmatprep.subr.mxu0 0.0
    %1788 = vmatpush1.msra.mxu0 0.0
    %1789 = vmatprep.subr.mxu0 0.0
    %1790 = vmatpush1.msra.mxu0 0.0
    %1791 = vmatprep.subr.mxu0 0.0
    %1792 = vmatpush1.msra.mxu0 0.0
    %1793 = vmatprep.subr.mxu0 0.0
    %1794 = vmatpush1.msra.mxu0 0.0
    %1795 = vmatprep.subr.mxu0 0.0
    %1796 = vmatpush1.msra.mxu0 0.0
    %1797 = vmatprep.subr.mxu0 0.0
    %1798 = vmatpush1.msra.mxu0 0.0
    %1799 = vmatprep.subr.mxu0 0.0
    %1800 = vmatpush1.msra.mxu0 0.0
    %1801 = vmatprep.subr.mxu0 0.0
    %1802 = vmatpush1.msra.mxu0 0.0
    %1803 = vmatprep.subr.mxu0 0.0
    %1804 = vmatpush1.msra.mxu0 0.0
    %1805 = vmatprep.subr.mxu0 0.0
    %1806 = vmatpush1.msra.mxu0 0.0
    %1807 = vmatprep.subr.mxu0 0.0
    %1808 = vmatpush1.msra.mxu0 0.0
    %1809 = vmatprep.subr.mxu0 0.0
    %1810 = vmatpush1.msra.mxu0 0.0
    %1811 = vmatprep.mubr.f32.mxu0 0.0
    %1812 = vmatmul.mubr.f32.gmra.mrb[0].mxu0 %v1742
    %v1813 = vpop.f32.mrb[0].mxu0
    %v1814 = vadd.f32 0.0, %v1813
    %v1815 = vpop.f32.mrb[0].mxu0
    %1816 = vmatprep.mubr.f32.mxu0 0.0
    %1817 = vmatmul.mubr.f32.gmra.mrb[0].mxu0 %v1745
    %v1818 = vpop.f32.mrb[0].mxu0
    %v1819 = vadd.f32 0.0, %v1818
    %v1820 = vpop.f32.mrb[0].mxu0
    %1821 = vdwg.mxu0
    %v1822 = vadd.f32 %v1577, %v1814
    %v1823 = vadd.f32 %v1578, %v1819
    %v1824 = vld [vmem:[%s17] sm:$0x1]
    %v1826 = vlaneseq
    %v1827 = vshrl.u32 %v1826, 7
    %v1828 = vsub.s32 0, %v1827
    %v1829 = vrot.slane %v1824, %v1828
    %v1831 = vadd.f32 %v1822, %v1829
    %v1832 = vadd.f32 %v1823, %v1829
    %s1833 = scalar_lea.vmem %s6, 1
    %v1834 = vld [vmem:[%s1833] sm:$0x1]
    %s1835 = scalar_lea.vmem %s7, 1
    %v1836 = vld [vmem:[%s1835] sm:$0x1]
    %v1837 = vsel %vm278, %v1831, 0.0
    %1838 = vadd.xlane.f32.xlu0 %v1837
    %v1839 = vpop.xlane.xlu0 %1838
    %v1840 = vsel %vm282, %v1832, 0.0
    %1841 = vadd.xlane.f32.xlu0 %v1840
    %v1842 = vpop.xlane.xlu0 %1841
    %v1843 = vmul.f32 %v1839, %v286
    %v1844 = vmul.f32 %v1842, %v286
    %v1845 = vsub.f32 %v1831, %v1843
    %v1846 = vsub.f32 %v1832, %v1844
    %v1847 = vmul.f32 %v1845, %v1845
    %v1848 = vmul.f32 %v1846, %v1846
    %v1849 = vsel %vm278, %v1847, 0.0
    %1850 = vadd.xlane.f32.xlu0 %v1849
    %v1851 = vpop.xlane.xlu0 %1850
    %v1852 = vsel %vm282, %v1848, 0.0
    %1853 = vadd.xlane.f32.xlu0 %v1852
    %v1854 = vpop.xlane.xlu0 %1853
    %v1855 = vmul.f32 %v1851, %v286
    %v1856 = vmul.f32 %v1854, %v286
    %v1857 = vadd.f32 %v1855, 1e-06
    %v1858 = vadd.f32 %v1856, 1e-06
    %v1859 = vrsqrt.pop %v1857
    %v1860 = vrsqrt.pop %v1858
    %v1861 = vmul.f32 %v1845, %v1859
    %v1862 = vmul.f32 %v1846, %v1860
    %v1864 = vlaneseq
    %v1865 = vshrl.u32 %v1864, 7
    %v1866 = vsub.s32 0, %v1865
    %v1867 = vrot.slane %v1834, %v1866
    %v1869 = vmul.f32 %v1861, %v1867
    %v1870 = vmul.f32 %v1862, %v1867
    %v1872 = vlaneseq
    %v1873 = vshrl.u32 %v1872, 7
    %v1874 = vsub.s32 0, %v1873
    %v1875 = vrot.slane %v1836, %v1874
    %v1877 = vadd.f32 %v1869, %v1875
    %v1878 = vadd.f32 %v1870, %v1875
    %s1879 = scalar_lea.vmem %s8, 32
    %v1880 = vld [vmem:[%s1879] sm:$0xff]
    %v1881 = vld [vmem:[%s1879 + $0x8] sm:$0xff]
    %v1882 = vld [vmem:[%s1879 + $0x10] sm:$0xff]
    %v1883 = vld [vmem:[%s1879 + $0x18] sm:$0xff]
    %s1884 = scalar_lea.vmem %s9, 1
    %v1885 = vld [vmem:[%s1884] sm:$0x1]
    %v1887 = vlaneseq
    %v1888 = vshrl.u32 %v1887, 7
    %v1889 = vsub.s32 0, %v1888
    %v1890 = vrot.slane %v1885, %v1889
    %v1893 = vsel %vm278, %v1877, 0
    %v1896 = vsel %vm278, %v1878, 0
    %1898 = vmatprep.subr.mxu0 0.0
    %1899 = vmatpush1.msra.mxu0 %v1880
    %1900 = vmatprep.subr.mxu0 0.0
    %1901 = vmatpush1.msra.mxu0 %v1881
    %1902 = vmatprep.subr.mxu0 0.0
    %1903 = vmatpush1.msra.mxu0 %v1882
    %1904 = vmatprep.subr.mxu0 0.0
    %1905 = vmatpush1.msra.mxu0 %v1883
    %1906 = vmatprep.subr.mxu0 0.0
    %1907 = vmatpush1.msra.mxu0 0.0
    %1908 = vmatprep.subr.mxu0 0.0
    %1909 = vmatpush1.msra.mxu0 0.0
    %1910 = vmatprep.subr.mxu0 0.0
    %1911 = vmatpush1.msra.mxu0 0.0
    %1912 = vmatprep.subr.mxu0 0.0
    %1913 = vmatpush1.msra.mxu0 0.0
    %1914 = vmatprep.subr.mxu0 0.0
    %1915 = vmatpush1.msra.mxu0 0.0
    %1916 = vmatprep.subr.mxu0 0.0
    %1917 = vmatpush1.msra.mxu0 0.0
    %1918 = vmatprep.subr.mxu0 0.0
    %1919 = vmatpush1.msra.mxu0 0.0
    %1920 = vmatprep.subr.mxu0 0.0
    %1921 = vmatpush1.msra.mxu0 0.0
    %1922 = vmatprep.subr.mxu0 0.0
    %1923 = vmatpush1.msra.mxu0 0.0
    %1924 = vmatprep.subr.mxu0 0.0
    %1925 = vmatpush1.msra.mxu0 0.0
    %1926 = vmatprep.subr.mxu0 0.0
    %1927 = vmatpush1.msra.mxu0 0.0
    %1928 = vmatprep.subr.mxu0 0.0
    %1929 = vmatpush1.msra.mxu0 0.0
    %1930 = vmatprep.subr.mxu0 0.0
    %1931 = vmatpush1.msra.mxu0 0.0
    %1932 = vmatprep.subr.mxu0 0.0
    %1933 = vmatpush1.msra.mxu0 0.0
    %1934 = vmatprep.subr.mxu0 0.0
    %1935 = vmatpush1.msra.mxu0 0.0
    %1936 = vmatprep.subr.mxu0 0.0
    %1937 = vmatpush1.msra.mxu0 0.0
    %1938 = vmatprep.subr.mxu0 0.0
    %1939 = vmatpush1.msra.mxu0 0.0
    %1940 = vmatprep.subr.mxu0 0.0
    %1941 = vmatpush1.msra.mxu0 0.0
    %1942 = vmatprep.subr.mxu0 0.0
    %1943 = vmatpush1.msra.mxu0 0.0
    %1944 = vmatprep.subr.mxu0 0.0
    %1945 = vmatpush1.msra.mxu0 0.0
    %1946 = vmatprep.subr.mxu0 0.0
    %1947 = vmatpush1.msra.mxu0 0.0
    %1948 = vmatprep.subr.mxu0 0.0
    %1949 = vmatpush1.msra.mxu0 0.0
    %1950 = vmatprep.subr.mxu0 0.0
    %1951 = vmatpush1.msra.mxu0 0.0
    %1952 = vmatprep.subr.mxu0 0.0
    %1953 = vmatpush1.msra.mxu0 0.0
    %1954 = vmatprep.subr.mxu0 0.0
    %1955 = vmatpush1.msra.mxu0 0.0
    %1956 = vmatprep.subr.mxu0 0.0
    %1957 = vmatpush1.msra.mxu0 0.0
    %1958 = vmatprep.subr.mxu0 0.0
    %1959 = vmatpush1.msra.mxu0 0.0
    %1960 = vmatprep.subr.mxu0 0.0
    %1961 = vmatpush1.msra.mxu0 0.0
    %1962 = vmatprep.mubr.f32.mxu0 0.0
    %1963 = vmatmul.mubr.f32.gmra.mrb[0].mxu0 %v1893
    %v1964 = vpop.f32.mrb[0].mxu0
    %v1965 = vadd.f32 %v1890, %v1964
    %v1966 = vpop.f32.mrb[0].mxu0
    %1967 = vmatprep.mubr.f32.mxu0 0.0
    %1968 = vmatmul.mubr.f32.gmra.mrb[0].mxu0 %v1896
    %v1969 = vpop.f32.mrb[0].mxu0
    %v1970 = vadd.f32 %v1890, %v1969
    %v1971 = vpop.f32.mrb[0].mxu0
    %1972 = vdwg.mxu0
    %s1973 = scalar_lea.vmem %s10, 32
    %v1974 = vld [vmem:[%s1973] sm:$0xff]
    %v1975 = vld [vmem:[%s1973 + $0x8] sm:$0xff]
    %v1976 = vld [vmem:[%s1973 + $0x10] sm:$0xff]
    %v1977 = vld [vmem:[%s1973 + $0x18] sm:$0xff]
    %1980 = vrot.lane.b32.xlu0 %v1965, 96
    %v1981 = vpop.permute.xlu0 %1980
    %1982 = vrot.lane.b32.xlu0 %v1970, 96
    %v1983 = vpop.permute.xlu0 %1982
    %v1984 = vsel %vm192, %v1965, 0
    %v1986 = vsel %vm192, %v1970, 0
    %v1988 = vsel %vm192, %v1981, 0
    %v1990 = vsel %vm192, %v1983, 0
    %1992 = vmatprep.subr.mxu0 0.0
    %1993 = vmatpush1.xpose.msra.mxu0 %v1988
    %1994 = vmatprep.subr.mxu0 0.0
    %1995 = vmatpush1.xpose.msra.mxu0 %v1990
    %1996 = vmatprep.subr.mxu0 0.0
    %1997 = vmatpush1.xpose.msra.mxu0 0.0
    %1998 = vmatprep.subr.mxu0 0.0
    %1999 = vmatpush1.xpose.msra.mxu0 0.0
    %2000 = vmatprep.subr.mxu0 0.0
    %2001 = vmatpush1.xpose.msra.mxu0 0.0
    %2002 = vmatprep.subr.mxu0 0.0
    %2003 = vmatpush1.xpose.msra.mxu0 0.0
    %2004 = vmatprep.subr.mxu0 0.0
    %2005 = vmatpush1.xpose.msra.mxu0 0.0
    %2006 = vmatprep.subr.mxu0 0.0
    %2007 = vmatpush1.xpose.msra.mxu0 0.0
    %2008 = vmatprep.subr.mxu0 0.0
    %2009 = vmatpush1.xpose.msra.mxu0 0.0
    %2010 = vmatprep.subr.mxu0 0.0
    %2011 = vmatpush1.xpose.msra.mxu0 0.0
    %2012 = vmatprep.subr.mxu0 0.0
    %2013 = vmatpush1.xpose.msra.mxu0 0.0
    %2014 = vmatprep.subr.mxu0 0.0
    %2015 = vmatpush1.xpose.msra.mxu0 0.0
    %2016 = vmatprep.subr.mxu0 0.0
    %2017 = vmatpush1.xpose.msra.mxu0 0.0
    %2018 = vmatprep.subr.mxu0 0.0
    %2019 = vmatpush1.xpose.msra.mxu0 0.0
    %2020 = vmatprep.subr.mxu0 0.0
    %2021 = vmatpush1.xpose.msra.mxu0 0.0
    %2022 = vmatprep.subr.mxu0 0.0
    %2023 = vmatpush1.xpose.msra.mxu0 0.0
    %2024 = vmatprep.subr.mxu0 0.0
    %2025 = vmatpush1.xpose.msra.mxu0 0.0
    %2026 = vmatprep.subr.mxu0 0.0
    %2027 = vmatpush1.xpose.msra.mxu0 0.0
    %2028 = vmatprep.subr.mxu0 0.0
    %2029 = vmatpush1.xpose.msra.mxu0 0.0
    %2030 = vmatprep.subr.mxu0 0.0
    %2031 = vmatpush1.xpose.msra.mxu0 0.0
    %2032 = vmatprep.subr.mxu0 0.0
    %2033 = vmatpush1.xpose.msra.mxu0 0.0
    %2034 = vmatprep.subr.mxu0 0.0
    %2035 = vmatpush1.xpose.msra.mxu0 0.0
    %2036 = vmatprep.subr.mxu0 0.0
    %2037 = vmatpush1.xpose.msra.mxu0 0.0
    %2038 = vmatprep.subr.mxu0 0.0
    %2039 = vmatpush1.xpose.msra.mxu0 0.0
    %2040 = vmatprep.subr.mxu0 0.0
    %2041 = vmatpush1.xpose.msra.mxu0 0.0
    %2042 = vmatprep.subr.mxu0 0.0
    %2043 = vmatpush1.xpose.msra.mxu0 0.0
    %2044 = vmatprep.subr.mxu0 0.0
    %2045 = vmatpush1.xpose.msra.mxu0 0.0
    %2046 = vmatprep.subr.mxu0 0.0
    %2047 = vmatpush1.xpose.msra.mxu0 0.0
    %2048 = vmatprep.subr.mxu0 0.0
    %2049 = vmatpush1.xpose.msra.mxu0 0.0
    %2050 = vmatprep.subr.mxu0 0.0
    %2051 = vmatpush1.xpose.msra.mxu0 0.0
    %2052 = vmatprep.subr.mxu0 0.0
    %2053 = vmatpush1.xpose.msra.mxu0 0.0
    %2054 = vmatprep.subr.mxu0 0.0
    %2055 = vmatpush1.xpose.msra.mxu0 0.0
    %2056 = vmatprep.mubr.f32.mxu0 0.0
    %2057 = vmatmul.mubr.f32.gmra.mrb[0].mxu0 %v1984
    %v2058 = vpop.f32.mrb[0].mxu0
    %v2059 = vadd.f32 0.0, %v2058
    %v2060 = vpop.f32.mrb[0].mxu0
    %2061 = vmatprep.mubr.f32.mxu0 0.0
    %2062 = vmatmul.mubr.f32.gmra.mrb[0].mxu0 %v1986
    %v2063 = vpop.f32.mrb[0].mxu0
    %v2064 = vadd.f32 0.0, %v2063
    %v2065 = vpop.f32.mrb[0].mxu0
    %2066 = vdwg.mxu0
    %v2067 = vmul.f32 %v2059, 0.35355338
    %v2068 = vmul.f32 %v2064, 0.35355338
    %v2069 = vadd.f32 %v2067, %v274
    %v2070 = vadd.f32 %v2068, %v275
    %v2071 = vsel %vm512, %v2069, -inf
    %2072 = vmax.xlane.f32.xlu0 %v2071
    %v2073 = vpop.xlane.xlu0 %2072
    %v2074 = vsel %vm516, %v2070, -inf
    %2075 = vmax.xlane.f32.xlu0 %v2074
    %v2076 = vpop.xlane.xlu0 %2075
    %v2077 = vsub.f32 %v2069, %v2073
    %v2078 = vsub.f32 %v2070, %v2076
    %v2079 = vmul.f32 %v2077, 1.442695
    %v2080 = vpow.pop %v2079
    %v2081 = vmul.f32 %v2078, 1.442695
    %v2082 = vpow.pop %v2081
    %v2083 = vsel %vm512, %v2080, 0.0
    %2084 = vadd.xlane.f32.xlu0 %v2083
    %v2085 = vpop.xlane.xlu0 %2084
    %v2086 = vsel %vm516, %v2082, 0.0
    %2087 = vadd.xlane.f32.xlu0 %v2086
    %v2088 = vpop.xlane.xlu0 %2087
    %v2089 = vrcp.pop %v2085
    %v2090 = vmul.f32 %v2080, %v2089
    %v2091 = vrcp.pop %v2088
    %v2092 = vmul.f32 %v2082, %v2091
    %2093 = vrot.lane.b32.xlu0 %v1965, 64
    %v2094 = vpop.permute.xlu0 %2093
    %2095 = vrot.lane.b32.xlu0 %v1970, 64
    %v2096 = vpop.permute.xlu0 %2095
    %v2099 = vsel %vm512, %v2090, 0
    %v2102 = vsel %vm512, %v2092, 0
    %v2104 = vsel %vm547, %v2096, 0
    %2106 = vmatprep.subr.mxu0 0.0
    %2107 = vmatpush1.msra.mxu0 %v2094
    %2108 = vmatprep.subr.mxu0 0.0
    %2109 = vmatpush1.msra.mxu0 %v2104
    %2110 = vmatprep.subr.mxu0 0.0
    %2111 = vmatpush1.msra.mxu0 0.0
    %2112 = vmatprep.subr.mxu0 0.0
    %2113 = vmatpush1.msra.mxu0 0.0
    %2114 = vmatprep.subr.mxu0 0.0
    %2115 = vmatpush1.msra.mxu0 0.0
    %2116 = vmatprep.subr.mxu0 0.0
    %2117 = vmatpush1.msra.mxu0 0.0
    %2118 = vmatprep.subr.mxu0 0.0
    %2119 = vmatpush1.msra.mxu0 0.0
    %2120 = vmatprep.subr.mxu0 0.0
    %2121 = vmatpush1.msra.mxu0 0.0
    %2122 = vmatprep.subr.mxu0 0.0
    %2123 = vmatpush1.msra.mxu0 0.0
    %2124 = vmatprep.subr.mxu0 0.0
    %2125 = vmatpush1.msra.mxu0 0.0
    %2126 = vmatprep.subr.mxu0 0.0
    %2127 = vmatpush1.msra.mxu0 0.0
    %2128 = vmatprep.subr.mxu0 0.0
    %2129 = vmatpush1.msra.mxu0 0.0
    %2130 = vmatprep.subr.mxu0 0.0
    %2131 = vmatpush1.msra.mxu0 0.0
    %2132 = vmatprep.subr.mxu0 0.0
    %2133 = vmatpush1.msra.mxu0 0.0
    %2134 = vmatprep.subr.mxu0 0.0
    %2135 = vmatpush1.msra.mxu0 0.0
    %2136 = vmatprep.subr.mxu0 0.0
    %2137 = vmatpush1.msra.mxu0 0.0
    %2138 = vmatprep.subr.mxu0 0.0
    %2139 = vmatpush1.msra.mxu0 0.0
    %2140 = vmatprep.subr.mxu0 0.0
    %2141 = vmatpush1.msra.mxu0 0.0
    %2142 = vmatprep.subr.mxu0 0.0
    %2143 = vmatpush1.msra.mxu0 0.0
    %2144 = vmatprep.subr.mxu0 0.0
    %2145 = vmatpush1.msra.mxu0 0.0
    %2146 = vmatprep.subr.mxu0 0.0
    %2147 = vmatpush1.msra.mxu0 0.0
    %2148 = vmatprep.subr.mxu0 0.0
    %2149 = vmatpush1.msra.mxu0 0.0
    %2150 = vmatprep.subr.mxu0 0.0
    %2151 = vmatpush1.msra.mxu0 0.0
    %2152 = vmatprep.subr.mxu0 0.0
    %2153 = vmatpush1.msra.mxu0 0.0
    %2154 = vmatprep.subr.mxu0 0.0
    %2155 = vmatpush1.msra.mxu0 0.0
    %2156 = vmatprep.subr.mxu0 0.0
    %2157 = vmatpush1.msra.mxu0 0.0
    %2158 = vmatprep.subr.mxu0 0.0
    %2159 = vmatpush1.msra.mxu0 0.0
    %2160 = vmatprep.subr.mxu0 0.0
    %2161 = vmatpush1.msra.mxu0 0.0
    %2162 = vmatprep.subr.mxu0 0.0
    %2163 = vmatpush1.msra.mxu0 0.0
    %2164 = vmatprep.subr.mxu0 0.0
    %2165 = vmatpush1.msra.mxu0 0.0
    %2166 = vmatprep.subr.mxu0 0.0
    %2167 = vmatpush1.msra.mxu0 0.0
    %2168 = vmatprep.subr.mxu0 0.0
    %2169 = vmatpush1.msra.mxu0 0.0
    %2170 = vmatprep.mubr.f32.mxu0 0.0
    %2171 = vmatmul.mubr.f32.gmra.mrb[0].mxu0 %v2099
    %v2172 = vpop.f32.mrb[0].mxu0
    %v2173 = vadd.f32 0.0, %v2172
    %v2174 = vpop.f32.mrb[0].mxu0
    %2175 = vmatprep.mubr.f32.mxu0 0.0
    %2176 = vmatmul.mubr.f32.gmra.mrb[0].mxu0 %v2102
    %v2177 = vpop.f32.mrb[0].mxu0
    %v2178 = vadd.f32 0.0, %v2177
    %v2179 = vpop.f32.mrb[0].mxu0
    %2180 = vdwg.mxu0
    %2181 = vrot.lane.b32.xlu0 %v1965, 120
    %v2182 = vpop.permute.xlu0 %2181
    %2183 = vrot.lane.b32.xlu0 %v1970, 120
    %v2184 = vpop.permute.xlu0 %2183
    %2185 = vrot.lane.b32.xlu0 %v1965, 88
    %v2186 = vpop.permute.xlu0 %2185
    %2187 = vrot.lane.b32.xlu0 %v1970, 88
    %v2188 = vpop.permute.xlu0 %2187
    %v2189 = vsel %vm192, %v2182, 0
    %v2191 = vsel %vm192, %v2184, 0
    %v2193 = vsel %vm192, %v2186, 0
    %v2195 = vsel %vm192, %v2188, 0
    %2197 = vmatprep.subr.mxu0 0.0
    %2198 = vmatpush1.xpose.msra.mxu0 %v2193
    %2199 = vmatprep.subr.mxu0 0.0
    %2200 = vmatpush1.xpose.msra.mxu0 %v2195
    %2201 = vmatprep.subr.mxu0 0.0
    %2202 = vmatpush1.xpose.msra.mxu0 0.0
    %2203 = vmatprep.subr.mxu0 0.0
    %2204 = vmatpush1.xpose.msra.mxu0 0.0
    %2205 = vmatprep.subr.mxu0 0.0
    %2206 = vmatpush1.xpose.msra.mxu0 0.0
    %2207 = vmatprep.subr.mxu0 0.0
    %2208 = vmatpush1.xpose.msra.mxu0 0.0
    %2209 = vmatprep.subr.mxu0 0.0
    %2210 = vmatpush1.xpose.msra.mxu0 0.0
    %2211 = vmatprep.subr.mxu0 0.0
    %2212 = vmatpush1.xpose.msra.mxu0 0.0
    %2213 = vmatprep.subr.mxu0 0.0
    %2214 = vmatpush1.xpose.msra.mxu0 0.0
    %2215 = vmatprep.subr.mxu0 0.0
    %2216 = vmatpush1.xpose.msra.mxu0 0.0
    %2217 = vmatprep.subr.mxu0 0.0
    %2218 = vmatpush1.xpose.msra.mxu0 0.0
    %2219 = vmatprep.subr.mxu0 0.0
    %2220 = vmatpush1.xpose.msra.mxu0 0.0
    %2221 = vmatprep.subr.mxu0 0.0
    %2222 = vmatpush1.xpose.msra.mxu0 0.0
    %2223 = vmatprep.subr.mxu0 0.0
    %2224 = vmatpush1.xpose.msra.mxu0 0.0
    %2225 = vmatprep.subr.mxu0 0.0
    %2226 = vmatpush1.xpose.msra.mxu0 0.0
    %2227 = vmatprep.subr.mxu0 0.0
    %2228 = vmatpush1.xpose.msra.mxu0 0.0
    %2229 = vmatprep.subr.mxu0 0.0
    %2230 = vmatpush1.xpose.msra.mxu0 0.0
    %2231 = vmatprep.subr.mxu0 0.0
    %2232 = vmatpush1.xpose.msra.mxu0 0.0
    %2233 = vmatprep.subr.mxu0 0.0
    %2234 = vmatpush1.xpose.msra.mxu0 0.0
    %2235 = vmatprep.subr.mxu0 0.0
    %2236 = vmatpush1.xpose.msra.mxu0 0.0
    %2237 = vmatprep.subr.mxu0 0.0
    %2238 = vmatpush1.xpose.msra.mxu0 0.0
    %2239 = vmatprep.subr.mxu0 0.0
    %2240 = vmatpush1.xpose.msra.mxu0 0.0
    %2241 = vmatprep.subr.mxu0 0.0
    %2242 = vmatpush1.xpose.msra.mxu0 0.0
    %2243 = vmatprep.subr.mxu0 0.0
    %2244 = vmatpush1.xpose.msra.mxu0 0.0
    %2245 = vmatprep.subr.mxu0 0.0
    %2246 = vmatpush1.xpose.msra.mxu0 0.0
    %2247 = vmatprep.subr.mxu0 0.0
    %2248 = vmatpush1.xpose.msra.mxu0 0.0
    %2249 = vmatprep.subr.mxu0 0.0
    %2250 = vmatpush1.xpose.msra.mxu0 0.0
    %2251 = vmatprep.subr.mxu0 0.0
    %2252 = vmatpush1.xpose.msra.mxu0 0.0
    %2253 = vmatprep.subr.mxu0 0.0
    %2254 = vmatpush1.xpose.msra.mxu0 0.0
    %2255 = vmatprep.subr.mxu0 0.0
    %2256 = vmatpush1.xpose.msra.mxu0 0.0
    %2257 = vmatprep.subr.mxu0 0.0
    %2258 = vmatpush1.xpose.msra.mxu0 0.0
    %2259 = vmatprep.subr.mxu0 0.0
    %2260 = vmatpush1.xpose.msra.mxu0 0.0
    %2261 = vmatprep.mubr.f32.mxu0 0.0
    %2262 = vmatmul.mubr.f32.gmra.mrb[0].mxu0 %v2189
    %v2263 = vpop.f32.mrb[0].mxu0
    %v2264 = vadd.f32 0.0, %v2263
    %v2265 = vpop.f32.mrb[0].mxu0
    %2266 = vmatprep.mubr.f32.mxu0 0.0
    %2267 = vmatmul.mubr.f32.gmra.mrb[0].mxu0 %v2191
    %v2268 = vpop.f32.mrb[0].mxu0
    %v2269 = vadd.f32 0.0, %v2268
    %v2270 = vpop.f32.mrb[0].mxu0
    %2271 = vdwg.mxu0
    %v2272 = vmul.f32 %v2264, 0.35355338
    %v2273 = vmul.f32 %v2269, 0.35355338
    %v2274 = vadd.f32 %v2272, %v274
    %v2275 = vadd.f32 %v2273, %v275
    %v2276 = vsel %vm512, %v2274, -inf
    %2277 = vmax.xlane.f32.xlu0 %v2276
    %v2278 = vpop.xlane.xlu0 %2277
    %v2279 = vsel %vm516, %v2275, -inf
    %2280 = vmax.xlane.f32.xlu0 %v2279
    %v2281 = vpop.xlane.xlu0 %2280
    %v2282 = vsub.f32 %v2274, %v2278
    %v2283 = vsub.f32 %v2275, %v2281
    %v2284 = vmul.f32 %v2282, 1.442695
    %v2285 = vpow.pop %v2284
    %v2286 = vmul.f32 %v2283, 1.442695
    %v2287 = vpow.pop %v2286
    %v2288 = vsel %vm512, %v2285, 0.0
    %2289 = vadd.xlane.f32.xlu0 %v2288
    %v2290 = vpop.xlane.xlu0 %2289
    %v2291 = vsel %vm516, %v2287, 0.0
    %2292 = vadd.xlane.f32.xlu0 %v2291
    %v2293 = vpop.xlane.xlu0 %2292
    %v2294 = vrcp.pop %v2290
    %v2295 = vmul.f32 %v2285, %v2294
    %v2296 = vrcp.pop %v2293
    %v2297 = vmul.f32 %v2287, %v2296
    %2298 = vrot.lane.b32.xlu0 %v1965, 56
    %v2299 = vpop.permute.xlu0 %2298
    %2300 = vrot.lane.b32.xlu0 %v1970, 56
    %v2301 = vpop.permute.xlu0 %2300
    %v2304 = vsel %vm512, %v2295, 0
    %v2307 = vsel %vm512, %v2297, 0
    %v2309 = vsel %vm547, %v2301, 0
    %2311 = vmatprep.subr.mxu0 0.0
    %2312 = vmatpush1.msra.mxu0 %v2299
    %2313 = vmatprep.subr.mxu0 0.0
    %2314 = vmatpush1.msra.mxu0 %v2309
    %2315 = vmatprep.subr.mxu0 0.0
    %2316 = vmatpush1.msra.mxu0 0.0
    %2317 = vmatprep.subr.mxu0 0.0
    %2318 = vmatpush1.msra.mxu0 0.0
    %2319 = vmatprep.subr.mxu0 0.0
    %2320 = vmatpush1.msra.mxu0 0.0
    %2321 = vmatprep.subr.mxu0 0.0
    %2322 = vmatpush1.msra.mxu0 0.0
    %2323 = vmatprep.subr.mxu0 0.0
    %2324 = vmatpush1.msra.mxu0 0.0
    %2325 = vmatprep.subr.mxu0 0.0
    %2326 = vmatpush1.msra.mxu0 0.0
    %2327 = vmatprep.subr.mxu0 0.0
    %2328 = vmatpush1.msra.mxu0 0.0
    %2329 = vmatprep.subr.mxu0 0.0
    %2330 = vmatpush1.msra.mxu0 0.0
    %2331 = vmatprep.subr.mxu0 0.0
    %2332 = vmatpush1.msra.mxu0 0.0
    %2333 = vmatprep.subr.mxu0 0.0
    %2334 = vmatpush1.msra.mxu0 0.0
    %2335 = vmatprep.subr.mxu0 0.0
    %2336 = vmatpush1.msra.mxu0 0.0
    %2337 = vmatprep.subr.mxu0 0.0
    %2338 = vmatpush1.msra.mxu0 0.0
    %2339 = vmatprep.subr.mxu0 0.0
    %2340 = vmatpush1.msra.mxu0 0.0
    %2341 = vmatprep.subr.mxu0 0.0
    %2342 = vmatpush1.msra.mxu0 0.0
    %2343 = vmatprep.subr.mxu0 0.0
    %2344 = vmatpush1.msra.mxu0 0.0
    %2345 = vmatprep.subr.mxu0 0.0
    %2346 = vmatpush1.msra.mxu0 0.0
    %2347 = vmatprep.subr.mxu0 0.0
    %2348 = vmatpush1.msra.mxu0 0.0
    %2349 = vmatprep.subr.mxu0 0.0
    %2350 = vmatpush1.msra.mxu0 0.0
    %2351 = vmatprep.subr.mxu0 0.0
    %2352 = vmatpush1.msra.mxu0 0.0
    %2353 = vmatprep.subr.mxu0 0.0
    %2354 = vmatpush1.msra.mxu0 0.0
    %2355 = vmatprep.subr.mxu0 0.0
    %2356 = vmatpush1.msra.mxu0 0.0
    %2357 = vmatprep.subr.mxu0 0.0
    %2358 = vmatpush1.msra.mxu0 0.0
    %2359 = vmatprep.subr.mxu0 0.0
    %2360 = vmatpush1.msra.mxu0 0.0
    %2361 = vmatprep.subr.mxu0 0.0
    %2362 = vmatpush1.msra.mxu0 0.0
    %2363 = vmatprep.subr.mxu0 0.0
    %2364 = vmatpush1.msra.mxu0 0.0
    %2365 = vmatprep.subr.mxu0 0.0
    %2366 = vmatpush1.msra.mxu0 0.0
    %2367 = vmatprep.subr.mxu0 0.0
    %2368 = vmatpush1.msra.mxu0 0.0
    %2369 = vmatprep.subr.mxu0 0.0
    %2370 = vmatpush1.msra.mxu0 0.0
    %2371 = vmatprep.subr.mxu0 0.0
    %2372 = vmatpush1.msra.mxu0 0.0
    %2373 = vmatprep.subr.mxu0 0.0
    %2374 = vmatpush1.msra.mxu0 0.0
    %2375 = vmatprep.mubr.f32.mxu0 0.0
    %2376 = vmatmul.mubr.f32.gmra.mrb[0].mxu0 %v2304
    %v2377 = vpop.f32.mrb[0].mxu0
    %v2378 = vadd.f32 0.0, %v2377
    %v2379 = vpop.f32.mrb[0].mxu0
    %2380 = vmatprep.mubr.f32.mxu0 0.0
    %2381 = vmatmul.mubr.f32.gmra.mrb[0].mxu0 %v2307
    %v2382 = vpop.f32.mrb[0].mxu0
    %v2383 = vadd.f32 0.0, %v2382
    %v2384 = vpop.f32.mrb[0].mxu0
    %2385 = vdwg.mxu0
    %v2387 = vsel %vm192, %v2378, 0
    %v2390 = vsel %vm192, %v2383, 0
    %2392 = vmatprep.subr.mxu0 0.0
    %2393 = vmatpush1.msra.mxu0 %v1975
    %2394 = vmatprep.subr.mxu0 0.0
    %2395 = vmatpush1.msra.mxu0 0.0
    %2396 = vmatprep.subr.mxu0 0.0
    %2397 = vmatpush1.msra.mxu0 0.0
    %2398 = vmatprep.subr.mxu0 0.0
    %2399 = vmatpush1.msra.mxu0 0.0
    %2400 = vmatprep.subr.mxu0 0.0
    %2401 = vmatpush1.msra.mxu0 0.0
    %2402 = vmatprep.subr.mxu0 0.0
    %2403 = vmatpush1.msra.mxu0 0.0
    %2404 = vmatprep.subr.mxu0 0.0
    %2405 = vmatpush1.msra.mxu0 0.0
    %2406 = vmatprep.subr.mxu0 0.0
    %2407 = vmatpush1.msra.mxu0 0.0
    %2408 = vmatprep.subr.mxu0 0.0
    %2409 = vmatpush1.msra.mxu0 0.0
    %2410 = vmatprep.subr.mxu0 0.0
    %2411 = vmatpush1.msra.mxu0 0.0
    %2412 = vmatprep.subr.mxu0 0.0
    %2413 = vmatpush1.msra.mxu0 0.0
    %2414 = vmatprep.subr.mxu0 0.0
    %2415 = vmatpush1.msra.mxu0 0.0
    %2416 = vmatprep.subr.mxu0 0.0
    %2417 = vmatpush1.msra.mxu0 0.0
    %2418 = vmatprep.subr.mxu0 0.0
    %2419 = vmatpush1.msra.mxu0 0.0
    %2420 = vmatprep.subr.mxu0 0.0
    %2421 = vmatpush1.msra.mxu0 0.0
    %2422 = vmatprep.subr.mxu0 0.0
    %2423 = vmatpush1.msra.mxu0 0.0
    %2424 = vmatprep.subr.mxu0 0.0
    %2425 = vmatpush1.msra.mxu0 0.0
    %2426 = vmatprep.subr.mxu0 0.0
    %2427 = vmatpush1.msra.mxu0 0.0
    %2428 = vmatprep.subr.mxu0 0.0
    %2429 = vmatpush1.msra.mxu0 0.0
    %2430 = vmatprep.subr.mxu0 0.0
    %2431 = vmatpush1.msra.mxu0 0.0
    %2432 = vmatprep.subr.mxu0 0.0
    %2433 = vmatpush1.msra.mxu0 0.0
    %2434 = vmatprep.subr.mxu0 0.0
    %2435 = vmatpush1.msra.mxu0 0.0
    %2436 = vmatprep.subr.mxu0 0.0
    %2437 = vmatpush1.msra.mxu0 0.0
    %2438 = vmatprep.subr.mxu0 0.0
    %2439 = vmatpush1.msra.mxu0 0.0
    %2440 = vmatprep.subr.mxu0 0.0
    %2441 = vmatpush1.msra.mxu0 0.0
    %2442 = vmatprep.subr.mxu0 0.0
    %2443 = vmatpush1.msra.mxu0 0.0
    %2444 = vmatprep.subr.mxu0 0.0
    %2445 = vmatpush1.msra.mxu0 0.0
    %2446 = vmatprep.subr.mxu0 0.0
    %2447 = vmatpush1.msra.mxu0 0.0
    %2448 = vmatprep.subr.mxu0 0.0
    %2449 = vmatpush1.msra.mxu0 0.0
    %2450 = vmatprep.subr.mxu0 0.0
    %2451 = vmatpush1.msra.mxu0 0.0
    %2452 = vmatprep.subr.mxu0 0.0
    %2453 = vmatpush1.msra.mxu0 0.0
    %2454 = vmatprep.subr.mxu0 0.0
    %2455 = vmatpush1.msra.mxu0 0.0
    %2456 = vmatprep.mubr.f32.mxu0 0.0
    %2457 = vmatmul.mubr.f32.gmra.mrb[0].mxu0 %v2387
    %v2458 = vpop.f32.mrb[0].mxu0
    %v2459 = vadd.f32 0.0, %v2458
    %v2460 = vpop.f32.mrb[0].mxu0
    %2461 = vmatprep.mubr.f32.mxu0 0.0
    %2462 = vmatmul.mubr.f32.gmra.mrb[0].mxu0 %v2390
    %v2463 = vpop.f32.mrb[0].mxu0
    %v2464 = vadd.f32 0.0, %v2463
    %v2465 = vpop.f32.mrb[0].mxu0
    %2466 = vdwg.mxu0
    %v2468 = vsel %vm192, %v2173, 0
    %v2471 = vsel %vm192, %v2178, 0
    %2473 = vmatprep.subr.mxu0 0.0
    %2474 = vmatpush1.msra.mxu0 %v1974
    %2475 = vmatprep.subr.mxu0 0.0
    %2476 = vmatpush1.msra.mxu0 0.0
    %2477 = vmatprep.subr.mxu0 0.0
    %2478 = vmatpush1.msra.mxu0 0.0
    %2479 = vmatprep.subr.mxu0 0.0
    %2480 = vmatpush1.msra.mxu0 0.0
    %2481 = vmatprep.subr.mxu0 0.0
    %2482 = vmatpush1.msra.mxu0 0.0
    %2483 = vmatprep.subr.mxu0 0.0
    %2484 = vmatpush1.msra.mxu0 0.0
    %2485 = vmatprep.subr.mxu0 0.0
    %2486 = vmatpush1.msra.mxu0 0.0
    %2487 = vmatprep.subr.mxu0 0.0
    %2488 = vmatpush1.msra.mxu0 0.0
    %2489 = vmatprep.subr.mxu0 0.0
    %2490 = vmatpush1.msra.mxu0 0.0
    %2491 = vmatprep.subr.mxu0 0.0
    %2492 = vmatpush1.msra.mxu0 0.0
    %2493 = vmatprep.subr.mxu0 0.0
    %2494 = vmatpush1.msra.mxu0 0.0
    %2495 = vmatprep.subr.mxu0 0.0
    %2496 = vmatpush1.msra.mxu0 0.0
    %2497 = vmatprep.subr.mxu0 0.0
    %2498 = vmatpush1.msra.mxu0 0.0
    %2499 = vmatprep.subr.mxu0 0.0
    %2500 = vmatpush1.msra.mxu0 0.0
    %2501 = vmatprep.subr.mxu0 0.0
    %2502 = vmatpush1.msra.mxu0 0.0
    %2503 = vmatprep.subr.mxu0 0.0
    %2504 = vmatpush1.msra.mxu0 0.0
    %2505 = vmatprep.subr.mxu0 0.0
    %2506 = vmatpush1.msra.mxu0 0.0
    %2507 = vmatprep.subr.mxu0 0.0
    %2508 = vmatpush1.msra.mxu0 0.0
    %2509 = vmatprep.subr.mxu0 0.0
    %2510 = vmatpush1.msra.mxu0 0.0
    %2511 = vmatprep.subr.mxu0 0.0
    %2512 = vmatpush1.msra.mxu0 0.0
    %2513 = vmatprep.subr.mxu0 0.0
    %2514 = vmatpush1.msra.mxu0 0.0
    %2515 = vmatprep.subr.mxu0 0.0
    %2516 = vmatpush1.msra.mxu0 0.0
    %2517 = vmatprep.subr.mxu0 0.0
    %2518 = vmatpush1.msra.mxu0 0.0
    %2519 = vmatprep.subr.mxu0 0.0
    %2520 = vmatpush1.msra.mxu0 0.0
    %2521 = vmatprep.subr.mxu0 0.0
    %2522 = vmatpush1.msra.mxu0 0.0
    %2523 = vmatprep.subr.mxu0 0.0
    %2524 = vmatpush1.msra.mxu0 0.0
    %2525 = vmatprep.subr.mxu0 0.0
    %2526 = vmatpush1.msra.mxu0 0.0
    %2527 = vmatprep.subr.mxu0 0.0
    %2528 = vmatpush1.msra.mxu0 0.0
    %2529 = vmatprep.subr.mxu0 0.0
    %2530 = vmatpush1.msra.mxu0 0.0
    %2531 = vmatprep.subr.mxu0 0.0
    %2532 = vmatpush1.msra.mxu0 0.0
    %2533 = vmatprep.subr.mxu0 0.0
    %2534 = vmatpush1.msra.mxu0 0.0
    %2535 = vmatprep.subr.mxu0 0.0
    %2536 = vmatpush1.msra.mxu0 0.0
    %2537 = vmatprep.mubr.f32.mxu0 0.0
    %2538 = vmatmul.mubr.f32.gmra.mrb[0].mxu0 %v2468
    %v2539 = vpop.f32.mrb[0].mxu0
    %v2540 = vadd.f32 %v2459, %v2539
    %v2541 = vpop.f32.mrb[0].mxu0
    %2542 = vmatprep.mubr.f32.mxu0 0.0
    %2543 = vmatmul.mubr.f32.gmra.mrb[0].mxu0 %v2471
    %v2544 = vpop.f32.mrb[0].mxu0
    %v2545 = vadd.f32 %v2464, %v2544
    %v2546 = vpop.f32.mrb[0].mxu0
    %2547 = vdwg.mxu0
    %2548 = vrot.lane.b32.xlu0 %v1965, 112
    %v2549 = vpop.permute.xlu0 %2548
    %2550 = vrot.lane.b32.xlu0 %v1970, 112
    %v2551 = vpop.permute.xlu0 %2550
    %2552 = vrot.lane.b32.xlu0 %v1965, 80
    %v2553 = vpop.permute.xlu0 %2552
    %2554 = vrot.lane.b32.xlu0 %v1970, 80
    %v2555 = vpop.permute.xlu0 %2554
    %v2556 = vsel %vm192, %v2549, 0
    %v2558 = vsel %vm192, %v2551, 0
    %v2560 = vsel %vm192, %v2553, 0
    %v2562 = vsel %vm192, %v2555, 0
    %2564 = vmatprep.subr.mxu0 0.0
    %2565 = vmatpush1.xpose.msra.mxu0 %v2560
    %2566 = vmatprep.subr.mxu0 0.0
    %2567 = vmatpush1.xpose.msra.mxu0 %v2562
    %2568 = vmatprep.subr.mxu0 0.0
    %2569 = vmatpush1.xpose.msra.mxu0 0.0
    %2570 = vmatprep.subr.mxu0 0.0
    %2571 = vmatpush1.xpose.msra.mxu0 0.0
    %2572 = vmatprep.subr.mxu0 0.0
    %2573 = vmatpush1.xpose.msra.mxu0 0.0
    %2574 = vmatprep.subr.mxu0 0.0
    %2575 = vmatpush1.xpose.msra.mxu0 0.0
    %2576 = vmatprep.subr.mxu0 0.0
    %2577 = vmatpush1.xpose.msra.mxu0 0.0
    %2578 = vmatprep.subr.mxu0 0.0
    %2579 = vmatpush1.xpose.msra.mxu0 0.0
    %2580 = vmatprep.subr.mxu0 0.0
    %2581 = vmatpush1.xpose.msra.mxu0 0.0
    %2582 = vmatprep.subr.mxu0 0.0
    %2583 = vmatpush1.xpose.msra.mxu0 0.0
    %2584 = vmatprep.subr.mxu0 0.0
    %2585 = vmatpush1.xpose.msra.mxu0 0.0
    %2586 = vmatprep.subr.mxu0 0.0
    %2587 = vmatpush1.xpose.msra.mxu0 0.0
    %2588 = vmatprep.subr.mxu0 0.0
    %2589 = vmatpush1.xpose.msra.mxu0 0.0
    %2590 = vmatprep.subr.mxu0 0.0
    %2591 = vmatpush1.xpose.msra.mxu0 0.0
    %2592 = vmatprep.subr.mxu0 0.0
    %2593 = vmatpush1.xpose.msra.mxu0 0.0
    %2594 = vmatprep.subr.mxu0 0.0
    %2595 = vmatpush1.xpose.msra.mxu0 0.0
    %2596 = vmatprep.subr.mxu0 0.0
    %2597 = vmatpush1.xpose.msra.mxu0 0.0
    %2598 = vmatprep.subr.mxu0 0.0
    %2599 = vmatpush1.xpose.msra.mxu0 0.0
    %2600 = vmatprep.subr.mxu0 0.0
    %2601 = vmatpush1.xpose.msra.mxu0 0.0
    %2602 = vmatprep.subr.mxu0 0.0
    %2603 = vmatpush1.xpose.msra.mxu0 0.0
    %2604 = vmatprep.subr.mxu0 0.0
    %2605 = vmatpush1.xpose.msra.mxu0 0.0
    %2606 = vmatprep.subr.mxu0 0.0
    %2607 = vmatpush1.xpose.msra.mxu0 0.0
    %2608 = vmatprep.subr.mxu0 0.0
    %2609 = vmatpush1.xpose.msra.mxu0 0.0
    %2610 = vmatprep.subr.mxu0 0.0
    %2611 = vmatpush1.xpose.msra.mxu0 0.0
    %2612 = vmatprep.subr.mxu0 0.0
    %2613 = vmatpush1.xpose.msra.mxu0 0.0
    %2614 = vmatprep.subr.mxu0 0.0
    %2615 = vmatpush1.xpose.msra.mxu0 0.0
    %2616 = vmatprep.subr.mxu0 0.0
    %2617 = vmatpush1.xpose.msra.mxu0 0.0
    %2618 = vmatprep.subr.mxu0 0.0
    %2619 = vmatpush1.xpose.msra.mxu0 0.0
    %2620 = vmatprep.subr.mxu0 0.0
    %2621 = vmatpush1.xpose.msra.mxu0 0.0
    %2622 = vmatprep.subr.mxu0 0.0
    %2623 = vmatpush1.xpose.msra.mxu0 0.0
    %2624 = vmatprep.subr.mxu0 0.0
    %2625 = vmatpush1.xpose.msra.mxu0 0.0
    %2626 = vmatprep.subr.mxu0 0.0
    %2627 = vmatpush1.xpose.msra.mxu0 0.0
    %2628 = vmatprep.mubr.f32.mxu0 0.0
    %2629 = vmatmul.mubr.f32.gmra.mrb[0].mxu0 %v2556
    %v2630 = vpop.f32.mrb[0].mxu0
    %v2631 = vadd.f32 0.0, %v2630
    %v2632 = vpop.f32.mrb[0].mxu0
    %2633 = vmatprep.mubr.f32.mxu0 0.0
    %2634 = vmatmul.mubr.f32.gmra.mrb[0].mxu0 %v2558
    %v2635 = vpop.f32.mrb[0].mxu0
    %v2636 = vadd.f32 0.0, %v2635
    %v2637 = vpop.f32.mrb[0].mxu0
    %2638 = vdwg.mxu0
    %v2639 = vmul.f32 %v2631, 0.35355338
    %v2640 = vmul.f32 %v2636, 0.35355338
    %v2641 = vadd.f32 %v2639, %v274
    %v2642 = vadd.f32 %v2640, %v275
    %v2643 = vsel %vm512, %v2641, -inf
    %2644 = vmax.xlane.f32.xlu0 %v2643
    %v2645 = vpop.xlane.xlu0 %2644
    %v2646 = vsel %vm516, %v2642, -inf
    %2647 = vmax.xlane.f32.xlu0 %v2646
    %v2648 = vpop.xlane.xlu0 %2647
    %v2649 = vsub.f32 %v2641, %v2645
    %v2650 = vsub.f32 %v2642, %v2648
    %v2651 = vmul.f32 %v2649, 1.442695
    %v2652 = vpow.pop %v2651
    %v2653 = vmul.f32 %v2650, 1.442695
    %v2654 = vpow.pop %v2653
    %v2655 = vsel %vm512, %v2652, 0.0
    %2656 = vadd.xlane.f32.xlu0 %v2655
    %v2657 = vpop.xlane.xlu0 %2656
    %v2658 = vsel %vm516, %v2654, 0.0
    %2659 = vadd.xlane.f32.xlu0 %v2658
    %v2660 = vpop.xlane.xlu0 %2659
    %v2661 = vrcp.pop %v2657
    %v2662 = vmul.f32 %v2652, %v2661
    %v2663 = vrcp.pop %v2660
    %v2664 = vmul.f32 %v2654, %v2663
    %2665 = vrot.lane.b32.xlu0 %v1965, 48
    %v2666 = vpop.permute.xlu0 %2665
    %2667 = vrot.lane.b32.xlu0 %v1970, 48
    %v2668 = vpop.permute.xlu0 %2667
    %v2671 = vsel %vm512, %v2662, 0
    %v2674 = vsel %vm512, %v2664, 0
    %v2676 = vsel %vm547, %v2668, 0
    %2678 = vmatprep.subr.mxu0 0.0
    %2679 = vmatpush1.msra.mxu0 %v2666
    %2680 = vmatprep.subr.mxu0 0.0
    %2681 = vmatpush1.msra.mxu0 %v2676
    %2682 = vmatprep.subr.mxu0 0.0
    %2683 = vmatpush1.msra.mxu0 0.0
    %2684 = vmatprep.subr.mxu0 0.0
    %2685 = vmatpush1.msra.mxu0 0.0
    %2686 = vmatprep.subr.mxu0 0.0
    %2687 = vmatpush1.msra.mxu0 0.0
    %2688 = vmatprep.subr.mxu0 0.0
    %2689 = vmatpush1.msra.mxu0 0.0
    %2690 = vmatprep.subr.mxu0 0.0
    %2691 = vmatpush1.msra.mxu0 0.0
    %2692 = vmatprep.subr.mxu0 0.0
    %2693 = vmatpush1.msra.mxu0 0.0
    %2694 = vmatprep.subr.mxu0 0.0
    %2695 = vmatpush1.msra.mxu0 0.0
    %2696 = vmatprep.subr.mxu0 0.0
    %2697 = vmatpush1.msra.mxu0 0.0
    %2698 = vmatprep.subr.mxu0 0.0
    %2699 = vmatpush1.msra.mxu0 0.0
    %2700 = vmatprep.subr.mxu0 0.0
    %2701 = vmatpush1.msra.mxu0 0.0
    %2702 = vmatprep.subr.mxu0 0.0
    %2703 = vmatpush1.msra.mxu0 0.0
    %2704 = vmatprep.subr.mxu0 0.0
    %2705 = vmatpush1.msra.mxu0 0.0
    %2706 = vmatprep.subr.mxu0 0.0
    %2707 = vmatpush1.msra.mxu0 0.0
    %2708 = vmatprep.subr.mxu0 0.0
    %2709 = vmatpush1.msra.mxu0 0.0
    %2710 = vmatprep.subr.mxu0 0.0
    %2711 = vmatpush1.msra.mxu0 0.0
    %2712 = vmatprep.subr.mxu0 0.0
    %2713 = vmatpush1.msra.mxu0 0.0
    %2714 = vmatprep.subr.mxu0 0.0
    %2715 = vmatpush1.msra.mxu0 0.0
    %2716 = vmatprep.subr.mxu0 0.0
    %2717 = vmatpush1.msra.mxu0 0.0
    %2718 = vmatprep.subr.mxu0 0.0
    %2719 = vmatpush1.msra.mxu0 0.0
    %2720 = vmatprep.subr.mxu0 0.0
    %2721 = vmatpush1.msra.mxu0 0.0
    %2722 = vmatprep.subr.mxu0 0.0
    %2723 = vmatpush1.msra.mxu0 0.0
    %2724 = vmatprep.subr.mxu0 0.0
    %2725 = vmatpush1.msra.mxu0 0.0
    %2726 = vmatprep.subr.mxu0 0.0
    %2727 = vmatpush1.msra.mxu0 0.0
    %2728 = vmatprep.subr.mxu0 0.0
    %2729 = vmatpush1.msra.mxu0 0.0
    %2730 = vmatprep.subr.mxu0 0.0
    %2731 = vmatpush1.msra.mxu0 0.0
    %2732 = vmatprep.subr.mxu0 0.0
    %2733 = vmatpush1.msra.mxu0 0.0
    %2734 = vmatprep.subr.mxu0 0.0
    %2735 = vmatpush1.msra.mxu0 0.0
    %2736 = vmatprep.subr.mxu0 0.0
    %2737 = vmatpush1.msra.mxu0 0.0
    %2738 = vmatprep.subr.mxu0 0.0
    %2739 = vmatpush1.msra.mxu0 0.0
    %2740 = vmatprep.subr.mxu0 0.0
    %2741 = vmatpush1.msra.mxu0 0.0
    %2742 = vmatprep.mubr.f32.mxu0 0.0
    %2743 = vmatmul.mubr.f32.gmra.mrb[0].mxu0 %v2671
    %v2744 = vpop.f32.mrb[0].mxu0
    %v2745 = vadd.f32 0.0, %v2744
    %v2746 = vpop.f32.mrb[0].mxu0
    %2747 = vmatprep.mubr.f32.mxu0 0.0
    %2748 = vmatmul.mubr.f32.gmra.mrb[0].mxu0 %v2674
    %v2749 = vpop.f32.mrb[0].mxu0
    %v2750 = vadd.f32 0.0, %v2749
    %v2751 = vpop.f32.mrb[0].mxu0
    %2752 = vdwg.mxu0
    %v2754 = vsel %vm192, %v2745, 0
    %v2757 = vsel %vm192, %v2750, 0
    %2759 = vmatprep.subr.mxu0 0.0
    %2760 = vmatpush1.msra.mxu0 %v1976
    %2761 = vmatprep.subr.mxu0 0.0
    %2762 = vmatpush1.msra.mxu0 0.0
    %2763 = vmatprep.subr.mxu0 0.0
    %2764 = vmatpush1.msra.mxu0 0.0
    %2765 = vmatprep.subr.mxu0 0.0
    %2766 = vmatpush1.msra.mxu0 0.0
    %2767 = vmatprep.subr.mxu0 0.0
    %2768 = vmatpush1.msra.mxu0 0.0
    %2769 = vmatprep.subr.mxu0 0.0
    %2770 = vmatpush1.msra.mxu0 0.0
    %2771 = vmatprep.subr.mxu0 0.0
    %2772 = vmatpush1.msra.mxu0 0.0
    %2773 = vmatprep.subr.mxu0 0.0
    %2774 = vmatpush1.msra.mxu0 0.0
    %2775 = vmatprep.subr.mxu0 0.0
    %2776 = vmatpush1.msra.mxu0 0.0
    %2777 = vmatprep.subr.mxu0 0.0
    %2778 = vmatpush1.msra.mxu0 0.0
    %2779 = vmatprep.subr.mxu0 0.0
    %2780 = vmatpush1.msra.mxu0 0.0
    %2781 = vmatprep.subr.mxu0 0.0
    %2782 = vmatpush1.msra.mxu0 0.0
    %2783 = vmatprep.subr.mxu0 0.0
    %2784 = vmatpush1.msra.mxu0 0.0
    %2785 = vmatprep.subr.mxu0 0.0
    %2786 = vmatpush1.msra.mxu0 0.0
    %2787 = vmatprep.subr.mxu0 0.0
    %2788 = vmatpush1.msra.mxu0 0.0
    %2789 = vmatprep.subr.mxu0 0.0
    %2790 = vmatpush1.msra.mxu0 0.0
    %2791 = vmatprep.subr.mxu0 0.0
    %2792 = vmatpush1.msra.mxu0 0.0
    %2793 = vmatprep.subr.mxu0 0.0
    %2794 = vmatpush1.msra.mxu0 0.0
    %2795 = vmatprep.subr.mxu0 0.0
    %2796 = vmatpush1.msra.mxu0 0.0
    %2797 = vmatprep.subr.mxu0 0.0
    %2798 = vmatpush1.msra.mxu0 0.0
    %2799 = vmatprep.subr.mxu0 0.0
    %2800 = vmatpush1.msra.mxu0 0.0
    %2801 = vmatprep.subr.mxu0 0.0
    %2802 = vmatpush1.msra.mxu0 0.0
    %2803 = vmatprep.subr.mxu0 0.0
    %2804 = vmatpush1.msra.mxu0 0.0
    %2805 = vmatprep.subr.mxu0 0.0
    %2806 = vmatpush1.msra.mxu0 0.0
    %2807 = vmatprep.subr.mxu0 0.0
    %2808 = vmatpush1.msra.mxu0 0.0
    %2809 = vmatprep.subr.mxu0 0.0
    %2810 = vmatpush1.msra.mxu0 0.0
    %2811 = vmatprep.subr.mxu0 0.0
    %2812 = vmatpush1.msra.mxu0 0.0
    %2813 = vmatprep.subr.mxu0 0.0
    %2814 = vmatpush1.msra.mxu0 0.0
    %2815 = vmatprep.subr.mxu0 0.0
    %2816 = vmatpush1.msra.mxu0 0.0
    %2817 = vmatprep.subr.mxu0 0.0
    %2818 = vmatpush1.msra.mxu0 0.0
    %2819 = vmatprep.subr.mxu0 0.0
    %2820 = vmatpush1.msra.mxu0 0.0
    %2821 = vmatprep.subr.mxu0 0.0
    %2822 = vmatpush1.msra.mxu0 0.0
    %2823 = vmatprep.mubr.f32.mxu0 0.0
    %2824 = vmatmul.mubr.f32.gmra.mrb[0].mxu0 %v2754
    %v2825 = vpop.f32.mrb[0].mxu0
    %v2826 = vadd.f32 0.0, %v2825
    %v2827 = vpop.f32.mrb[0].mxu0
    %2828 = vmatprep.mubr.f32.mxu0 0.0
    %2829 = vmatmul.mubr.f32.gmra.mrb[0].mxu0 %v2757
    %v2830 = vpop.f32.mrb[0].mxu0
    %v2831 = vadd.f32 0.0, %v2830
    %v2832 = vpop.f32.mrb[0].mxu0
    %2833 = vdwg.mxu0
    %v2834 = vadd.f32 %v2540, %v2826
    %v2835 = vadd.f32 %v2545, %v2831
    %2836 = vrot.lane.b32.xlu0 %v1965, 104
    %v2837 = vpop.permute.xlu0 %2836
    %2838 = vrot.lane.b32.xlu0 %v1970, 104
    %v2839 = vpop.permute.xlu0 %2838
    %2840 = vrot.lane.b32.xlu0 %v1965, 72
    %v2841 = vpop.permute.xlu0 %2840
    %2842 = vrot.lane.b32.xlu0 %v1970, 72
    %v2843 = vpop.permute.xlu0 %2842
    %v2844 = vsel %vm192, %v2837, 0
    %v2846 = vsel %vm192, %v2839, 0
    %v2848 = vsel %vm192, %v2841, 0
    %v2850 = vsel %vm192, %v2843, 0
    %2852 = vmatprep.subr.mxu0 0.0
    %2853 = vmatpush1.xpose.msra.mxu0 %v2848
    %2854 = vmatprep.subr.mxu0 0.0
    %2855 = vmatpush1.xpose.msra.mxu0 %v2850
    %2856 = vmatprep.subr.mxu0 0.0
    %2857 = vmatpush1.xpose.msra.mxu0 0.0
    %2858 = vmatprep.subr.mxu0 0.0
    %2859 = vmatpush1.xpose.msra.mxu0 0.0
    %2860 = vmatprep.subr.mxu0 0.0
    %2861 = vmatpush1.xpose.msra.mxu0 0.0
    %2862 = vmatprep.subr.mxu0 0.0
    %2863 = vmatpush1.xpose.msra.mxu0 0.0
    %2864 = vmatprep.subr.mxu0 0.0
    %2865 = vmatpush1.xpose.msra.mxu0 0.0
    %2866 = vmatprep.subr.mxu0 0.0
    %2867 = vmatpush1.xpose.msra.mxu0 0.0
    %2868 = vmatprep.subr.mxu0 0.0
    %2869 = vmatpush1.xpose.msra.mxu0 0.0
    %2870 = vmatprep.subr.mxu0 0.0
    %2871 = vmatpush1.xpose.msra.mxu0 0.0
    %2872 = vmatprep.subr.mxu0 0.0
    %2873 = vmatpush1.xpose.msra.mxu0 0.0
    %2874 = vmatprep.subr.mxu0 0.0
    %2875 = vmatpush1.xpose.msra.mxu0 0.0
    %2876 = vmatprep.subr.mxu0 0.0
    %2877 = vmatpush1.xpose.msra.mxu0 0.0
    %2878 = vmatprep.subr.mxu0 0.0
    %2879 = vmatpush1.xpose.msra.mxu0 0.0
    %2880 = vmatprep.subr.mxu0 0.0
    %2881 = vmatpush1.xpose.msra.mxu0 0.0
    %2882 = vmatprep.subr.mxu0 0.0
    %2883 = vmatpush1.xpose.msra.mxu0 0.0
    %2884 = vmatprep.subr.mxu0 0.0
    %2885 = vmatpush1.xpose.msra.mxu0 0.0
    %2886 = vmatprep.subr.mxu0 0.0
    %2887 = vmatpush1.xpose.msra.mxu0 0.0
    %2888 = vmatprep.subr.mxu0 0.0
    %2889 = vmatpush1.xpose.msra.mxu0 0.0
    %2890 = vmatprep.subr.mxu0 0.0
    %2891 = vmatpush1.xpose.msra.mxu0 0.0
    %2892 = vmatprep.subr.mxu0 0.0
    %2893 = vmatpush1.xpose.msra.mxu0 0.0
    %2894 = vmatprep.subr.mxu0 0.0
    %2895 = vmatpush1.xpose.msra.mxu0 0.0
    %2896 = vmatprep.subr.mxu0 0.0
    %2897 = vmatpush1.xpose.msra.mxu0 0.0
    %2898 = vmatprep.subr.mxu0 0.0
    %2899 = vmatpush1.xpose.msra.mxu0 0.0
    %2900 = vmatprep.subr.mxu0 0.0
    %2901 = vmatpush1.xpose.msra.mxu0 0.0
    %2902 = vmatprep.subr.mxu0 0.0
    %2903 = vmatpush1.xpose.msra.mxu0 0.0
    %2904 = vmatprep.subr.mxu0 0.0
    %2905 = vmatpush1.xpose.msra.mxu0 0.0
    %2906 = vmatprep.subr.mxu0 0.0
    %2907 = vmatpush1.xpose.msra.mxu0 0.0
    %2908 = vmatprep.subr.mxu0 0.0
    %2909 = vmatpush1.xpose.msra.mxu0 0.0
    %2910 = vmatprep.subr.mxu0 0.0
    %2911 = vmatpush1.xpose.msra.mxu0 0.0
    %2912 = vmatprep.subr.mxu0 0.0
    %2913 = vmatpush1.xpose.msra.mxu0 0.0
    %2914 = vmatprep.subr.mxu0 0.0
    %2915 = vmatpush1.xpose.msra.mxu0 0.0
    %2916 = vmatprep.mubr.f32.mxu0 0.0
    %2917 = vmatmul.mubr.f32.gmra.mrb[0].mxu0 %v2844
    %v2918 = vpop.f32.mrb[0].mxu0
    %v2919 = vadd.f32 0.0, %v2918
    %v2920 = vpop.f32.mrb[0].mxu0
    %2921 = vmatprep.mubr.f32.mxu0 0.0
    %2922 = vmatmul.mubr.f32.gmra.mrb[0].mxu0 %v2846
    %v2923 = vpop.f32.mrb[0].mxu0
    %v2924 = vadd.f32 0.0, %v2923
    %v2925 = vpop.f32.mrb[0].mxu0
    %2926 = vdwg.mxu0
    %v2927 = vmul.f32 %v2919, 0.35355338
    %v2928 = vmul.f32 %v2924, 0.35355338
    %v2929 = vadd.f32 %v2927, %v274
    %v2930 = vadd.f32 %v2928, %v275
    %v2931 = vsel %vm512, %v2929, -inf
    %2932 = vmax.xlane.f32.xlu0 %v2931
    %v2933 = vpop.xlane.xlu0 %2932
    %v2934 = vsel %vm516, %v2930, -inf
    %2935 = vmax.xlane.f32.xlu0 %v2934
    %v2936 = vpop.xlane.xlu0 %2935
    %v2937 = vsub.f32 %v2929, %v2933
    %v2938 = vsub.f32 %v2930, %v2936
    %v2939 = vmul.f32 %v2937, 1.442695
    %v2940 = vpow.pop %v2939
    %v2941 = vmul.f32 %v2938, 1.442695
    %v2942 = vpow.pop %v2941
    %v2943 = vsel %vm512, %v2940, 0.0
    %2944 = vadd.xlane.f32.xlu0 %v2943
    %v2945 = vpop.xlane.xlu0 %2944
    %v2946 = vsel %vm516, %v2942, 0.0
    %2947 = vadd.xlane.f32.xlu0 %v2946
    %v2948 = vpop.xlane.xlu0 %2947
    %v2949 = vrcp.pop %v2945
    %v2950 = vmul.f32 %v2940, %v2949
    %v2951 = vrcp.pop %v2948
    %v2952 = vmul.f32 %v2942, %v2951
    %2953 = vrot.lane.b32.xlu0 %v1965, 40
    %v2954 = vpop.permute.xlu0 %2953
    %2955 = vrot.lane.b32.xlu0 %v1970, 40
    %v2956 = vpop.permute.xlu0 %2955
    %v2959 = vsel %vm512, %v2950, 0
    %v2962 = vsel %vm512, %v2952, 0
    %v2964 = vsel %vm547, %v2956, 0
    %2966 = vmatprep.subr.mxu0 0.0
    %2967 = vmatpush1.msra.mxu0 %v2954
    %2968 = vmatprep.subr.mxu0 0.0
    %2969 = vmatpush1.msra.mxu0 %v2964
    %2970 = vmatprep.subr.mxu0 0.0
    %2971 = vmatpush1.msra.mxu0 0.0
    %2972 = vmatprep.subr.mxu0 0.0
    %2973 = vmatpush1.msra.mxu0 0.0
    %2974 = vmatprep.subr.mxu0 0.0
    %2975 = vmatpush1.msra.mxu0 0.0
    %2976 = vmatprep.subr.mxu0 0.0
    %2977 = vmatpush1.msra.mxu0 0.0
    %2978 = vmatprep.subr.mxu0 0.0
    %2979 = vmatpush1.msra.mxu0 0.0
    %2980 = vmatprep.subr.mxu0 0.0
    %2981 = vmatpush1.msra.mxu0 0.0
    %2982 = vmatprep.subr.mxu0 0.0
    %2983 = vmatpush1.msra.mxu0 0.0
    %2984 = vmatprep.subr.mxu0 0.0
    %2985 = vmatpush1.msra.mxu0 0.0
    %2986 = vmatprep.subr.mxu0 0.0
    %2987 = vmatpush1.msra.mxu0 0.0
    %2988 = vmatprep.subr.mxu0 0.0
    %2989 = vmatpush1.msra.mxu0 0.0
    %2990 = vmatprep.subr.mxu0 0.0
    %2991 = vmatpush1.msra.mxu0 0.0
    %2992 = vmatprep.subr.mxu0 0.0
    %2993 = vmatpush1.msra.mxu0 0.0
    %2994 = vmatprep.subr.mxu0 0.0
    %2995 = vmatpush1.msra.mxu0 0.0
    %2996 = vmatprep.subr.mxu0 0.0
    %2997 = vmatpush1.msra.mxu0 0.0
    %2998 = vmatprep.subr.mxu0 0.0
    %2999 = vmatpush1.msra.mxu0 0.0
    %3000 = vmatprep.subr.mxu0 0.0
    %3001 = vmatpush1.msra.mxu0 0.0
    %3002 = vmatprep.subr.mxu0 0.0
    %3003 = vmatpush1.msra.mxu0 0.0
    %3004 = vmatprep.subr.mxu0 0.0
    %3005 = vmatpush1.msra.mxu0 0.0
    %3006 = vmatprep.subr.mxu0 0.0
    %3007 = vmatpush1.msra.mxu0 0.0
    %3008 = vmatprep.subr.mxu0 0.0
    %3009 = vmatpush1.msra.mxu0 0.0
    %3010 = vmatprep.subr.mxu0 0.0
    %3011 = vmatpush1.msra.mxu0 0.0
    %3012 = vmatprep.subr.mxu0 0.0
    %3013 = vmatpush1.msra.mxu0 0.0
    %3014 = vmatprep.subr.mxu0 0.0
    %3015 = vmatpush1.msra.mxu0 0.0
    %3016 = vmatprep.subr.mxu0 0.0
    %3017 = vmatpush1.msra.mxu0 0.0
    %3018 = vmatprep.subr.mxu0 0.0
    %3019 = vmatpush1.msra.mxu0 0.0
    %3020 = vmatprep.subr.mxu0 0.0
    %3021 = vmatpush1.msra.mxu0 0.0
    %3022 = vmatprep.subr.mxu0 0.0
    %3023 = vmatpush1.msra.mxu0 0.0
    %3024 = vmatprep.subr.mxu0 0.0
    %3025 = vmatpush1.msra.mxu0 0.0
    %3026 = vmatprep.subr.mxu0 0.0
    %3027 = vmatpush1.msra.mxu0 0.0
    %3028 = vmatprep.subr.mxu0 0.0
    %3029 = vmatpush1.msra.mxu0 0.0
    %3030 = vmatprep.mubr.f32.mxu0 0.0
    %3031 = vmatmul.mubr.f32.gmra.mrb[0].mxu0 %v2959
    %v3032 = vpop.f32.mrb[0].mxu0
    %v3033 = vadd.f32 0.0, %v3032
    %v3034 = vpop.f32.mrb[0].mxu0
    %3035 = vmatprep.mubr.f32.mxu0 0.0
    %3036 = vmatmul.mubr.f32.gmra.mrb[0].mxu0 %v2962
    %v3037 = vpop.f32.mrb[0].mxu0
    %v3038 = vadd.f32 0.0, %v3037
    %v3039 = vpop.f32.mrb[0].mxu0
    %3040 = vdwg.mxu0
    %v3042 = vsel %vm192, %v3033, 0
    %v3045 = vsel %vm192, %v3038, 0
    %3047 = vmatprep.subr.mxu0 0.0
    %3048 = vmatpush1.msra.mxu0 %v1977
    %3049 = vmatprep.subr.mxu0 0.0
    %3050 = vmatpush1.msra.mxu0 0.0
    %3051 = vmatprep.subr.mxu0 0.0
    %3052 = vmatpush1.msra.mxu0 0.0
    %3053 = vmatprep.subr.mxu0 0.0
    %3054 = vmatpush1.msra.mxu0 0.0
    %3055 = vmatprep.subr.mxu0 0.0
    %3056 = vmatpush1.msra.mxu0 0.0
    %3057 = vmatprep.subr.mxu0 0.0
    %3058 = vmatpush1.msra.mxu0 0.0
    %3059 = vmatprep.subr.mxu0 0.0
    %3060 = vmatpush1.msra.mxu0 0.0
    %3061 = vmatprep.subr.mxu0 0.0
    %3062 = vmatpush1.msra.mxu0 0.0
    %3063 = vmatprep.subr.mxu0 0.0
    %3064 = vmatpush1.msra.mxu0 0.0
    %3065 = vmatprep.subr.mxu0 0.0
    %3066 = vmatpush1.msra.mxu0 0.0
    %3067 = vmatprep.subr.mxu0 0.0
    %3068 = vmatpush1.msra.mxu0 0.0
    %3069 = vmatprep.subr.mxu0 0.0
    %3070 = vmatpush1.msra.mxu0 0.0
    %3071 = vmatprep.subr.mxu0 0.0
    %3072 = vmatpush1.msra.mxu0 0.0
    %3073 = vmatprep.subr.mxu0 0.0
    %3074 = vmatpush1.msra.mxu0 0.0
    %3075 = vmatprep.subr.mxu0 0.0
    %3076 = vmatpush1.msra.mxu0 0.0
    %3077 = vmatprep.subr.mxu0 0.0
    %3078 = vmatpush1.msra.mxu0 0.0
    %3079 = vmatprep.subr.mxu0 0.0
    %3080 = vmatpush1.msra.mxu0 0.0
    %3081 = vmatprep.subr.mxu0 0.0
    %3082 = vmatpush1.msra.mxu0 0.0
    %3083 = vmatprep.subr.mxu0 0.0
    %3084 = vmatpush1.msra.mxu0 0.0
    %3085 = vmatprep.subr.mxu0 0.0
    %3086 = vmatpush1.msra.mxu0 0.0
    %3087 = vmatprep.subr.mxu0 0.0
    %3088 = vmatpush1.msra.mxu0 0.0
    %3089 = vmatprep.subr.mxu0 0.0
    %3090 = vmatpush1.msra.mxu0 0.0
    %3091 = vmatprep.subr.mxu0 0.0
    %3092 = vmatpush1.msra.mxu0 0.0
    %3093 = vmatprep.subr.mxu0 0.0
    %3094 = vmatpush1.msra.mxu0 0.0
    %3095 = vmatprep.subr.mxu0 0.0
    %3096 = vmatpush1.msra.mxu0 0.0
    %3097 = vmatprep.subr.mxu0 0.0
    %3098 = vmatpush1.msra.mxu0 0.0
    %3099 = vmatprep.subr.mxu0 0.0
    %3100 = vmatpush1.msra.mxu0 0.0
    %3101 = vmatprep.subr.mxu0 0.0
    %3102 = vmatpush1.msra.mxu0 0.0
    %3103 = vmatprep.subr.mxu0 0.0
    %3104 = vmatpush1.msra.mxu0 0.0
    %3105 = vmatprep.subr.mxu0 0.0
    %3106 = vmatpush1.msra.mxu0 0.0
    %3107 = vmatprep.subr.mxu0 0.0
    %3108 = vmatpush1.msra.mxu0 0.0
    %3109 = vmatprep.subr.mxu0 0.0
    %3110 = vmatpush1.msra.mxu0 0.0
    %3111 = vmatprep.mubr.f32.mxu0 0.0
    %3112 = vmatmul.mubr.f32.gmra.mrb[0].mxu0 %v3042
    %v3113 = vpop.f32.mrb[0].mxu0
    %v3114 = vadd.f32 0.0, %v3113
    %v3115 = vpop.f32.mrb[0].mxu0
    %3116 = vmatprep.mubr.f32.mxu0 0.0
    %3117 = vmatmul.mubr.f32.gmra.mrb[0].mxu0 %v3045
    %v3118 = vpop.f32.mrb[0].mxu0
    %v3119 = vadd.f32 0.0, %v3118
    %v3120 = vpop.f32.mrb[0].mxu0
    %3121 = vdwg.mxu0
    %v3122 = vadd.f32 %v2834, %v3114
    %v3123 = vadd.f32 %v2835, %v3119
    %v3124 = vadd.f32 %v1831, %v3122
    %v3125 = vadd.f32 %v1832, %v3123
    %s3126 = scalar_lea.vmem %s11, 1
    %v3127 = vld [vmem:[%s3126] sm:$0x1]
    %v3129 = vlaneseq
    %v3130 = vshrl.u32 %v3129, 7
    %v3131 = vsub.s32 0, %v3130
    %v3132 = vrot.slane %v3127, %v3131
    %v3134 = vadd.f32 %v3124, %v3132
    %v3135 = vadd.f32 %v3125, %v3132
    %s3136 = scalar_lea.vmem %s12, 1
    %v3137 = vld [vmem:[%s3136] sm:$0x1]
    %s3138 = scalar_lea.vmem %s13, 1
    %v3139 = vld [vmem:[%s3138] sm:$0x1]
    %v3140 = vsel %vm278, %v3134, 0.0
    %3141 = vadd.xlane.f32.xlu0 %v3140
    %v3142 = vpop.xlane.xlu0 %3141
    %v3143 = vsel %vm282, %v3135, 0.0
    %3144 = vadd.xlane.f32.xlu0 %v3143
    %v3145 = vpop.xlane.xlu0 %3144
    %v3146 = vmul.f32 %v3142, %v286
    %v3147 = vmul.f32 %v3145, %v286
    %v3148 = vsub.f32 %v3134, %v3146
    %v3149 = vsub.f32 %v3135, %v3147
    %v3150 = vmul.f32 %v3148, %v3148
    %v3151 = vmul.f32 %v3149, %v3149
    %v3152 = vsel %vm278, %v3150, 0.0
    %3153 = vadd.xlane.f32.xlu0 %v3152
    %v3154 = vpop.xlane.xlu0 %3153
    %v3155 = vsel %vm282, %v3151, 0.0
    %3156 = vadd.xlane.f32.xlu0 %v3155
    %v3157 = vpop.xlane.xlu0 %3156
    %v3158 = vmul.f32 %v3154, %v286
    %v3159 = vmul.f32 %v3157, %v286
    %v3160 = vadd.f32 %v3158, 1e-06
    %v3161 = vadd.f32 %v3159, 1e-06
    %v3162 = vrsqrt.pop %v3160
    %v3163 = vrsqrt.pop %v3161
    %v3164 = vmul.f32 %v3148, %v3162
    %v3165 = vmul.f32 %v3149, %v3163
    %v3167 = vlaneseq
    %v3168 = vshrl.u32 %v3167, 7
    %v3169 = vsub.s32 0, %v3168
    %v3170 = vrot.slane %v3137, %v3169
    %v3172 = vmul.f32 %v3164, %v3170
    %v3173 = vmul.f32 %v3165, %v3170
    %v3175 = vlaneseq
    %v3176 = vshrl.u32 %v3175, 7
    %v3177 = vsub.s32 0, %v3176
    %v3178 = vrot.slane %v3139, %v3177
    %v3180 = vadd.f32 %v3172, %v3178
    %v3181 = vadd.f32 %v3173, %v3178
    %s3182 = scalar_lea.vmem %s14, 32
    %v3183 = vld [vmem:[%s3182] sm:$0xff]
    %v3184 = vld [vmem:[%s3182 + $0x8] sm:$0xff]
    %v3185 = vld [vmem:[%s3182 + $0x10] sm:$0xff]
    %v3186 = vld [vmem:[%s3182 + $0x18] sm:$0xff]
    %s3187 = scalar_lea.vmem %s15, 1
    %v3188 = vld [vmem:[%s3187] sm:$0x1]
    %v3190 = vlaneseq
    %v3191 = vshrl.u32 %v3190, 7
    %v3192 = vsub.s32 0, %v3191
    %v3193 = vrot.slane %v3188, %v3192
    %v3196 = vsel %vm278, %v3180, 0
    %v3199 = vsel %vm278, %v3181, 0
    %3201 = vmatprep.subr.mxu0 0.0
    %3202 = vmatpush1.msra.mxu0 %v3183
    %3203 = vmatprep.subr.mxu0 0.0
    %3204 = vmatpush1.msra.mxu0 %v3184
    %3205 = vmatprep.subr.mxu0 0.0
    %3206 = vmatpush1.msra.mxu0 %v3185
    %3207 = vmatprep.subr.mxu0 0.0
    %3208 = vmatpush1.msra.mxu0 %v3186
    %3209 = vmatprep.subr.mxu0 0.0
    %3210 = vmatpush1.msra.mxu0 0.0
    %3211 = vmatprep.subr.mxu0 0.0
    %3212 = vmatpush1.msra.mxu0 0.0
    %3213 = vmatprep.subr.mxu0 0.0
    %3214 = vmatpush1.msra.mxu0 0.0
    %3215 = vmatprep.subr.mxu0 0.0
    %3216 = vmatpush1.msra.mxu0 0.0
    %3217 = vmatprep.subr.mxu0 0.0
    %3218 = vmatpush1.msra.mxu0 0.0
    %3219 = vmatprep.subr.mxu0 0.0
    %3220 = vmatpush1.msra.mxu0 0.0
    %3221 = vmatprep.subr.mxu0 0.0
    %3222 = vmatpush1.msra.mxu0 0.0
    %3223 = vmatprep.subr.mxu0 0.0
    %3224 = vmatpush1.msra.mxu0 0.0
    %3225 = vmatprep.subr.mxu0 0.0
    %3226 = vmatpush1.msra.mxu0 0.0
    %3227 = vmatprep.subr.mxu0 0.0
    %3228 = vmatpush1.msra.mxu0 0.0
    %3229 = vmatprep.subr.mxu0 0.0
    %3230 = vmatpush1.msra.mxu0 0.0
    %3231 = vmatprep.subr.mxu0 0.0
    %3232 = vmatpush1.msra.mxu0 0.0
    %3233 = vmatprep.subr.mxu0 0.0
    %3234 = vmatpush1.msra.mxu0 0.0
    %3235 = vmatprep.subr.mxu0 0.0
    %3236 = vmatpush1.msra.mxu0 0.0
    %3237 = vmatprep.subr.mxu0 0.0
    %3238 = vmatpush1.msra.mxu0 0.0
    %3239 = vmatprep.subr.mxu0 0.0
    %3240 = vmatpush1.msra.mxu0 0.0
    %3241 = vmatprep.subr.mxu0 0.0
    %3242 = vmatpush1.msra.mxu0 0.0
    %3243 = vmatprep.subr.mxu0 0.0
    %3244 = vmatpush1.msra.mxu0 0.0
    %3245 = vmatprep.subr.mxu0 0.0
    %3246 = vmatpush1.msra.mxu0 0.0
    %3247 = vmatprep.subr.mxu0 0.0
    %3248 = vmatpush1.msra.mxu0 0.0
    %3249 = vmatprep.subr.mxu0 0.0
    %3250 = vmatpush1.msra.mxu0 0.0
    %3251 = vmatprep.subr.mxu0 0.0
    %3252 = vmatpush1.msra.mxu0 0.0
    %3253 = vmatprep.subr.mxu0 0.0
    %3254 = vmatpush1.msra.mxu0 0.0
    %3255 = vmatprep.subr.mxu0 0.0
    %3256 = vmatpush1.msra.mxu0 0.0
    %3257 = vmatprep.subr.mxu0 0.0
    %3258 = vmatpush1.msra.mxu0 0.0
    %3259 = vmatprep.subr.mxu0 0.0
    %3260 = vmatpush1.msra.mxu0 0.0
    %3261 = vmatprep.subr.mxu0 0.0
    %3262 = vmatpush1.msra.mxu0 0.0
    %3263 = vmatprep.subr.mxu0 0.0
    %3264 = vmatpush1.msra.mxu0 0.0
    %3265 = vmatprep.mubr.f32.mxu0 0.0
    %3266 = vmatmul.mubr.f32.gmra.mrb[0].mxu0 %v3196
    %v3267 = vpop.f32.mrb[0].mxu0
    %v3268 = vadd.f32 %v3193, %v3267
    %v3269 = vpop.f32.mrb[0].mxu0
    %3270 = vmatprep.mubr.f32.mxu0 0.0
    %3271 = vmatmul.mubr.f32.gmra.mrb[0].mxu0 %v3199
    %v3272 = vpop.f32.mrb[0].mxu0
    %v3273 = vadd.f32 %v3193, %v3272
    %v3274 = vpop.f32.mrb[0].mxu0
    %3275 = vdwg.mxu0
    %v3276 = vmul.f32 %v3268, 0.5
    %v3277 = vmul.f32 %v3273, 0.5
    %v3278 = vmul.f32 %v3268, 0.044715
    %v3279 = vmul.f32 %v3273, 0.044715
    %v3280 = vmul.f32 %v3278, %v3268
    %v3281 = vmul.f32 %v3279, %v3273
    %v3282 = vmul.f32 %v3280, %v3268
    %v3283 = vmul.f32 %v3281, %v3273
    %v3284 = vadd.f32 %v3268, %v3282
    %v3285 = vadd.f32 %v3273, %v3283
    %v3286 = vmul.f32 %v3284, 0.7978846
    %v3287 = vmul.f32 %v3285, 0.7978846
    %v3288 = vtanh.pop %v3286
    %v3289 = vtanh.pop %v3287
    %v3290 = vadd.f32 %v3288, 1.0
    %v3291 = vadd.f32 %v3289, 1.0
    %v3292 = vmul.f32 %v3276, %v3290
    %v3293 = vmul.f32 %v3277, %v3291
    %s3294 = scalar_lea.vmem %s16, 64
    %v3295 = vld [vmem:[%s3294] sm:$0xff]
    %v3296 = vld [vmem:[%s3294 + $0x8] sm:$0xff]
    %v3297 = vld [vmem:[%s3294 + $0x10] sm:$0xff]
    %v3298 = vld [vmem:[%s3294 + $0x18] sm:$0xff]
    %v3299 = vld [vmem:[%s3294 + $0x20] sm:$0xff]
    %v3300 = vld [vmem:[%s3294 + $0x28] sm:$0xff]
    %v3301 = vld [vmem:[%s3294 + $0x30] sm:$0xff]
    %v3302 = vld [vmem:[%s3294 + $0x38] sm:$0xff]
    %v3304 = vsel %vm114, %v3292, 0
    %v3307 = vsel %vm114, %v3293, 0
    %3309 = vmatprep.subr.mxu0 0.0
    %3310 = vmatpush1.msra.mxu0 %v3295
    %3311 = vmatprep.subr.mxu0 0.0
    %3312 = vmatpush1.msra.mxu0 %v3296
    %3313 = vmatprep.subr.mxu0 0.0
    %3314 = vmatpush1.msra.mxu0 %v3297
    %3315 = vmatprep.subr.mxu0 0.0
    %3316 = vmatpush1.msra.mxu0 %v3298
    %3317 = vmatprep.subr.mxu0 0.0
    %3318 = vmatpush1.msra.mxu0 %v3299
    %3319 = vmatprep.subr.mxu0 0.0
    %3320 = vmatpush1.msra.mxu0 %v3300
    %3321 = vmatprep.subr.mxu0 0.0
    %3322 = vmatpush1.msra.mxu0 %v3301
    %3323 = vmatprep.subr.mxu0 0.0
    %3324 = vmatpush1.msra.mxu0 %v3302
    %3325 = vmatprep.subr.mxu0 0.0
    %3326 = vmatpush1.msra.mxu0 0.0
    %3327 = vmatprep.subr.mxu0 0.0
    %3328 = vmatpush1.msra.mxu0 0.0
    %3329 = vmatprep.subr.mxu0 0.0
    %3330 = vmatpush1.msra.mxu0 0.0
    %3331 = vmatprep.subr.mxu0 0.0
    %3332 = vmatpush1.msra.mxu0 0.0
    %3333 = vmatprep.subr.mxu0 0.0
    %3334 = vmatpush1.msra.mxu0 0.0
    %3335 = vmatprep.subr.mxu0 0.0
    %3336 = vmatpush1.msra.mxu0 0.0
    %3337 = vmatprep.subr.mxu0 0.0
    %3338 = vmatpush1.msra.mxu0 0.0
    %3339 = vmatprep.subr.mxu0 0.0
    %3340 = vmatpush1.msra.mxu0 0.0
    %3341 = vmatprep.subr.mxu0 0.0
    %3342 = vmatpush1.msra.mxu0 0.0
    %3343 = vmatprep.subr.mxu0 0.0
    %3344 = vmatpush1.msra.mxu0 0.0
    %3345 = vmatprep.subr.mxu0 0.0
    %3346 = vmatpush1.msra.mxu0 0.0
    %3347 = vmatprep.subr.mxu0 0.0
    %3348 = vmatpush1.msra.mxu0 0.0
    %3349 = vmatprep.subr.mxu0 0.0
    %3350 = vmatpush1.msra.mxu0 0.0
    %3351 = vmatprep.subr.mxu0 0.0
    %3352 = vmatpush1.msra.mxu0 0.0
    %3353 = vmatprep.subr.mxu0 0.0
    %3354 = vmatpush1.msra.mxu0 0.0
    %3355 = vmatprep.subr.mxu0 0.0
    %3356 = vmatpush1.msra.mxu0 0.0
    %3357 = vmatprep.subr.mxu0 0.0
    %3358 = vmatpush1.msra.mxu0 0.0
    %3359 = vmatprep.subr.mxu0 0.0
    %3360 = vmatpush1.msra.mxu0 0.0
    %3361 = vmatprep.subr.mxu0 0.0
    %3362 = vmatpush1.msra.mxu0 0.0
    %3363 = vmatprep.subr.mxu0 0.0
    %3364 = vmatpush1.msra.mxu0 0.0
    %3365 = vmatprep.subr.mxu0 0.0
    %3366 = vmatpush1.msra.mxu0 0.0
    %3367 = vmatprep.subr.mxu0 0.0
    %3368 = vmatpush1.msra.mxu0 0.0
    %3369 = vmatprep.subr.mxu0 0.0
    %3370 = vmatpush1.msra.mxu0 0.0
    %3371 = vmatprep.subr.mxu0 0.0
    %3372 = vmatpush1.msra.mxu0 0.0
    %3373 = vmatprep.mubr.f32.mxu0 0.0
    %3374 = vmatmul.mubr.f32.gmra.mrb[0].mxu0 %v3304
    %v3375 = vpop.f32.mrb[0].mxu0
    %v3376 = vadd.f32 0.0, %v3375
    %v3377 = vpop.f32.mrb[0].mxu0
    %3378 = vmatprep.mubr.f32.mxu0 0.0
    %3379 = vmatmul.mubr.f32.gmra.mrb[0].mxu0 %v3307
    %v3380 = vpop.f32.mrb[0].mxu0
    %v3381 = vadd.f32 0.0, %v3380
    %v3382 = vpop.f32.mrb[0].mxu0
    %3383 = vdwg.mxu0
    %v3384 = vadd.f32 %v3134, %v3376
    %v3385 = vadd.f32 %v3135, %v3381
    %s3386 = scalar_lea.vmem %s17, 1
    %v3387 = vld [vmem:[%s3386] sm:$0x1]
    %v3389 = vlaneseq
    %v3390 = vshrl.u32 %v3389, 7
    %v3391 = vsub.s32 0, %v3390
    %v3392 = vrot.slane %v3387, %v3391
    %v3394 = vadd.f32 %v3384, %v3392
    %v3395 = vadd.f32 %v3385, %v3392
    %v3396 = vld [vmem:[%s18] sm:$0x1]
    %v3397 = vld [vmem:[%s19] sm:$0x1]
    %v3398 = vsel %vm278, %v3394, 0.0
    %3399 = vadd.xlane.f32.xlu0 %v3398
    %v3400 = vpop.xlane.xlu0 %3399
    %v3401 = vsel %vm282, %v3395, 0.0
    %3402 = vadd.xlane.f32.xlu0 %v3401
    %v3403 = vpop.xlane.xlu0 %3402
    %v3404 = vmul.f32 %v3400, %v286
    %v3405 = vmul.f32 %v3403, %v286
    %v3406 = vsub.f32 %v3394, %v3404
    %v3407 = vsub.f32 %v3395, %v3405
    %v3408 = vmul.f32 %v3406, %v3406
    %v3409 = vmul.f32 %v3407, %v3407
    %v3410 = vsel %vm278, %v3408, 0.0
    %3411 = vadd.xlane.f32.xlu0 %v3410
    %v3412 = vpop.xlane.xlu0 %3411
    %v3413 = vsel %vm282, %v3409, 0.0
    %3414 = vadd.xlane.f32.xlu0 %v3413
    %v3415 = vpop.xlane.xlu0 %3414
    %v3416 = vmul.f32 %v3412, %v286
    %v3417 = vmul.f32 %v3415, %v286
    %v3418 = vadd.f32 %v3416, 1e-06
    %v3419 = vadd.f32 %v3417, 1e-06
    %v3420 = vrsqrt.pop %v3418
    %v3421 = vrsqrt.pop %v3419
    %v3422 = vmul.f32 %v3406, %v3420
    %v3423 = vmul.f32 %v3407, %v3421
    %v3425 = vlaneseq
    %v3426 = vshrl.u32 %v3425, 7
    %v3427 = vsub.s32 0, %v3426
    %v3428 = vrot.slane %v3396, %v3427
    %v3430 = vmul.f32 %v3422, %v3428
    %v3431 = vmul.f32 %v3423, %v3428
    %v3433 = vlaneseq
    %v3434 = vshrl.u32 %v3433, 7
    %v3435 = vsub.s32 0, %v3434
    %v3436 = vrot.slane %v3397, %v3435
    %v3438 = vadd.f32 %v3430, %v3436
    %v3439 = vadd.f32 %v3431, %v3436
    %v3440 = vld [vmem:[%s20] sm:$0x3]
    %v3442 = vsel %vm512, %v3440, 0
    %v3445 = vsel %vm547, %v3439, 0
    %3447 = vmatprep.subr.mxu0 0.0
    %3448 = vmatpush1.msra.mxu0 %v3438
    %3449 = vmatprep.subr.mxu0 0.0
    %3450 = vmatpush1.msra.mxu0 %v3445
    %3451 = vmatprep.subr.mxu0 0.0
    %3452 = vmatpush1.msra.mxu0 0.0
    %3453 = vmatprep.subr.mxu0 0.0
    %3454 = vmatpush1.msra.mxu0 0.0
    %3455 = vmatprep.subr.mxu0 0.0
    %3456 = vmatpush1.msra.mxu0 0.0
    %3457 = vmatprep.subr.mxu0 0.0
    %3458 = vmatpush1.msra.mxu0 0.0
    %3459 = vmatprep.subr.mxu0 0.0
    %3460 = vmatpush1.msra.mxu0 0.0
    %3461 = vmatprep.subr.mxu0 0.0
    %3462 = vmatpush1.msra.mxu0 0.0
    %3463 = vmatprep.subr.mxu0 0.0
    %3464 = vmatpush1.msra.mxu0 0.0
    %3465 = vmatprep.subr.mxu0 0.0
    %3466 = vmatpush1.msra.mxu0 0.0
    %3467 = vmatprep.subr.mxu0 0.0
    %3468 = vmatpush1.msra.mxu0 0.0
    %3469 = vmatprep.subr.mxu0 0.0
    %3470 = vmatpush1.msra.mxu0 0.0
    %3471 = vmatprep.subr.mxu0 0.0
    %3472 = vmatpush1.msra.mxu0 0.0
    %3473 = vmatprep.subr.mxu0 0.0
    %3474 = vmatpush1.msra.mxu0 0.0
    %3475 = vmatprep.subr.mxu0 0.0
    %3476 = vmatpush1.msra.mxu0 0.0
    %3477 = vmatprep.subr.mxu0 0.0
    %3478 = vmatpush1.msra.mxu0 0.0
    %3479 = vmatprep.subr.mxu0 0.0
    %3480 = vmatpush1.msra.mxu0 0.0
    %3481 = vmatprep.subr.mxu0 0.0
    %3482 = vmatpush1.msra.mxu0 0.0
    %3483 = vmatprep.subr.mxu0 0.0
    %3484 = vmatpush1.msra.mxu0 0.0
    %3485 = vmatprep.subr.mxu0 0.0
    %3486 = vmatpush1.msra.mxu0 0.0
    %3487 = vmatprep.subr.mxu0 0.0
    %3488 = vmatpush1.msra.mxu0 0.0
    %3489 = vmatprep.subr.mxu0 0.0
    %3490 = vmatpush1.msra.mxu0 0.0
    %3491 = vmatprep.subr.mxu0 0.0
    %3492 = vmatpush1.msra.mxu0 0.0
    %3493 = vmatprep.subr.mxu0 0.0
    %3494 = vmatpush1.msra.mxu0 0.0
    %3495 = vmatprep.subr.mxu0 0.0
    %3496 = vmatpush1.msra.mxu0 0.0
    %3497 = vmatprep.subr.mxu0 0.0
    %3498 = vmatpush1.msra.mxu0 0.0
    %3499 = vmatprep.subr.mxu0 0.0
    %3500 = vmatpush1.msra.mxu0 0.0
    %3501 = vmatprep.subr.mxu0 0.0
    %3502 = vmatpush1.msra.mxu0 0.0
    %3503 = vmatprep.subr.mxu0 0.0
    %3504 = vmatpush1.msra.mxu0 0.0
    %3505 = vmatprep.subr.mxu0 0.0
    %3506 = vmatpush1.msra.mxu0 0.0
    %3507 = vmatprep.subr.mxu0 0.0
    %3508 = vmatpush1.msra.mxu0 0.0
    %3509 = vmatprep.subr.mxu0 0.0
    %3510 = vmatpush1.msra.mxu0 0.0
    %3511 = vmatprep.mubr.f32.mxu0 0.0
    %3512 = vmatmul.mubr.f32.gmra.mrb[0].mxu0 %v3442
    %v3513 = vpop.f32.mrb[0].mxu0
    %v3514 = vadd.f32 0.0, %v3513
    %v3515 = vpop.f32.mrb[0].mxu0
    %3516 = vdwg.mxu0
    %v3517 = vld [vmem:[%s21] sm:$0xff]
    %v3518 = vld [vmem:[%s21 + $0x8] sm:$0xff]
    %v3519 = vld [vmem:[%s21 + $0x10] sm:$0xff]
    %v3520 = vld [vmem:[%s21 + $0x18] sm:$0xff]
    %v3521 = vld [vmem:[%s22] sm:$0x1]
    %v3523 = vlaneseq
    %v3524 = vshrl.u32 %v3523, 7
    %v3525 = vsub.s32 0, %v3524
    %v3526 = vrot.slane %v3521, %v3525
    %v3529 = vsel %vm278, %v3514, 0
    %3531 = vmatprep.subr.mxu0 0.0
    %3532 = vmatpush1.msra.mxu0 %v3517
    %3533 = vmatprep.subr.mxu0 0.0
    %3534 = vmatpush1.msra.mxu0 %v3518
    %3535 = vmatprep.subr.mxu0 0.0
    %3536 = vmatpush1.msra.mxu0 %v3519
    %3537 = vmatprep.subr.mxu0 0.0
    %3538 = vmatpush1.msra.mxu0 %v3520
    %3539 = vmatprep.subr.mxu0 0.0
    %3540 = vmatpush1.msra.mxu0 0.0
    %3541 = vmatprep.subr.mxu0 0.0
    %3542 = vmatpush1.msra.mxu0 0.0
    %3543 = vmatprep.subr.mxu0 0.0
    %3544 = vmatpush1.msra.mxu0 0.0
    %3545 = vmatprep.subr.mxu0 0.0
    %3546 = vmatpush1.msra.mxu0 0.0
    %3547 = vmatprep.subr.mxu0 0.0
    %3548 = vmatpush1.msra.mxu0 0.0
    %3549 = vmatprep.subr.mxu0 0.0
    %3550 = vmatpush1.msra.mxu0 0.0
    %3551 = vmatprep.subr.mxu0 0.0
    %3552 = vmatpush1.msra.mxu0 0.0
    %3553 = vmatprep.subr.mxu0 0.0
    %3554 = vmatpush1.msra.mxu0 0.0
    %3555 = vmatprep.subr.mxu0 0.0
    %3556 = vmatpush1.msra.mxu0 0.0
    %3557 = vmatprep.subr.mxu0 0.0
    %3558 = vmatpush1.msra.mxu0 0.0
    %3559 = vmatprep.subr.mxu0 0.0
    %3560 = vmatpush1.msra.mxu0 0.0
    %3561 = vmatprep.subr.mxu0 0.0
    %3562 = vmatpush1.msra.mxu0 0.0
    %3563 = vmatprep.subr.mxu0 0.0
    %3564 = vmatpush1.msra.mxu0 0.0
    %3565 = vmatprep.subr.mxu0 0.0
    %3566 = vmatpush1.msra.mxu0 0.0
    %3567 = vmatprep.subr.mxu0 0.0
    %3568 = vmatpush1.msra.mxu0 0.0
    %3569 = vmatprep.subr.mxu0 0.0
    %3570 = vmatpush1.msra.mxu0 0.0
    %3571 = vmatprep.subr.mxu0 0.0
    %3572 = vmatpush1.msra.mxu0 0.0
    %3573 = vmatprep.subr.mxu0 0.0
    %3574 = vmatpush1.msra.mxu0 0.0
    %3575 = vmatprep.subr.mxu0 0.0
    %3576 = vmatpush1.msra.mxu0 0.0
    %3577 = vmatprep.subr.mxu0 0.0
    %3578 = vmatpush1.msra.mxu0 0.0
    %3579 = vmatprep.subr.mxu0 0.0
    %3580 = vmatpush1.msra.mxu0 0.0
    %3581 = vmatprep.subr.mxu0 0.0
    %3582 = vmatpush1.msra.mxu0 0.0
    %3583 = vmatprep.subr.mxu0 0.0
    %3584 = vmatpush1.msra.mxu0 0.0
    %3585 = vmatprep.subr.mxu0 0.0
    %3586 = vmatpush1.msra.mxu0 0.0
    %3587 = vmatprep.subr.mxu0 0.0
    %3588 = vmatpush1.msra.mxu0 0.0
    %3589 = vmatprep.subr.mxu0 0.0
    %3590 = vmatpush1.msra.mxu0 0.0
    %3591 = vmatprep.subr.mxu0 0.0
    %3592 = vmatpush1.msra.mxu0 0.0
    %3593 = vmatprep.subr.mxu0 0.0
    %3594 = vmatpush1.msra.mxu0 0.0
    %3595 = vmatprep.mubr.f32.mxu0 0.0
    %3596 = vmatmul.mubr.f32.gmra.mrb[0].mxu0 %v3529
    %v3597 = vpop.f32.mrb[0].mxu0
    %v3598 = vadd.f32 %v3526, %v3597
    %v3599 = vpop.f32.mrb[0].mxu0
    %3600 = vdwg.mxu0
    %v3601 = vtanh.pop %v3598
    %v3602 = vld [vmem:[%s23] sm:$0xff]
    %v3603 = vld [vmem:[%s23 + $0x8] sm:$0xff]
    %v3604 = vld [vmem:[%s23 + $0x10] sm:$0xff]
    %v3605 = vld [vmem:[%s23 + $0x18] sm:$0xff]
    %v3606 = vld [vmem:[%s24] sm:$0x1]
    %v3608 = vlaneseq
    %v3609 = vshrl.u32 %v3608, 7
    %v3610 = vsub.s32 0, %v3609
    %v3611 = vrot.slane %v3606, %v3610
    %v3614 = vsel %vm278, %v3601, 0
    %3616 = vmatprep.subr.mxu0 0.0
    %3617 = vmatpush1.msra.mxu0 %v3602
    %3618 = vmatprep.subr.mxu0 0.0
    %3619 = vmatpush1.msra.mxu0 %v3603
    %3620 = vmatprep.subr.mxu0 0.0
    %3621 = vmatpush1.msra.mxu0 %v3604
    %3622 = vmatprep.subr.mxu0 0.0
    %3623 = vmatpush1.msra.mxu0 %v3605
    %3624 = vmatprep.subr.mxu0 0.0
    %3625 = vmatpush1.msra.mxu0 0.0
    %3626 = vmatprep.subr.mxu0 0.0
    %3627 = vmatpush1.msra.mxu0 0.0
    %3628 = vmatprep.subr.mxu0 0.0
    %3629 = vmatpush1.msra.mxu0 0.0
    %3630 = vmatprep.subr.mxu0 0.0
    %3631 = vmatpush1.msra.mxu0 0.0
    %3632 = vmatprep.subr.mxu0 0.0
    %3633 = vmatpush1.msra.mxu0 0.0
    %3634 = vmatprep.subr.mxu0 0.0
    %3635 = vmatpush1.msra.mxu0 0.0
    %3636 = vmatprep.subr.mxu0 0.0
    %3637 = vmatpush1.msra.mxu0 0.0
    %3638 = vmatprep.subr.mxu0 0.0
    %3639 = vmatpush1.msra.mxu0 0.0
    %3640 = vmatprep.subr.mxu0 0.0
    %3641 = vmatpush1.msra.mxu0 0.0
    %3642 = vmatprep.subr.mxu0 0.0
    %3643 = vmatpush1.msra.mxu0 0.0
    %3644 = vmatprep.subr.mxu0 0.0
    %3645 = vmatpush1.msra.mxu0 0.0
    %3646 = vmatprep.subr.mxu0 0.0
    %3647 = vmatpush1.msra.mxu0 0.0
    %3648 = vmatprep.subr.mxu0 0.0
    %3649 = vmatpush1.msra.mxu0 0.0
    %3650 = vmatprep.subr.mxu0 0.0
    %3651 = vmatpush1.msra.mxu0 0.0
    %3652 = vmatprep.subr.mxu0 0.0
    %3653 = vmatpush1.msra.mxu0 0.0
    %3654 = vmatprep.subr.mxu0 0.0
    %3655 = vmatpush1.msra.mxu0 0.0
    %3656 = vmatprep.subr.mxu0 0.0
    %3657 = vmatpush1.msra.mxu0 0.0
    %3658 = vmatprep.subr.mxu0 0.0
    %3659 = vmatpush1.msra.mxu0 0.0
    %3660 = vmatprep.subr.mxu0 0.0
    %3661 = vmatpush1.msra.mxu0 0.0
    %3662 = vmatprep.subr.mxu0 0.0
    %3663 = vmatpush1.msra.mxu0 0.0
    %3664 = vmatprep.subr.mxu0 0.0
    %3665 = vmatpush1.msra.mxu0 0.0
    %3666 = vmatprep.subr.mxu0 0.0
    %3667 = vmatpush1.msra.mxu0 0.0
    %3668 = vmatprep.subr.mxu0 0.0
    %3669 = vmatpush1.msra.mxu0 0.0
    %3670 = vmatprep.subr.mxu0 0.0
    %3671 = vmatpush1.msra.mxu0 0.0
    %3672 = vmatprep.subr.mxu0 0.0
    %3673 = vmatpush1.msra.mxu0 0.0
    %3674 = vmatprep.subr.mxu0 0.0
    %3675 = vmatpush1.msra.mxu0 0.0
    %3676 = vmatprep.subr.mxu0 0.0
    %3677 = vmatpush1.msra.mxu0 0.0
    %3678 = vmatprep.subr.mxu0 0.0
    %3679 = vmatpush1.msra.mxu0 0.0
    %3680 = vmatprep.mubr.f32.mxu0 0.0
    %3681 = vmatmul.mubr.f32.gmra.mrb[0].mxu0 %v3614
    %v3682 = vpop.f32.mrb[0].mxu0
    %v3683 = vadd.f32 %v3611, %v3682
    %v3684 = vpop.f32.mrb[0].mxu0
    %3685 = vdwg.mxu0
    %3686 = vst [vmem:[#allocation2] sm:$0x3] %v3683
    // Predicated region
    $region102: #{deit_forward.1} parent=1 // pred_check
      _
    $region103: #{deit_forward.1} parent=1 // pred_check_branch
      %3688 = sbr.rel (0) target = $region105
    $region104: #{deit_forward.1} parent=1 // pred_region
      %s3690 = ssub.s32 32, 32
      %3691 = vsyncadd [#allocation3], %s3690
      %s3693 = sshll.u32 [#allocation2], 4
      %s3694 = int_to_ptr.vmem [resolvable:$true] %s3693
      %3696 = dma.vmem_to_hbm [thread:$0]  %s3694, 32, %s25, [#allocation3]
    $region105: #{deit_forward.1} parent=1 // pred_fallthru
      _
    // Predicated region
    $region106: #{deit_forward.1} parent=1 // pred_check
      _
    $region107: #{deit_forward.1} parent=1 // pred_check_branch
      %3698 = sbr.rel (0) target = $region109
    $region108: #{deit_forward.1} parent=1 // pred_region
      %3699 = dma.done [#allocation3], 32
    $region109: #{deit_forward.1} parent=1 // pred_fallthru
      _
    %3700 = vsyncpa [#allocation3], 1

</llo_original>
